<compile_context>
chip_gen: v5e
topology: v5e:2x2
jax: 0.10.0
libtpu: 0.0.40
codegen_flags: <defaults>
</compile_context>

<pallas_src>
import functools
import numpy as np
import jax
import jax.numpy as jnp
from jax import lax
from jax.experimental import pallas as pl
from jax.experimental.pallas import tpu as pltpu


# -----------------------------------------------------------------------------
# Fused Pallas kernel (one batch element per grid step)
# -----------------------------------------------------------------------------
def fused_forward_kernel(
    fx_ref, fy_ref,                 # (1, N, n_in) inputs
    fw_ref, fb_ref,                 # first_lin   (n_in, D), (1, D)
    wq_ref, bq_ref,                 # q proj      (D, D), (1, D)   head-major cols, scale folded
    wkv_ref, bkv_ref,               # fused k|v   (D, 2D), (1, 2D) head-major cols
    wm_ref, bm_ref,                 # merge conv  (D, D), (1, D)   head-major rows
    w1_ref, b1_ref,                 # MLP conv1   (2D, 2D), (1, 2D)
    w2_ref, b2_ref,                 # MLP conv2   (2D, D), (1, D)
    lw_ref, lb_ref,                 # last_lin    (D, n_out), (1, n_out)
    ox_ref, oy_ref,                 # (1, N, n_out) outputs
    *, num_heads, head_dim, n_layers,
):
    D = num_heads * head_dim

    def proj(x, w_ref, b_ref):
        return jnp.dot(x, w_ref[...], preferred_element_type=jnp.float32) + b_ref[...]

    def attn_prop(x, src):
        # Projections: q has the 1/sqrt(head_dim) scale pre-folded; k and v come from a single
        # (D, 2D) fused weight so there is one K=D, 2D-wide MXU pass instead of two.
        q = proj(x, wq_ref, bq_ref)        # (N, D)
        kv = proj(src, wkv_ref, bkv_ref)   # (N, 2D)
        k = kv[:, :D]
        v = kv[:, D:]

        # Per-head attention (static unroll; N and head_dim are tiny here).
        r_parts = []
        for h in range(num_heads):
            lo = h * head_dim
            qh = q[:, lo:lo + head_dim]                                    # (N, dh)
            kh = k[:, lo:lo + head_dim]
            vh = v[:, lo:lo + head_dim]
            s = jnp.dot(qh, kh.T, preferred_element_type=jnp.float32)      # (N, N)
            s = s - jnp.max(s, axis=-1, keepdims=True)
            e = jnp.exp(s)
            p = e * pl.reciprocal(jnp.sum(e, axis=-1, keepdims=True), approx=True)
            r_parts.append(jnp.dot(p, vh, preferred_element_type=jnp.float32))
        r = jnp.concatenate(r_parts, axis=-1)            # (N, D) head-major concat

        # merge conv: ONE K=D matmul (instead of num_heads K=head_dim matmuls)
        message = proj(r, wm_ref, bm_ref)                # (N, D)

        # MLP([2D, 2D, D]): Conv1d -> InstanceNorm1d -> ReLU -> Conv1d
        cat = jnp.concatenate([x, message], axis=-1)     # (N, 2D)
        h1 = proj(cat, w1_ref, b1_ref)                   # ONE K=2D matmul
        # InstanceNorm1d: per (batch, channel) stats over the N axis, biased var, eps=1e-5
        mu = jnp.mean(h1, axis=0, keepdims=True)
        var = jnp.mean((h1 - mu) ** 2, axis=0, keepdims=True)
        h1 = jnp.maximum((h1 - mu) * lax.rsqrt(var + 1e-5), 0.0)
        return proj(h1, w2_ref, b2_ref)                  # (N, D)

    # first_lin for both descriptor sets (PyTorch then transposes to (B, D, N); we stay (N, D)).
    desc0 = proj(fx_ref[0], fw_ref, fb_ref)
    desc1 = proj(fy_ref[0], fw_ref, fb_ref)

    for _ in range(n_layers):                            # static unroll (n_layers is small)
        desc0 = desc0 + attn_prop(desc0, desc1)
        desc1 = desc1 + attn_prop(desc1, desc0)          # uses the updated desc0

    ox_ref[0] = proj(desc0, lw_ref, lb_ref)              # last_lin
    oy_ref[0] = proj(desc1, lw_ref, lb_ref)


# -----------------------------------------------------------------------------
# Parameter preparation (head-major permutation, k|v fusion, scale folding)
# -----------------------------------------------------------------------------
def prep_params(params, num_head, gnn_dim):
    D = gnn_dim
    dh = D // num_head
    scale = 1.0 / float(np.sqrt(dh))
    # new head-major index j = h*dh + d  <->  original PyTorch channel c = d*H + h
    perm = jnp.array([(j % dh) * num_head + (j // dh) for j in range(D)], dtype=jnp.int32)
    return dict(
        fw=params["first_w"], fb=params["first_b"].reshape(1, -1),
        wq=params["wq"][:, perm] * scale,
        bq=(params["bq"][perm] * scale).reshape(1, D),
        wkv=jnp.concatenate([params["wk"][:, perm], params["wv"][:, perm]], axis=1),
        bkv=jnp.concatenate([params["bk"][perm], params["bv"][perm]]).reshape(1, 2 * D),
        wm=params["wm"][perm, :], bm=params["bm"].reshape(1, D),
        w1=params["w1"], b1=params["b1"].reshape(1, 2 * D),
        w2=params["w2"], b2=params["b2"].reshape(1, D),
        lw=params["last_w"], lb=params["last_b"].reshape(1, -1),
    )


# -----------------------------------------------------------------------------
# Wrapper: single pallas_call for the full forward
# -----------------------------------------------------------------------------
def cross_attention_refinement(features_x, features_y, params, *,
                               n_in, gnn_dim, num_head, n_layers=1):
    B, N, c_in = features_x.shape
    D = gnn_dim
    n_out = params["last_w"].shape[1]
    kp = prep_params(params, num_head, gnn_dim)

    kernel = functools.partial(fused_forward_kernel,
                               num_heads=num_head, head_dim=D // num_head, n_layers=n_layers)

    def full(shape):
        nd = len(shape)
        return pl.BlockSpec(shape, lambda b, _nd=nd: (0,) * _nd)

    per_b_in = pl.BlockSpec((1, N, c_in), lambda b: (b, 0, 0))
    per_b_out = pl.BlockSpec((1, N, n_out), lambda b: (b, 0, 0))

    out_x, out_y = pl.pallas_call(
        kernel,
        out_shape=(jax.ShapeDtypeStruct((B, N, n_out), jnp.float32),
                   jax.ShapeDtypeStruct((B, N, n_out), jnp.float32)),
        grid=(B,),
        in_specs=[
            per_b_in, per_b_in,
            full(kp["fw"].shape), full(kp["fb"].shape),
            full(kp["wq"].shape), full(kp["bq"].shape),
            full(kp["wkv"].shape), full(kp["bkv"].shape),
            full(kp["wm"].shape), full(kp["bm"].shape),
            full(kp["w1"].shape), full(kp["b1"].shape),
            full(kp["w2"].shape), full(kp["b2"].shape),
            full(kp["lw"].shape), full(kp["lb"].shape),
        ],
        out_specs=(per_b_out, per_b_out),
        compiler_params=pltpu.CompilerParams(dimension_semantics=("parallel",)),
    )(features_x, features_y,
      kp["fw"], kp["fb"], kp["wq"], kp["bq"], kp["wkv"], kp["bkv"],
      kp["wm"], kp["bm"], kp["w1"], kp["b1"], kp["w2"], kp["b2"],
      kp["lw"], kp["lb"])
    return out_x[:, :, :n_in], out_y[:, :, :n_in]


# -----------------------------------------------------------------------------
# Deterministic parameter init (synthetic; matches module shapes, not a checkpoint)
# -----------------------------------------------------------------------------
def init_params(key, n_in, gnn_dim, num_head):
    D = gnn_dim
    ks = jax.random.split(key, 15)

    def u(k, shape, fan_in):
        s = 1.0 / np.sqrt(fan_in)
        return jax.random.uniform(k, shape, jnp.float32, minval=-s, maxval=s)

    return dict(
        first_w=u(ks[0], (n_in, D), n_in), first_b=u(ks[1], (D,), n_in),
        last_w=u(ks[2], (D, n_in), D), last_b=u(ks[3], (n_in,), D),
        wq=u(ks[4], (D, D), D), bq=u(ks[5], (D,), D),
        wk=u(ks[6], (D, D), D), bk=u(ks[7], (D,), D),
        wv=u(ks[8], (D, D), D), bv=u(ks[9], (D,), D),
        wm=u(ks[10], (D, D), D), bm=u(ks[11], (D,), D),
        w1=u(ks[12], (2 * D, 2 * D), 2 * D), b1=u(ks[13], (2 * D,), 2 * D),
        w2=u(ks[14], (2 * D, D), 2 * D),
        b2=jnp.zeros((D,), jnp.float32),   # nn.init.constant_(mlp[-1].bias, 0.0)
    )


# -----------------------------------------------------------------------------
# Pure-JAX reference (mirrors PyTorch (B, C, N) semantics exactly) for checking
# -----------------------------------------------------------------------------
def ref_forward(features_x, features_y, params, *, n_in, gnn_dim, num_head, n_layers=1):
    H, D = num_head, gnn_dim
    dim = D // H

    def lin(x, w, b):                       # (B, N, Cin) @ (Cin, Cout)
        return x @ w + b

    def conv1d(x, w, b):                    # x: (B, Cin, N), w stored (Cin, Cout)
        return jnp.einsum("bcn,co->bon", x, w) + b[None, :, None]

    def attn_prop(x, src):
        q = conv1d(x, params["wq"], params["bq"])
        k = conv1d(src, params["wk"], params["bk"])
        v = conv1d(src, params["wv"], params["bv"])
        B, _, N = x.shape
        qh = q.reshape(B, dim, H, N)
        kh = k.reshape(B, dim, H, N)
        vh = v.reshape(B, dim, H, N)
        scores = jnp.einsum("bdhn,bdhm->bhnm", qh, kh) / (dim ** 0.5)
        prob = jax.nn.softmax(scores, axis=-1)
        res = jnp.einsum("bhnm,bdhm->bdhn", prob, vh).reshape(B, D, N)
        message = conv1d(res, params["wm"], params["bm"])
        cat = jnp.concatenate([x, message], axis=1)
        h1 = conv1d(cat, params["w1"], params["b1"])
        mu = h1.mean(axis=2, keepdims=True)
        var = ((h1 - mu) ** 2).mean(axis=2, keepdims=True)
        h1 = jnp.maximum((h1 - mu) / jnp.sqrt(var + 1e-5), 0.0)
        return conv1d(h1, params["w2"], params["b2"])

    desc0 = lin(features_x, params["first_w"], params["first_b"]).transpose(0, 2, 1)
    desc1 = lin(features_y, params["first_w"], params["first_b"]).transpose(0, 2, 1)
    for _ in range(n_layers):
        desc0 = desc0 + attn_prop(desc0, desc1)
        desc1 = desc1 + attn_prop(desc1, desc0)
    ax = lin(desc0.transpose(0, 2, 1), params["last_w"], params["last_b"])
    ay = lin(desc1.transpose(0, 2, 1), params["last_w"], params["last_b"])
    return ax[:, :, :n_in], ay[:, :, :n_in]


# -----------------------------------------------------------------------------
if __name__ == "__main__":
    B, N = 2, 16
    n_in = 128
    gnn_dim = 128
    num_head = 4
    n_layers = 1

    key = jax.random.PRNGKey(0)
    kparams, kx, ky = jax.random.split(key, 3)
    params = init_params(kparams, n_in, gnn_dim, num_head)
    features_x = jax.random.normal(kx, (B, N, n_in), jnp.float32)
    features_y = jax.random.normal(ky, (B, N, n_in), jnp.float32)

    fwd = jax.jit(functools.partial(
        cross_attention_refinement,
        n_in=n_in, gnn_dim=gnn_dim, num_head=num_head, n_layers=n_layers))
    out_x, out_y = fwd(features_x, features_y, params)
    jax.block_until_ready((out_x, out_y))

    ref_x, ref_y = ref_forward(features_x, features_y, params,
                               n_in=n_in, gnn_dim=gnn_dim,
                               num_head=num_head, n_layers=n_layers)
    np.testing.assert_allclose(np.asarray(out_x), np.asarray(ref_x), rtol=2e-3, atol=2e-3)
    np.testing.assert_allclose(np.asarray(out_y), np.asarray(ref_y), rtol=2e-3, atol=2e-3)

    print("KERNEL_OK")
</pallas_src>

<mosaic_0001>
module attributes {stable_mosaic.version = 11 : i64} {
  func.func @fused_forward_kernel(%arg0: i32, %arg1: memref<1x16x128xf32, #tpu.memory_space<vmem>>, %arg2: memref<1x16x128xf32, #tpu.memory_space<vmem>>, %arg3: memref<128x128xf32, #tpu.memory_space<vmem>>, %arg4: memref<1x128xf32, #tpu.memory_space<vmem>>, %arg5: memref<128x128xf32, #tpu.memory_space<vmem>>, %arg6: memref<1x128xf32, #tpu.memory_space<vmem>>, %arg7: memref<128x256xf32, #tpu.memory_space<vmem>>, %arg8: memref<1x256xf32, #tpu.memory_space<vmem>>, %arg9: memref<128x128xf32, #tpu.memory_space<vmem>>, %arg10: memref<1x128xf32, #tpu.memory_space<vmem>>, %arg11: memref<256x256xf32, #tpu.memory_space<vmem>>, %arg12: memref<1x256xf32, #tpu.memory_space<vmem>>, %arg13: memref<256x128xf32, #tpu.memory_space<vmem>>, %arg14: memref<1x128xf32, #tpu.memory_space<vmem>>, %arg15: memref<128x128xf32, #tpu.memory_space<vmem>>, %arg16: memref<1x128xf32, #tpu.memory_space<vmem>>, %arg17: memref<1x16x128xf32, #tpu.memory_space<vmem>>, %arg18: memref<1x16x128xf32, #tpu.memory_space<vmem>>) attributes {dimension_semantics = [#tpu.dimension_semantics<parallel>], iteration_bounds = array<i64: 2>, scalar_prefetch = 0 : i64, scratch_operands = 0 : i64, tpu.core_type = #tpu.core_type<tc>, window_params = [{transform_indices = @transform_0, window_bounds = array<i64: 1, 16, 128>}, {transform_indices = @transform_1, window_bounds = array<i64: 1, 16, 128>}, {pipeline_mode = #tpu.pipeline_mode<synchronous>, transform_indices = @transform_2, window_bounds = array<i64: 128, 128>}, {pipeline_mode = #tpu.pipeline_mode<synchronous>, transform_indices = @transform_3, window_bounds = array<i64: 1, 128>}, {pipeline_mode = #tpu.pipeline_mode<synchronous>, transform_indices = @transform_4, window_bounds = array<i64: 128, 128>}, {pipeline_mode = #tpu.pipeline_mode<synchronous>, transform_indices = @transform_5, window_bounds = array<i64: 1, 128>}, {pipeline_mode = #tpu.pipeline_mode<synchronous>, transform_indices = @transform_6, window_bounds = array<i64: 128, 256>}, {pipeline_mode = #tpu.pipeline_mode<synchronous>, transform_indices = @transform_7, window_bounds = array<i64: 1, 256>}, {pipeline_mode = #tpu.pipeline_mode<synchronous>, transform_indices = @transform_8, window_bounds = array<i64: 128, 128>}, {pipeline_mode = #tpu.pipeline_mode<synchronous>, transform_indices = @transform_9, window_bounds = array<i64: 1, 128>}, {pipeline_mode = #tpu.pipeline_mode<synchronous>, transform_indices = @transform_10, window_bounds = array<i64: 256, 256>}, {pipeline_mode = #tpu.pipeline_mode<synchronous>, transform_indices = @transform_11, window_bounds = array<i64: 1, 256>}, {pipeline_mode = #tpu.pipeline_mode<synchronous>, transform_indices = @transform_12, window_bounds = array<i64: 256, 128>}, {pipeline_mode = #tpu.pipeline_mode<synchronous>, transform_indices = @transform_13, window_bounds = array<i64: 1, 128>}, {pipeline_mode = #tpu.pipeline_mode<synchronous>, transform_indices = @transform_14, window_bounds = array<i64: 128, 128>}, {pipeline_mode = #tpu.pipeline_mode<synchronous>, transform_indices = @transform_15, window_bounds = array<i64: 1, 128>}, {transform_indices = @transform_16, window_bounds = array<i64: 1, 16, 128>}, {transform_indices = @transform_17, window_bounds = array<i64: 1, 16, 128>}]} {
    %c0 = arith.constant 0 : index
    %c0_0 = arith.constant 0 : index
    %c0_1 = arith.constant 0 : index
    %0 = vector.load %arg1[%c0, %c0_0, %c0_1] : memref<1x16x128xf32, #tpu.memory_space<vmem>>, vector<1x16x128xf32>
    %1 = vector.shape_cast %0 : vector<1x16x128xf32> to vector<16x128xf32>
    %c0_2 = arith.constant 0 : index
    %c0_3 = arith.constant 0 : index
    %2 = vector.load %arg3[%c0_2, %c0_3] : memref<128x128xf32, #tpu.memory_space<vmem>>, vector<128x128xf32>
    %cst = arith.constant dense<0.000000e+00> : vector<16x128xf32>
    %3 = tpu.matmul %1, %2, %cst {dimension_numbers = #tpu.dot_dimension_numbers<[1], [0], [0], [1], [0, 0, 1, 1], [], []>} : vector<16x128xf32>, vector<128x128xf32>, vector<16x128xf32> -> vector<16x128xf32>
    %c0_4 = arith.constant 0 : index
    %c0_5 = arith.constant 0 : index
    %4 = vector.load %arg4[%c0_4, %c0_5] : memref<1x128xf32, #tpu.memory_space<vmem>>, vector<1x128xf32>
    %5 = vector.broadcast %4 : vector<1x128xf32> to vector<16x128xf32>
    %6 = arith.addf %3, %5 : vector<16x128xf32>
    %c0_6 = arith.constant 0 : index
    %c0_7 = arith.constant 0 : index
    %c0_8 = arith.constant 0 : index
    %7 = vector.load %arg2[%c0_6, %c0_7, %c0_8] : memref<1x16x128xf32, #tpu.memory_space<vmem>>, vector<1x16x128xf32>
    %8 = vector.shape_cast %7 : vector<1x16x128xf32> to vector<16x128xf32>
    %c0_9 = arith.constant 0 : index
    %c0_10 = arith.constant 0 : index
    %9 = vector.load %arg3[%c0_9, %c0_10] : memref<128x128xf32, #tpu.memory_space<vmem>>, vector<128x128xf32>
    %cst_11 = arith.constant dense<0.000000e+00> : vector<16x128xf32>
    %10 = tpu.matmul %8, %9, %cst_11 {dimension_numbers = #tpu.dot_dimension_numbers<[1], [0], [0], [1], [0, 0, 1, 1], [], []>} : vector<16x128xf32>, vector<128x128xf32>, vector<16x128xf32> -> vector<16x128xf32>
    %c0_12 = arith.constant 0 : index
    %c0_13 = arith.constant 0 : index
    %11 = vector.load %arg4[%c0_12, %c0_13] : memref<1x128xf32, #tpu.memory_space<vmem>>, vector<1x128xf32>
    %12 = vector.broadcast %11 : vector<1x128xf32> to vector<16x128xf32>
    %13 = arith.addf %10, %12 : vector<16x128xf32>
    %c0_14 = arith.constant 0 : index
    %c0_15 = arith.constant 0 : index
    %14 = vector.load %arg5[%c0_14, %c0_15] : memref<128x128xf32, #tpu.memory_space<vmem>>, vector<128x128xf32>
    %cst_16 = arith.constant dense<0.000000e+00> : vector<16x128xf32>
    %15 = tpu.matmul %6, %14, %cst_16 {dimension_numbers = #tpu.dot_dimension_numbers<[1], [0], [0], [1], [0, 0, 1, 1], [], []>} : vector<16x128xf32>, vector<128x128xf32>, vector<16x128xf32> -> vector<16x128xf32>
    %c0_17 = arith.constant 0 : index
    %c0_18 = arith.constant 0 : index
    %16 = vector.load %arg6[%c0_17, %c0_18] : memref<1x128xf32, #tpu.memory_space<vmem>>, vector<1x128xf32>
    %17 = vector.broadcast %16 : vector<1x128xf32> to vector<16x128xf32>
    %18 = arith.addf %15, %17 : vector<16x128xf32>
    %c0_19 = arith.constant 0 : index
    %c0_20 = arith.constant 0 : index
    %19 = vector.load %arg7[%c0_19, %c0_20] : memref<128x256xf32, #tpu.memory_space<vmem>>, vector<128x256xf32>
    %cst_21 = arith.constant dense<0.000000e+00> : vector<16x256xf32>
    %20 = tpu.matmul %13, %19, %cst_21 {dimension_numbers = #tpu.dot_dimension_numbers<[1], [0], [0], [1], [0, 0, 1, 1], [], []>} : vector<16x128xf32>, vector<128x256xf32>, vector<16x256xf32> -> vector<16x256xf32>
    %c0_22 = arith.constant 0 : index
    %c0_23 = arith.constant 0 : index
    %21 = vector.load %arg8[%c0_22, %c0_23] : memref<1x256xf32, #tpu.memory_space<vmem>>, vector<1x256xf32>
    %22 = vector.broadcast %21 : vector<1x256xf32> to vector<16x256xf32>
    %23 = arith.addf %20, %22 : vector<16x256xf32>
    %24 = vector.extract_strided_slice %23 {offsets = [0, 0], sizes = [16, 128], strides = [1, 1]} : vector<16x256xf32> to vector<16x128xf32>
    %25 = vector.extract_strided_slice %23 {offsets = [0, 128], sizes = [16, 128], strides = [1, 1]} : vector<16x256xf32> to vector<16x128xf32>
    %26 = vector.extract_strided_slice %18 {offsets = [0, 0], sizes = [16, 32], strides = [1, 1]} : vector<16x128xf32> to vector<16x32xf32>
    %27 = vector.extract_strided_slice %24 {offsets = [0, 0], sizes = [16, 32], strides = [1, 1]} : vector<16x128xf32> to vector<16x32xf32>
    %28 = vector.extract_strided_slice %25 {offsets = [0, 0], sizes = [16, 32], strides = [1, 1]} : vector<16x128xf32> to vector<16x32xf32>
    %29 = tpu.transpose %27, [1, 0] : vector<16x32xf32> -> vector<32x16xf32>
    %cst_24 = arith.constant dense<0.000000e+00> : vector<16x16xf32>
    %30 = tpu.matmul %26, %29, %cst_24 {dimension_numbers = #tpu.dot_dimension_numbers<[1], [0], [0], [1], [0, 0, 1, 1], [], []>} : vector<16x32xf32>, vector<32x16xf32>, vector<16x16xf32> -> vector<16x16xf32>
    %cst_25 = arith.constant dense<0xFF800000> : vector<16xf32>
    %31 = vector.multi_reduction <maximumf>, %30, %cst_25 [1] : vector<16x16xf32> to vector<16xf32>
    %32 = vector.shape_cast %31 : vector<16xf32> to vector<16x1xf32>
    %33 = vector.broadcast %32 : vector<16x1xf32> to vector<16x16xf32>
    %34 = arith.subf %30, %33 : vector<16x16xf32>
    %35 = math.exp %34 : vector<16x16xf32>
    %cst_26 = arith.constant dense<0.000000e+00> : vector<16xf32>
    %36 = vector.multi_reduction <add>, %35, %cst_26 [1] : vector<16x16xf32> to vector<16xf32>
    %37 = vector.shape_cast %36 : vector<16xf32> to vector<16x1xf32>
    %38 = tpu.reciprocal %37 {approx = true} : vector<16x1xf32> -> vector<16x1xf32>
    %39 = vector.broadcast %38 : vector<16x1xf32> to vector<16x16xf32>
    %40 = arith.mulf %35, %39 : vector<16x16xf32>
    %cst_27 = arith.constant dense<0.000000e+00> : vector<16x32xf32>
    %41 = tpu.matmul %40, %28, %cst_27 {dimension_numbers = #tpu.dot_dimension_numbers<[1], [0], [0], [1], [0, 0, 1, 1], [], []>} : vector<16x16xf32>, vector<16x32xf32>, vector<16x32xf32> -> vector<16x32xf32>
    %42 = vector.extract_strided_slice %18 {offsets = [0, 32], sizes = [16, 32], strides = [1, 1]} : vector<16x128xf32> to vector<16x32xf32>
    %43 = vector.extract_strided_slice %24 {offsets = [0, 32], sizes = [16, 32], strides = [1, 1]} : vector<16x128xf32> to vector<16x32xf32>
    %44 = vector.extract_strided_slice %25 {offsets = [0, 32], sizes = [16, 32], strides = [1, 1]} : vector<16x128xf32> to vector<16x32xf32>
    %45 = tpu.transpose %43, [1, 0] : vector<16x32xf32> -> vector<32x16xf32>
    %cst_28 = arith.constant dense<0.000000e+00> : vector<16x16xf32>
    %46 = tpu.matmul %42, %45, %cst_28 {dimension_numbers = #tpu.dot_dimension_numbers<[1], [0], [0], [1], [0, 0, 1, 1], [], []>} : vector<16x32xf32>, vector<32x16xf32>, vector<16x16xf32> -> vector<16x16xf32>
    %cst_29 = arith.constant dense<0xFF800000> : vector<16xf32>
    %47 = vector.multi_reduction <maximumf>, %46, %cst_29 [1] : vector<16x16xf32> to vector<16xf32>
    %48 = vector.shape_cast %47 : vector<16xf32> to vector<16x1xf32>
    %49 = vector.broadcast %48 : vector<16x1xf32> to vector<16x16xf32>
    %50 = arith.subf %46, %49 : vector<16x16xf32>
    %51 = math.exp %50 : vector<16x16xf32>
    %cst_30 = arith.constant dense<0.000000e+00> : vector<16xf32>
    %52 = vector.multi_reduction <add>, %51, %cst_30 [1] : vector<16x16xf32> to vector<16xf32>
    %53 = vector.shape_cast %52 : vector<16xf32> to vector<16x1xf32>
    %54 = tpu.reciprocal %53 {approx = true} : vector<16x1xf32> -> vector<16x1xf32>
    %55 = vector.broadcast %54 : vector<16x1xf32> to vector<16x16xf32>
    %56 = arith.mulf %51, %55 : vector<16x16xf32>
    %cst_31 = arith.constant dense<0.000000e+00> : vector<16x32xf32>
    %57 = tpu.matmul %56, %44, %cst_31 {dimension_numbers = #tpu.dot_dimension_numbers<[1], [0], [0], [1], [0, 0, 1, 1], [], []>} : vector<16x16xf32>, vector<16x32xf32>, vector<16x32xf32> -> vector<16x32xf32>
    %58 = vector.extract_strided_slice %18 {offsets = [0, 64], sizes = [16, 32], strides = [1, 1]} : vector<16x128xf32> to vector<16x32xf32>
    %59 = vector.extract_strided_slice %24 {offsets = [0, 64], sizes = [16, 32], strides = [1, 1]} : vector<16x128xf32> to vector<16x32xf32>
    %60 = vector.extract_strided_slice %25 {offsets = [0, 64], sizes = [16, 32], strides = [1, 1]} : vector<16x128xf32> to vector<16x32xf32>
    %61 = tpu.transpose %59, [1, 0] : vector<16x32xf32> -> vector<32x16xf32>
    %cst_32 = arith.constant dense<0.000000e+00> : vector<16x16xf32>
    %62 = tpu.matmul %58, %61, %cst_32 {dimension_numbers = #tpu.dot_dimension_numbers<[1], [0], [0], [1], [0, 0, 1, 1], [], []>} : vector<16x32xf32>, vector<32x16xf32>, vector<16x16xf32> -> vector<16x16xf32>
    %cst_33 = arith.constant dense<0xFF800000> : vector<16xf32>
    %63 = vector.multi_reduction <maximumf>, %62, %cst_33 [1] : vector<16x16xf32> to vector<16xf32>
    %64 = vector.shape_cast %63 : vector<16xf32> to vector<16x1xf32>
    %65 = vector.broadcast %64 : vector<16x1xf32> to vector<16x16xf32>
    %66 = arith.subf %62, %65 : vector<16x16xf32>
    %67 = math.exp %66 : vector<16x16xf32>
    %cst_34 = arith.constant dense<0.000000e+00> : vector<16xf32>
    %68 = vector.multi_reduction <add>, %67, %cst_34 [1] : vector<16x16xf32> to vector<16xf32>
    %69 = vector.shape_cast %68 : vector<16xf32> to vector<16x1xf32>
    %70 = tpu.reciprocal %69 {approx = true} : vector<16x1xf32> -> vector<16x1xf32>
    %71 = vector.broadcast %70 : vector<16x1xf32> to vector<16x16xf32>
    %72 = arith.mulf %67, %71 : vector<16x16xf32>
    %cst_35 = arith.constant dense<0.000000e+00> : vector<16x32xf32>
    %73 = tpu.matmul %72, %60, %cst_35 {dimension_numbers = #tpu.dot_dimension_numbers<[1], [0], [0], [1], [0, 0, 1, 1], [], []>} : vector<16x16xf32>, vector<16x32xf32>, vector<16x32xf32> -> vector<16x32xf32>
    %74 = vector.extract_strided_slice %18 {offsets = [0, 96], sizes = [16, 32], strides = [1, 1]} : vector<16x128xf32> to vector<16x32xf32>
    %75 = vector.extract_strided_slice %24 {offsets = [0, 96], sizes = [16, 32], strides = [1, 1]} : vector<16x128xf32> to vector<16x32xf32>
    %76 = vector.extract_strided_slice %25 {offsets = [0, 96], sizes = [16, 32], strides = [1, 1]} : vector<16x128xf32> to vector<16x32xf32>
    %77 = tpu.transpose %75, [1, 0] : vector<16x32xf32> -> vector<32x16xf32>
    %cst_36 = arith.constant dense<0.000000e+00> : vector<16x16xf32>
    %78 = tpu.matmul %74, %77, %cst_36 {dimension_numbers = #tpu.dot_dimension_numbers<[1], [0], [0], [1], [0, 0, 1, 1], [], []>} : vector<16x32xf32>, vector<32x16xf32>, vector<16x16xf32> -> vector<16x16xf32>
    %cst_37 = arith.constant dense<0xFF800000> : vector<16xf32>
    %79 = vector.multi_reduction <maximumf>, %78, %cst_37 [1] : vector<16x16xf32> to vector<16xf32>
    %80 = vector.shape_cast %79 : vector<16xf32> to vector<16x1xf32>
    %81 = vector.broadcast %80 : vector<16x1xf32> to vector<16x16xf32>
    %82 = arith.subf %78, %81 : vector<16x16xf32>
    %83 = math.exp %82 : vector<16x16xf32>
    %cst_38 = arith.constant dense<0.000000e+00> : vector<16xf32>
    %84 = vector.multi_reduction <add>, %83, %cst_38 [1] : vector<16x16xf32> to vector<16xf32>
    %85 = vector.shape_cast %84 : vector<16xf32> to vector<16x1xf32>
    %86 = tpu.reciprocal %85 {approx = true} : vector<16x1xf32> -> vector<16x1xf32>
    %87 = vector.broadcast %86 : vector<16x1xf32> to vector<16x16xf32>
    %88 = arith.mulf %83, %87 : vector<16x16xf32>
    %cst_39 = arith.constant dense<0.000000e+00> : vector<16x32xf32>
    %89 = tpu.matmul %88, %76, %cst_39 {dimension_numbers = #tpu.dot_dimension_numbers<[1], [0], [0], [1], [0, 0, 1, 1], [], []>} : vector<16x16xf32>, vector<16x32xf32>, vector<16x32xf32> -> vector<16x32xf32>
    %90 = tpu.concatenate %41, %57, %73, %89 in 1 : vector<16x32xf32>, vector<16x32xf32>, vector<16x32xf32>, vector<16x32xf32> -> vector<16x128xf32>
    %c0_40 = arith.constant 0 : index
    %c0_41 = arith.constant 0 : index
    %91 = vector.load %arg9[%c0_40, %c0_41] : memref<128x128xf32, #tpu.memory_space<vmem>>, vector<128x128xf32>
    %cst_42 = arith.constant dense<0.000000e+00> : vector<16x128xf32>
    %92 = tpu.matmul %90, %91, %cst_42 {dimension_numbers = #tpu.dot_dimension_numbers<[1], [0], [0], [1], [0, 0, 1, 1], [], []>} : vector<16x128xf32>, vector<128x128xf32>, vector<16x128xf32> -> vector<16x128xf32>
    %c0_43 = arith.constant 0 : index
    %c0_44 = arith.constant 0 : index
    %93 = vector.load %arg10[%c0_43, %c0_44] : memref<1x128xf32, #tpu.memory_space<vmem>>, vector<1x128xf32>
    %94 = vector.broadcast %93 : vector<1x128xf32> to vector<16x128xf32>
    %95 = arith.addf %92, %94 : vector<16x128xf32>
    %96 = tpu.concatenate %6, %95 in 1 : vector<16x128xf32>, vector<16x128xf32> -> vector<16x256xf32>
    %c0_45 = arith.constant 0 : index
    %c0_46 = arith.constant 0 : index
    %97 = vector.load %arg11[%c0_45, %c0_46] : memref<256x256xf32, #tpu.memory_space<vmem>>, vector<256x256xf32>
    %cst_47 = arith.constant dense<0.000000e+00> : vector<16x256xf32>
    %98 = tpu.matmul %96, %97, %cst_47 {dimension_numbers = #tpu.dot_dimension_numbers<[1], [0], [0], [1], [0, 0, 1, 1], [], []>} : vector<16x256xf32>, vector<256x256xf32>, vector<16x256xf32> -> vector<16x256xf32>
    %c0_48 = arith.constant 0 : index
    %c0_49 = arith.constant 0 : index
    %99 = vector.load %arg12[%c0_48, %c0_49] : memref<1x256xf32, #tpu.memory_space<vmem>>, vector<1x256xf32>
    %100 = vector.broadcast %99 : vector<1x256xf32> to vector<16x256xf32>
    %101 = arith.addf %98, %100 : vector<16x256xf32>
    %cst_50 = arith.constant dense<0.000000e+00> : vector<256xf32>
    %102 = vector.multi_reduction <add>, %101, %cst_50 [0] : vector<16x256xf32> to vector<256xf32>
    %103 = vector.shape_cast %102 : vector<256xf32> to vector<1x256xf32>
    %cst_51 = arith.constant 1.600000e+01 : f32
    %104 = vector.broadcast %cst_51 : f32 to vector<1x256xf32>
    %105 = arith.divf %103, %104 : vector<1x256xf32>
    %106 = vector.broadcast %105 : vector<1x256xf32> to vector<16x256xf32>
    %107 = arith.subf %101, %106 : vector<16x256xf32>
    %108 = arith.mulf %107, %107 : vector<16x256xf32>
    %cst_52 = arith.constant dense<0.000000e+00> : vector<256xf32>
    %109 = vector.multi_reduction <add>, %108, %cst_52 [0] : vector<16x256xf32> to vector<256xf32>
    %110 = vector.shape_cast %109 : vector<256xf32> to vector<1x256xf32>
    %cst_53 = arith.constant 1.600000e+01 : f32
    %111 = vector.broadcast %cst_53 : f32 to vector<1x256xf32>
    %112 = arith.divf %110, %111 : vector<1x256xf32>
    %113 = vector.broadcast %105 : vector<1x256xf32> to vector<16x256xf32>
    %114 = arith.subf %101, %113 : vector<16x256xf32>
    %cst_54 = arith.constant 9.99999974E-6 : f32
    %115 = vector.broadcast %cst_54 : f32 to vector<1x256xf32>
    %116 = arith.addf %112, %115 : vector<1x256xf32>
    %117 = math.rsqrt %116 : vector<1x256xf32>
    %118 = vector.broadcast %117 : vector<1x256xf32> to vector<16x256xf32>
    %119 = arith.mulf %114, %118 : vector<16x256xf32>
    %cst_55 = arith.constant 0.000000e+00 : f32
    %120 = vector.broadcast %cst_55 : f32 to vector<16x256xf32>
    %121 = arith.maximumf %119, %120 : vector<16x256xf32>
    %c0_56 = arith.constant 0 : index
    %c0_57 = arith.constant 0 : index
    %122 = vector.load %arg13[%c0_56, %c0_57] : memref<256x128xf32, #tpu.memory_space<vmem>>, vector<256x128xf32>
    %cst_58 = arith.constant dense<0.000000e+00> : vector<16x128xf32>
    %123 = tpu.matmul %121, %122, %cst_58 {dimension_numbers = #tpu.dot_dimension_numbers<[1], [0], [0], [1], [0, 0, 1, 1], [], []>} : vector<16x256xf32>, vector<256x128xf32>, vector<16x128xf32> -> vector<16x128xf32>
    %c0_59 = arith.constant 0 : index
    %c0_60 = arith.constant 0 : index
    %124 = vector.load %arg14[%c0_59, %c0_60] : memref<1x128xf32, #tpu.memory_space<vmem>>, vector<1x128xf32>
    %125 = vector.broadcast %124 : vector<1x128xf32> to vector<16x128xf32>
    %126 = arith.addf %123, %125 : vector<16x128xf32>
    %127 = arith.addf %6, %126 : vector<16x128xf32>
    %c0_61 = arith.constant 0 : index
    %c0_62 = arith.constant 0 : index
    %128 = vector.load %arg5[%c0_61, %c0_62] : memref<128x128xf32, #tpu.memory_space<vmem>>, vector<128x128xf32>
    %cst_63 = arith.constant dense<0.000000e+00> : vector<16x128xf32>
    %129 = tpu.matmul %13, %128, %cst_63 {dimension_numbers = #tpu.dot_dimension_numbers<[1], [0], [0], [1], [0, 0, 1, 1], [], []>} : vector<16x128xf32>, vector<128x128xf32>, vector<16x128xf32> -> vector<16x128xf32>
    %c0_64 = arith.constant 0 : index
    %c0_65 = arith.constant 0 : index
    %130 = vector.load %arg6[%c0_64, %c0_65] : memref<1x128xf32, #tpu.memory_space<vmem>>, vector<1x128xf32>
    %131 = vector.broadcast %130 : vector<1x128xf32> to vector<16x128xf32>
    %132 = arith.addf %129, %131 : vector<16x128xf32>
    %c0_66 = arith.constant 0 : index
    %c0_67 = arith.constant 0 : index
    %133 = vector.load %arg7[%c0_66, %c0_67] : memref<128x256xf32, #tpu.memory_space<vmem>>, vector<128x256xf32>
    %cst_68 = arith.constant dense<0.000000e+00> : vector<16x256xf32>
    %134 = tpu.matmul %127, %133, %cst_68 {dimension_numbers = #tpu.dot_dimension_numbers<[1], [0], [0], [1], [0, 0, 1, 1], [], []>} : vector<16x128xf32>, vector<128x256xf32>, vector<16x256xf32> -> vector<16x256xf32>
    %c0_69 = arith.constant 0 : index
    %c0_70 = arith.constant 0 : index
    %135 = vector.load %arg8[%c0_69, %c0_70] : memref<1x256xf32, #tpu.memory_space<vmem>>, vector<1x256xf32>
    %136 = vector.broadcast %135 : vector<1x256xf32> to vector<16x256xf32>
    %137 = arith.addf %134, %136 : vector<16x256xf32>
    %138 = vector.extract_strided_slice %137 {offsets = [0, 0], sizes = [16, 128], strides = [1, 1]} : vector<16x256xf32> to vector<16x128xf32>
    %139 = vector.extract_strided_slice %137 {offsets = [0, 128], sizes = [16, 128], strides = [1, 1]} : vector<16x256xf32> to vector<16x128xf32>
    %140 = vector.extract_strided_slice %132 {offsets = [0, 0], sizes = [16, 32], strides = [1, 1]} : vector<16x128xf32> to vector<16x32xf32>
    %141 = vector.extract_strided_slice %138 {offsets = [0, 0], sizes = [16, 32], strides = [1, 1]} : vector<16x128xf32> to vector<16x32xf32>
    %142 = vector.extract_strided_slice %139 {offsets = [0, 0], sizes = [16, 32], strides = [1, 1]} : vector<16x128xf32> to vector<16x32xf32>
    %143 = tpu.transpose %141, [1, 0] : vector<16x32xf32> -> vector<32x16xf32>
    %cst_71 = arith.constant dense<0.000000e+00> : vector<16x16xf32>
    %144 = tpu.matmul %140, %143, %cst_71 {dimension_numbers = #tpu.dot_dimension_numbers<[1], [0], [0], [1], [0, 0, 1, 1], [], []>} : vector<16x32xf32>, vector<32x16xf32>, vector<16x16xf32> -> vector<16x16xf32>
    %cst_72 = arith.constant dense<0xFF800000> : vector<16xf32>
    %145 = vector.multi_reduction <maximumf>, %144, %cst_72 [1] : vector<16x16xf32> to vector<16xf32>
    %146 = vector.shape_cast %145 : vector<16xf32> to vector<16x1xf32>
    %147 = vector.broadcast %146 : vector<16x1xf32> to vector<16x16xf32>
    %148 = arith.subf %144, %147 : vector<16x16xf32>
    %149 = math.exp %148 : vector<16x16xf32>
    %cst_73 = arith.constant dense<0.000000e+00> : vector<16xf32>
    %150 = vector.multi_reduction <add>, %149, %cst_73 [1] : vector<16x16xf32> to vector<16xf32>
    %151 = vector.shape_cast %150 : vector<16xf32> to vector<16x1xf32>
    %152 = tpu.reciprocal %151 {approx = true} : vector<16x1xf32> -> vector<16x1xf32>
    %153 = vector.broadcast %152 : vector<16x1xf32> to vector<16x16xf32>
    %154 = arith.mulf %149, %153 : vector<16x16xf32>
    %cst_74 = arith.constant dense<0.000000e+00> : vector<16x32xf32>
    %155 = tpu.matmul %154, %142, %cst_74 {dimension_numbers = #tpu.dot_dimension_numbers<[1], [0], [0], [1], [0, 0, 1, 1], [], []>} : vector<16x16xf32>, vector<16x32xf32>, vector<16x32xf32> -> vector<16x32xf32>
    %156 = vector.extract_strided_slice %132 {offsets = [0, 32], sizes = [16, 32], strides = [1, 1]} : vector<16x128xf32> to vector<16x32xf32>
    %157 = vector.extract_strided_slice %138 {offsets = [0, 32], sizes = [16, 32], strides = [1, 1]} : vector<16x128xf32> to vector<16x32xf32>
    %158 = vector.extract_strided_slice %139 {offsets = [0, 32], sizes = [16, 32], strides = [1, 1]} : vector<16x128xf32> to vector<16x32xf32>
    %159 = tpu.transpose %157, [1, 0] : vector<16x32xf32> -> vector<32x16xf32>
    %cst_75 = arith.constant dense<0.000000e+00> : vector<16x16xf32>
    %160 = tpu.matmul %156, %159, %cst_75 {dimension_numbers = #tpu.dot_dimension_numbers<[1], [0], [0], [1], [0, 0, 1, 1], [], []>} : vector<16x32xf32>, vector<32x16xf32>, vector<16x16xf32> -> vector<16x16xf32>
    %cst_76 = arith.constant dense<0xFF800000> : vector<16xf32>
    %161 = vector.multi_reduction <maximumf>, %160, %cst_76 [1] : vector<16x16xf32> to vector<16xf32>
    %162 = vector.shape_cast %161 : vector<16xf32> to vector<16x1xf32>
    %163 = vector.broadcast %162 : vector<16x1xf32> to vector<16x16xf32>
    %164 = arith.subf %160, %163 : vector<16x16xf32>
    %165 = math.exp %164 : vector<16x16xf32>
    %cst_77 = arith.constant dense<0.000000e+00> : vector<16xf32>
    %166 = vector.multi_reduction <add>, %165, %cst_77 [1] : vector<16x16xf32> to vector<16xf32>
    %167 = vector.shape_cast %166 : vector<16xf32> to vector<16x1xf32>
    %168 = tpu.reciprocal %167 {approx = true} : vector<16x1xf32> -> vector<16x1xf32>
    %169 = vector.broadcast %168 : vector<16x1xf32> to vector<16x16xf32>
    %170 = arith.mulf %165, %169 : vector<16x16xf32>
    %cst_78 = arith.constant dense<0.000000e+00> : vector<16x32xf32>
    %171 = tpu.matmul %170, %158, %cst_78 {dimension_numbers = #tpu.dot_dimension_numbers<[1], [0], [0], [1], [0, 0, 1, 1], [], []>} : vector<16x16xf32>, vector<16x32xf32>, vector<16x32xf32> -> vector<16x32xf32>
    %172 = vector.extract_strided_slice %132 {offsets = [0, 64], sizes = [16, 32], strides = [1, 1]} : vector<16x128xf32> to vector<16x32xf32>
    %173 = vector.extract_strided_slice %138 {offsets = [0, 64], sizes = [16, 32], strides = [1, 1]} : vector<16x128xf32> to vector<16x32xf32>
    %174 = vector.extract_strided_slice %139 {offsets = [0, 64], sizes = [16, 32], strides = [1, 1]} : vector<16x128xf32> to vector<16x32xf32>
    %175 = tpu.transpose %173, [1, 0] : vector<16x32xf32> -> vector<32x16xf32>
    %cst_79 = arith.constant dense<0.000000e+00> : vector<16x16xf32>
    %176 = tpu.matmul %172, %175, %cst_79 {dimension_numbers = #tpu.dot_dimension_numbers<[1], [0], [0], [1], [0, 0, 1, 1], [], []>} : vector<16x32xf32>, vector<32x16xf32>, vector<16x16xf32> -> vector<16x16xf32>
    %cst_80 = arith.constant dense<0xFF800000> : vector<16xf32>
    %177 = vector.multi_reduction <maximumf>, %176, %cst_80 [1] : vector<16x16xf32> to vector<16xf32>
    %178 = vector.shape_cast %177 : vector<16xf32> to vector<16x1xf32>
    %179 = vector.broadcast %178 : vector<16x1xf32> to vector<16x16xf32>
    %180 = arith.subf %176, %179 : vector<16x16xf32>
    %181 = math.exp %180 : vector<16x16xf32>
    %cst_81 = arith.constant dense<0.000000e+00> : vector<16xf32>
    %182 = vector.multi_reduction <add>, %181, %cst_81 [1] : vector<16x16xf32> to vector<16xf32>
    %183 = vector.shape_cast %182 : vector<16xf32> to vector<16x1xf32>
    %184 = tpu.reciprocal %183 {approx = true} : vector<16x1xf32> -> vector<16x1xf32>
    %185 = vector.broadcast %184 : vector<16x1xf32> to vector<16x16xf32>
    %186 = arith.mulf %181, %185 : vector<16x16xf32>
    %cst_82 = arith.constant dense<0.000000e+00> : vector<16x32xf32>
    %187 = tpu.matmul %186, %174, %cst_82 {dimension_numbers = #tpu.dot_dimension_numbers<[1], [0], [0], [1], [0, 0, 1, 1], [], []>} : vector<16x16xf32>, vector<16x32xf32>, vector<16x32xf32> -> vector<16x32xf32>
    %188 = vector.extract_strided_slice %132 {offsets = [0, 96], sizes = [16, 32], strides = [1, 1]} : vector<16x128xf32> to vector<16x32xf32>
    %189 = vector.extract_strided_slice %138 {offsets = [0, 96], sizes = [16, 32], strides = [1, 1]} : vector<16x128xf32> to vector<16x32xf32>
    %190 = vector.extract_strided_slice %139 {offsets = [0, 96], sizes = [16, 32], strides = [1, 1]} : vector<16x128xf32> to vector<16x32xf32>
    %191 = tpu.transpose %189, [1, 0] : vector<16x32xf32> -> vector<32x16xf32>
    %cst_83 = arith.constant dense<0.000000e+00> : vector<16x16xf32>
    %192 = tpu.matmul %188, %191, %cst_83 {dimension_numbers = #tpu.dot_dimension_numbers<[1], [0], [0], [1], [0, 0, 1, 1], [], []>} : vector<16x32xf32>, vector<32x16xf32>, vector<16x16xf32> -> vector<16x16xf32>
    %cst_84 = arith.constant dense<0xFF800000> : vector<16xf32>
    %193 = vector.multi_reduction <maximumf>, %192, %cst_84 [1] : vector<16x16xf32> to vector<16xf32>
    %194 = vector.shape_cast %193 : vector<16xf32> to vector<16x1xf32>
    %195 = vector.broadcast %194 : vector<16x1xf32> to vector<16x16xf32>
    %196 = arith.subf %192, %195 : vector<16x16xf32>
    %197 = math.exp %196 : vector<16x16xf32>
    %cst_85 = arith.constant dense<0.000000e+00> : vector<16xf32>
    %198 = vector.multi_reduction <add>, %197, %cst_85 [1] : vector<16x16xf32> to vector<16xf32>
    %199 = vector.shape_cast %198 : vector<16xf32> to vector<16x1xf32>
    %200 = tpu.reciprocal %199 {approx = true} : vector<16x1xf32> -> vector<16x1xf32>
    %201 = vector.broadcast %200 : vector<16x1xf32> to vector<16x16xf32>
    %202 = arith.mulf %197, %201 : vector<16x16xf32>
    %cst_86 = arith.constant dense<0.000000e+00> : vector<16x32xf32>
    %203 = tpu.matmul %202, %190, %cst_86 {dimension_numbers = #tpu.dot_dimension_numbers<[1], [0], [0], [1], [0, 0, 1, 1], [], []>} : vector<16x16xf32>, vector<16x32xf32>, vector<16x32xf32> -> vector<16x32xf32>
    %204 = tpu.concatenate %155, %171, %187, %203 in 1 : vector<16x32xf32>, vector<16x32xf32>, vector<16x32xf32>, vector<16x32xf32> -> vector<16x128xf32>
    %c0_87 = arith.constant 0 : index
    %c0_88 = arith.constant 0 : index
    %205 = vector.load %arg9[%c0_87, %c0_88] : memref<128x128xf32, #tpu.memory_space<vmem>>, vector<128x128xf32>
    %cst_89 = arith.constant dense<0.000000e+00> : vector<16x128xf32>
    %206 = tpu.matmul %204, %205, %cst_89 {dimension_numbers = #tpu.dot_dimension_numbers<[1], [0], [0], [1], [0, 0, 1, 1], [], []>} : vector<16x128xf32>, vector<128x128xf32>, vector<16x128xf32> -> vector<16x128xf32>
    %c0_90 = arith.constant 0 : index
    %c0_91 = arith.constant 0 : index
    %207 = vector.load %arg10[%c0_90, %c0_91] : memref<1x128xf32, #tpu.memory_space<vmem>>, vector<1x128xf32>
    %208 = vector.broadcast %207 : vector<1x128xf32> to vector<16x128xf32>
    %209 = arith.addf %206, %208 : vector<16x128xf32>
    %210 = tpu.concatenate %13, %209 in 1 : vector<16x128xf32>, vector<16x128xf32> -> vector<16x256xf32>
    %c0_92 = arith.constant 0 : index
    %c0_93 = arith.constant 0 : index
    %211 = vector.load %arg11[%c0_92, %c0_93] : memref<256x256xf32, #tpu.memory_space<vmem>>, vector<256x256xf32>
    %cst_94 = arith.constant dense<0.000000e+00> : vector<16x256xf32>
    %212 = tpu.matmul %210, %211, %cst_94 {dimension_numbers = #tpu.dot_dimension_numbers<[1], [0], [0], [1], [0, 0, 1, 1], [], []>} : vector<16x256xf32>, vector<256x256xf32>, vector<16x256xf32> -> vector<16x256xf32>
    %c0_95 = arith.constant 0 : index
    %c0_96 = arith.constant 0 : index
    %213 = vector.load %arg12[%c0_95, %c0_96] : memref<1x256xf32, #tpu.memory_space<vmem>>, vector<1x256xf32>
    %214 = vector.broadcast %213 : vector<1x256xf32> to vector<16x256xf32>
    %215 = arith.addf %212, %214 : vector<16x256xf32>
    %cst_97 = arith.constant dense<0.000000e+00> : vector<256xf32>
    %216 = vector.multi_reduction <add>, %215, %cst_97 [0] : vector<16x256xf32> to vector<256xf32>
    %217 = vector.shape_cast %216 : vector<256xf32> to vector<1x256xf32>
    %cst_98 = arith.constant 1.600000e+01 : f32
    %218 = vector.broadcast %cst_98 : f32 to vector<1x256xf32>
    %219 = arith.divf %217, %218 : vector<1x256xf32>
    %220 = vector.broadcast %219 : vector<1x256xf32> to vector<16x256xf32>
    %221 = arith.subf %215, %220 : vector<16x256xf32>
    %222 = arith.mulf %221, %221 : vector<16x256xf32>
    %cst_99 = arith.constant dense<0.000000e+00> : vector<256xf32>
    %223 = vector.multi_reduction <add>, %222, %cst_99 [0] : vector<16x256xf32> to vector<256xf32>
    %224 = vector.shape_cast %223 : vector<256xf32> to vector<1x256xf32>
    %cst_100 = arith.constant 1.600000e+01 : f32
    %225 = vector.broadcast %cst_100 : f32 to vector<1x256xf32>
    %226 = arith.divf %224, %225 : vector<1x256xf32>
    %227 = vector.broadcast %219 : vector<1x256xf32> to vector<16x256xf32>
    %228 = arith.subf %215, %227 : vector<16x256xf32>
    %cst_101 = arith.constant 9.99999974E-6 : f32
    %229 = vector.broadcast %cst_101 : f32 to vector<1x256xf32>
    %230 = arith.addf %226, %229 : vector<1x256xf32>
    %231 = math.rsqrt %230 : vector<1x256xf32>
    %232 = vector.broadcast %231 : vector<1x256xf32> to vector<16x256xf32>
    %233 = arith.mulf %228, %232 : vector<16x256xf32>
    %cst_102 = arith.constant 0.000000e+00 : f32
    %234 = vector.broadcast %cst_102 : f32 to vector<16x256xf32>
    %235 = arith.maximumf %233, %234 : vector<16x256xf32>
    %c0_103 = arith.constant 0 : index
    %c0_104 = arith.constant 0 : index
    %236 = vector.load %arg13[%c0_103, %c0_104] : memref<256x128xf32, #tpu.memory_space<vmem>>, vector<256x128xf32>
    %cst_105 = arith.constant dense<0.000000e+00> : vector<16x128xf32>
    %237 = tpu.matmul %235, %236, %cst_105 {dimension_numbers = #tpu.dot_dimension_numbers<[1], [0], [0], [1], [0, 0, 1, 1], [], []>} : vector<16x256xf32>, vector<256x128xf32>, vector<16x128xf32> -> vector<16x128xf32>
    %c0_106 = arith.constant 0 : index
    %c0_107 = arith.constant 0 : index
    %238 = vector.load %arg14[%c0_106, %c0_107] : memref<1x128xf32, #tpu.memory_space<vmem>>, vector<1x128xf32>
    %239 = vector.broadcast %238 : vector<1x128xf32> to vector<16x128xf32>
    %240 = arith.addf %237, %239 : vector<16x128xf32>
    %241 = arith.addf %13, %240 : vector<16x128xf32>
    %c0_108 = arith.constant 0 : index
    %c0_109 = arith.constant 0 : index
    %242 = vector.load %arg15[%c0_108, %c0_109] : memref<128x128xf32, #tpu.memory_space<vmem>>, vector<128x128xf32>
    %cst_110 = arith.constant dense<0.000000e+00> : vector<16x128xf32>
    %243 = tpu.matmul %127, %242, %cst_110 {dimension_numbers = #tpu.dot_dimension_numbers<[1], [0], [0], [1], [0, 0, 1, 1], [], []>} : vector<16x128xf32>, vector<128x128xf32>, vector<16x128xf32> -> vector<16x128xf32>
    %c0_111 = arith.constant 0 : index
    %c0_112 = arith.constant 0 : index
    %244 = vector.load %arg16[%c0_111, %c0_112] : memref<1x128xf32, #tpu.memory_space<vmem>>, vector<1x128xf32>
    %245 = vector.broadcast %244 : vector<1x128xf32> to vector<16x128xf32>
    %246 = arith.addf %243, %245 : vector<16x128xf32>
    %c0_113 = arith.constant 0 : index
    %c0_114 = arith.constant 0 : index
    %c0_115 = arith.constant 0 : index
    %247 = vector.load %arg17[%c0_113, %c0_114, %c0_115] : memref<1x16x128xf32, #tpu.memory_space<vmem>>, vector<1x16x128xf32>
    %248 = vector.shape_cast %247 : vector<1x16x128xf32> to vector<16x128xf32>
    %249 = vector.shape_cast %246 : vector<16x128xf32> to vector<1x16x128xf32>
    tpu.vector_store %arg17[%c0_113, %c0_114, %c0_115], %249 {strides = array<i32>} : memref<1x16x128xf32, #tpu.memory_space<vmem>>, vector<1x16x128xf32>,
    %c0_116 = arith.constant 0 : index
    %c0_117 = arith.constant 0 : index
    %250 = vector.load %arg15[%c0_116, %c0_117] : memref<128x128xf32, #tpu.memory_space<vmem>>, vector<128x128xf32>
    %cst_118 = arith.constant dense<0.000000e+00> : vector<16x128xf32>
    %251 = tpu.matmul %241, %250, %cst_118 {dimension_numbers = #tpu.dot_dimension_numbers<[1], [0], [0], [1], [0, 0, 1, 1], [], []>} : vector<16x128xf32>, vector<128x128xf32>, vector<16x128xf32> -> vector<16x128xf32>
    %c0_119 = arith.constant 0 : index
    %c0_120 = arith.constant 0 : index
    %252 = vector.load %arg16[%c0_119, %c0_120] : memref<1x128xf32, #tpu.memory_space<vmem>>, vector<1x128xf32>
    %253 = vector.broadcast %252 : vector<1x128xf32> to vector<16x128xf32>
    %254 = arith.addf %251, %253 : vector<16x128xf32>
    %c0_121 = arith.constant 0 : index
    %c0_122 = arith.constant 0 : index
    %c0_123 = arith.constant 0 : index
    %255 = vector.load %arg18[%c0_121, %c0_122, %c0_123] : memref<1x16x128xf32, #tpu.memory_space<vmem>>, vector<1x16x128xf32>
    %256 = vector.shape_cast %255 : vector<1x16x128xf32> to vector<16x128xf32>
    %257 = vector.shape_cast %254 : vector<16x128xf32> to vector<1x16x128xf32>
    tpu.vector_store %arg18[%c0_121, %c0_122, %c0_123], %257 {strides = array<i32>} : memref<1x16x128xf32, #tpu.memory_space<vmem>>, vector<1x16x128xf32>,
    return
  }
  func.func @transform_0(%arg0: i32) -> (i32, i32, i32) {
    %c0_i32 = arith.constant 0 : i32
    %c0_i32_0 = arith.constant 0 : i32
    %c0_i32_1 = arith.constant 0 : i32
    return %arg0, %c0_i32, %c0_i32_0 : i32, i32, i32
  }
  func.func @transform_1(%arg0: i32) -> (i32, i32, i32) {
    %c0_i32 = arith.constant 0 : i32
    %c0_i32_0 = arith.constant 0 : i32
    %c0_i32_1 = arith.constant 0 : i32
    return %arg0, %c0_i32, %c0_i32_0 : i32, i32, i32
  }
  func.func @transform_2(%arg0: i32) -> (i32, i32) {
    %c0_i32 = arith.constant 0 : i32
    %c0_i32_0 = arith.constant 0 : i32
    %c0_i32_1 = arith.constant 0 : i32
    return %c0_i32, %c0_i32_0 : i32, i32
  }
  func.func @transform_3(%arg0: i32) -> (i32, i32) {
    %c0_i32 = arith.constant 0 : i32
    %c0_i32_0 = arith.constant 0 : i32
    %c0_i32_1 = arith.constant 0 : i32
    return %c0_i32, %c0_i32_0 : i32, i32
  }
  func.func @transform_4(%arg0: i32) -> (i32, i32) {
    %c0_i32 = arith.constant 0 : i32
    %c0_i32_0 = arith.constant 0 : i32
    %c0_i32_1 = arith.constant 0 : i32
    return %c0_i32, %c0_i32_0 : i32, i32
  }
  func.func @transform_5(%arg0: i32) -> (i32, i32) {
    %c0_i32 = arith.constant 0 : i32
    %c0_i32_0 = arith.constant 0 : i32
    %c0_i32_1 = arith.constant 0 : i32
    return %c0_i32, %c0_i32_0 : i32, i32
  }
  func.func @transform_6(%arg0: i32) -> (i32, i32) {
    %c0_i32 = arith.constant 0 : i32
    %c0_i32_0 = arith.constant 0 : i32
    %c0_i32_1 = arith.constant 0 : i32
    return %c0_i32, %c0_i32_0 : i32, i32
  }
  func.func @transform_7(%arg0: i32) -> (i32, i32) {
    %c0_i32 = arith.constant 0 : i32
    %c0_i32_0 = arith.constant 0 : i32
    %c0_i32_1 = arith.constant 0 : i32
    return %c0_i32, %c0_i32_0 : i32, i32
  }
  func.func @transform_8(%arg0: i32) -> (i32, i32) {
    %c0_i32 = arith.constant 0 : i32
    %c0_i32_0 = arith.constant 0 : i32
    %c0_i32_1 = arith.constant 0 : i32
    return %c0_i32, %c0_i32_0 : i32, i32
  }
  func.func @transform_9(%arg0: i32) -> (i32, i32) {
    %c0_i32 = arith.constant 0 : i32
    %c0_i32_0 = arith.constant 0 : i32
    %c0_i32_1 = arith.constant 0 : i32
    return %c0_i32, %c0_i32_0 : i32, i32
  }
  func.func @transform_10(%arg0: i32) -> (i32, i32) {
    %c0_i32 = arith.constant 0 : i32
    %c0_i32_0 = arith.constant 0 : i32
    %c0_i32_1 = arith.constant 0 : i32
    return %c0_i32, %c0_i32_0 : i32, i32
  }
  func.func @transform_11(%arg0: i32) -> (i32, i32) {
    %c0_i32 = arith.constant 0 : i32
    %c0_i32_0 = arith.constant 0 : i32
    %c0_i32_1 = arith.constant 0 : i32
    return %c0_i32, %c0_i32_0 : i32, i32
  }
  func.func @transform_12(%arg0: i32) -> (i32, i32) {
    %c0_i32 = arith.constant 0 : i32
    %c0_i32_0 = arith.constant 0 : i32
    %c0_i32_1 = arith.constant 0 : i32
    return %c0_i32, %c0_i32_0 : i32, i32
  }
  func.func @transform_13(%arg0: i32) -> (i32, i32) {
    %c0_i32 = arith.constant 0 : i32
    %c0_i32_0 = arith.constant 0 : i32
    %c0_i32_1 = arith.constant 0 : i32
    return %c0_i32, %c0_i32_0 : i32, i32
  }
  func.func @transform_14(%arg0: i32) -> (i32, i32) {
    %c0_i32 = arith.constant 0 : i32
    %c0_i32_0 = arith.constant 0 : i32
    %c0_i32_1 = arith.constant 0 : i32
    return %c0_i32, %c0_i32_0 : i32, i32
  }
  func.func @transform_15(%arg0: i32) -> (i32, i32) {
    %c0_i32 = arith.constant 0 : i32
    %c0_i32_0 = arith.constant 0 : i32
    %c0_i32_1 = arith.constant 0 : i32
    return %c0_i32, %c0_i32_0 : i32, i32
  }
  func.func @transform_16(%arg0: i32) -> (i32, i32, i32) {
    %c0_i32 = arith.constant 0 : i32
    %c0_i32_0 = arith.constant 0 : i32
    %c0_i32_1 = arith.constant 0 : i32
    return %arg0, %c0_i32, %c0_i32_0 : i32, i32, i32
  }
  func.func @transform_17(%arg0: i32) -> (i32, i32, i32) {
    %c0_i32 = arith.constant 0 : i32
    %c0_i32_0 = arith.constant 0 : i32
    %c0_i32_1 = arith.constant 0 : i32
    return %arg0, %c0_i32, %c0_i32_0 : i32, i32, i32
  }
}

</mosaic_0001>

<llo_original>
// kernel: cross_attention_refinement.1
$region0: #{cross_attention_refinement.1}
  #allocation0 [shape = 'u32[]', space=smem, size = 0x4, offset = 0x4, fixed_abs, tag = 'smem constant byte address 0x4 - core index']
  #allocation1 [shape = 'u32[72,128]{1,0:T(1,128)}', space=vmem, size = 0x9000, scoped, tag = 'internal scratch']
  %s0 = inlined_call_operand.vmem [shape: f32[2,16,128], index: 0, kind: input, shape index: {}]
  %s1 = inlined_call_operand.vmem [shape: f32[2,16,128], index: 1, kind: input, shape index: {}]
  %s2 = inlined_call_operand.vmem [shape: f32[128,128], index: 2, kind: input, shape index: {}]
  %s3 = inlined_call_operand.vmem [shape: f32[1,128], index: 3, kind: input, shape index: {}]
  %s4 = inlined_call_operand.vmem [shape: f32[128,128], index: 4, kind: input, shape index: {}]
  %s5 = inlined_call_operand.vmem [shape: f32[1,128], index: 5, kind: input, shape index: {}]
  %s6 = inlined_call_operand.vmem [shape: f32[128,256], index: 6, kind: input, shape index: {}]
  %s7 = inlined_call_operand.vmem [shape: f32[1,256], index: 7, kind: input, shape index: {}]
  %s8 = inlined_call_operand.vmem [shape: f32[128,128], index: 8, kind: input, shape index: {}]
  %s9 = inlined_call_operand.vmem [shape: f32[1,128], index: 9, kind: input, shape index: {}]
  %s10 = inlined_call_operand.vmem [shape: f32[256,256], index: 10, kind: input, shape index: {}]
  %s11 = inlined_call_operand.vmem [shape: f32[1,256], index: 11, kind: input, shape index: {}]
  %s12 = inlined_call_operand.vmem [shape: f32[256,128], index: 12, kind: input, shape index: {}]
  %s13 = inlined_call_operand.vmem [shape: f32[1,128], index: 13, kind: input, shape index: {}]
  %s14 = inlined_call_operand.vmem [shape: f32[128,128], index: 14, kind: input, shape index: {}]
  %s15 = inlined_call_operand.vmem [shape: f32[1,128], index: 15, kind: input, shape index: {}]
  %s16 = inlined_call_operand.hbm [shape: f32[2,16,128], index: 16, kind: output, shape index: {0}]
  %s17 = inlined_call_operand.hbm [shape: f32[2,16,128], index: 17, kind: output, shape index: {1}]
  %18 = xla_tuple %s16, %s17
  %s19 = sld [smem:[#allocation0]]
  $region105: #{cross_attention_refinement.1} parent=0
    _
  %s21 = ssub.s32 1, %s19
  %s22 = scalar_select 0, %s21, %s19
  $region1: #{cross_attention_refinement.1} parent=0
    #allocation2 [shape = 'u8[16384]{0}', space=vmem, size = 0x4000, scoped, tag = 'output window, operand 0']
    #allocation3 [shape = 's32[2]{0}', space=sflag, size = 0x8, scoped, tag = 'scoped memory for cross_attention_refinement.1']
    #allocation4 [shape = 'u8[16384]{0}', space=vmem, size = 0x4000, scoped, tag = 'output window, operand 1']
    #allocation5 [shape = 's32[2]{0}', space=sflag, size = 0x8, scoped, tag = 'scoped memory for cross_attention_refinement.1']
    %23 = vsyncpa [#allocation3], 0
    %s24 = scalar_lea.sflag [#allocation3], 1
    %25 = vsyncpa %s24, 0
    %26 = vsyncpa [#allocation5], 0
    %s27 = scalar_lea.sflag [#allocation5], 1
    %28 = vsyncpa %s27, 0
    loop: start=0, step=1, limit=4
    $region2: #{cross_attention_refinement.1} parent=1 // loop_pre_header
      _
    $region3: #{cross_attention_refinement.1} parent=1 // loop_header
      %s30 = sphi 0, %s34
      %p31 = scmp.ge.s32.totalorder %s30, 4
      %s40 = sphi 0, %s42
      %s43 = sphi 0, %s40
      %s44 = sphi 0, %s43
      %s60 = sphi 0, %s44
      %s66 = sphi 0, %s68
      %s69 = sphi 0, %s66
      %s70 = sphi 0, %s69
      %s86 = sphi 0, %s70
      %s90 = sphi 0, %s90
      %s92 = sphi 0, %s90
      %s93 = sphi 0, %s92
      %s107 = sphi 0, %s93
      %s111 = sphi 0, %s111
      %s113 = sphi 0, %s111
      %s114 = sphi 0, %s113
      %s128 = sphi 0, %s114
      %s132 = sphi 0, %s132
      %s134 = sphi 0, %s132
      %s135 = sphi 0, %s134
      %s149 = sphi 0, %s135
      %s153 = sphi 0, %s153
      %s155 = sphi 0, %s153
      %s156 = sphi 0, %s155
      %s170 = sphi 0, %s156
      %s174 = sphi 0, %s174
      %s176 = sphi 0, %s174
      %s177 = sphi 0, %s176
      %s191 = sphi 0, %s177
      %s195 = sphi 0, %s195
      %s197 = sphi 0, %s195
      %s198 = sphi 0, %s197
      %s212 = sphi 0, %s198
      %s216 = sphi 0, %s216
      %s218 = sphi 0, %s216
      %s219 = sphi 0, %s218
      %s233 = sphi 0, %s219
      %s237 = sphi 0, %s237
      %s239 = sphi 0, %s237
      %s240 = sphi 0, %s239
      %s254 = sphi 0, %s240
      %s258 = sphi 0, %s258
      %s260 = sphi 0, %s258
      %s261 = sphi 0, %s260
      %s275 = sphi 0, %s261
      %s279 = sphi 0, %s279
      %s281 = sphi 0, %s279
      %s282 = sphi 0, %s281
      %s296 = sphi 0, %s282
      %s300 = sphi 0, %s300
      %s302 = sphi 0, %s300
      %s303 = sphi 0, %s302
      %s317 = sphi 0, %s303
      %s321 = sphi 0, %s321
      %s323 = sphi 0, %s321
      %s324 = sphi 0, %s323
      %s338 = sphi 0, %s324
      %s342 = sphi 0, %s342
      %s344 = sphi 0, %s342
      %s345 = sphi 0, %s344
      %s359 = sphi 0, %s345
      %s363 = sphi 0, %s363
      %s365 = sphi 0, %s363
      %s366 = sphi 0, %s365
      %s380 = sphi 0, %s366
      %s386 = sphi 0, %s388
      %s389 = sphi 0, %s386
      %s390 = sphi 0, %s389
      %s406 = sphi 0, %s390
      %s412 = sphi 0, %s414
      %s415 = sphi 0, %s412
      %s416 = sphi 0, %s415
      %s432 = sphi 0, %s416
    $region4: #{cross_attention_refinement.1} parent=1 // loop_header_branch
      %33 = sbr.rel (%p31) target = $region8
    $region5: #{cross_attention_refinement.1} parent=1 // loop_body
      %s35 = ssub.s32 %s30, 1
      %s36 = ssub.s32 %s30, 2
      %s37 = sadd.s32 %s30, 1
      %s38 = ssub.s32 %s30, %s37
      %p39 = scmp.eq.s32.totalorder %s38, 0
      %s41 = sadd.s32 %s40, 1
      %s42 = scalar_select %p39, %s40, %s41
      %p45 = pneg %p39
      %p46 = scmp.eq.s32.totalorder %s30, 1
      %p47 = por %p45, %p46
      %p48 = scmp.ne.s32.totalorder %s40, %s43
      %p49 = scmp.eq.s32.totalorder %s30, 0
      %p50 = por %p48, %p49
      %p51 = scmp.ne.s32.totalorder %s40, %s43
      %p52 = scmp.eq.s32.totalorder %s35, 1
      %p53 = por %p51, %p52
      %p54 = scmp.ne.s32.totalorder %s43, %s44
      %p55 = scmp.eq.s32.totalorder %s35, 0
      %p56 = por %p54, %p55
      %p57 = scmp.ne.s32.totalorder %s43, %s44
      %p58 = scmp.eq.s32.totalorder %s36, 1
      %p59 = por %p57, %p58
      %p61 = scmp.ne.s32.totalorder %s44, %s60
      %p62 = scmp.eq.s32.totalorder %s36, 0
      %p63 = por %p61, %p62
      %s64 = ssub.s32 %s30, %s37
      %p65 = scmp.eq.s32.totalorder %s64, 0
      %s67 = sadd.s32 %s66, 1
      %s68 = scalar_select %p65, %s66, %s67
      %p71 = pneg %p65
      %p72 = scmp.eq.s32.totalorder %s30, 1
      %p73 = por %p71, %p72
      %p74 = scmp.ne.s32.totalorder %s66, %s69
      %p75 = scmp.eq.s32.totalorder %s30, 0
      %p76 = por %p74, %p75
      %p77 = scmp.ne.s32.totalorder %s66, %s69
      %p78 = scmp.eq.s32.totalorder %s35, 1
      %p79 = por %p77, %p78
      %p80 = scmp.ne.s32.totalorder %s69, %s70
      %p81 = scmp.eq.s32.totalorder %s35, 0
      %p82 = por %p80, %p81
      %p83 = scmp.ne.s32.totalorder %s69, %s70
      %p84 = scmp.eq.s32.totalorder %s36, 1
      %p85 = por %p83, %p84
      %p87 = scmp.ne.s32.totalorder %s70, %s86
      %p88 = scmp.eq.s32.totalorder %s36, 0
      %p89 = por %p87, %p88
      %s91 = sadd.s32 %s90, 1
      %p94 = scmp.eq.s32.totalorder %s30, 1
      %p95 = scmp.ne.s32.totalorder %s90, %s92
      %p96 = scmp.eq.s32.totalorder %s30, 0
      %p97 = por %p95, %p96
      %p98 = scmp.ne.s32.totalorder %s90, %s92
      %p99 = scmp.eq.s32.totalorder %s35, 1
      %p100 = por %p98, %p99
      %p101 = scmp.ne.s32.totalorder %s92, %s93
      %p102 = scmp.eq.s32.totalorder %s35, 0
      %p103 = por %p101, %p102
      %p104 = scmp.ne.s32.totalorder %s92, %s93
      %p105 = scmp.eq.s32.totalorder %s36, 1
      %p106 = por %p104, %p105
      %p108 = scmp.ne.s32.totalorder %s93, %s107
      %p109 = scmp.eq.s32.totalorder %s36, 0
      %p110 = por %p108, %p109
      %s112 = sadd.s32 %s111, 1
      %p115 = scmp.eq.s32.totalorder %s30, 1
      %p116 = scmp.ne.s32.totalorder %s111, %s113
      %p117 = scmp.eq.s32.totalorder %s30, 0
      %p118 = por %p116, %p117
      %p119 = scmp.ne.s32.totalorder %s111, %s113
      %p120 = scmp.eq.s32.totalorder %s35, 1
      %p121 = por %p119, %p120
      %p122 = scmp.ne.s32.totalorder %s113, %s114
      %p123 = scmp.eq.s32.totalorder %s35, 0
      %p124 = por %p122, %p123
      %p125 = scmp.ne.s32.totalorder %s113, %s114
      %p126 = scmp.eq.s32.totalorder %s36, 1
      %p127 = por %p125, %p126
      %p129 = scmp.ne.s32.totalorder %s114, %s128
      %p130 = scmp.eq.s32.totalorder %s36, 0
      %p131 = por %p129, %p130
      %s133 = sadd.s32 %s132, 1
      %p136 = scmp.eq.s32.totalorder %s30, 1
      %p137 = scmp.ne.s32.totalorder %s132, %s134
      %p138 = scmp.eq.s32.totalorder %s30, 0
      %p139 = por %p137, %p138
      %p140 = scmp.ne.s32.totalorder %s132, %s134
      %p141 = scmp.eq.s32.totalorder %s35, 1
      %p142 = por %p140, %p141
      %p143 = scmp.ne.s32.totalorder %s134, %s135
      %p144 = scmp.eq.s32.totalorder %s35, 0
      %p145 = por %p143, %p144
      %p146 = scmp.ne.s32.totalorder %s134, %s135
      %p147 = scmp.eq.s32.totalorder %s36, 1
      %p148 = por %p146, %p147
      %p150 = scmp.ne.s32.totalorder %s135, %s149
      %p151 = scmp.eq.s32.totalorder %s36, 0
      %p152 = por %p150, %p151
      %s154 = sadd.s32 %s153, 1
      %p157 = scmp.eq.s32.totalorder %s30, 1
      %p158 = scmp.ne.s32.totalorder %s153, %s155
      %p159 = scmp.eq.s32.totalorder %s30, 0
      %p160 = por %p158, %p159
      %p161 = scmp.ne.s32.totalorder %s153, %s155
      %p162 = scmp.eq.s32.totalorder %s35, 1
      %p163 = por %p161, %p162
      %p164 = scmp.ne.s32.totalorder %s155, %s156
      %p165 = scmp.eq.s32.totalorder %s35, 0
      %p166 = por %p164, %p165
      %p167 = scmp.ne.s32.totalorder %s155, %s156
      %p168 = scmp.eq.s32.totalorder %s36, 1
      %p169 = por %p167, %p168
      %p171 = scmp.ne.s32.totalorder %s156, %s170
      %p172 = scmp.eq.s32.totalorder %s36, 0
      %p173 = por %p171, %p172
      %s175 = sadd.s32 %s174, 1
      %p178 = scmp.eq.s32.totalorder %s30, 1
      %p179 = scmp.ne.s32.totalorder %s174, %s176
      %p180 = scmp.eq.s32.totalorder %s30, 0
      %p181 = por %p179, %p180
      %p182 = scmp.ne.s32.totalorder %s174, %s176
      %p183 = scmp.eq.s32.totalorder %s35, 1
      %p184 = por %p182, %p183
      %p185 = scmp.ne.s32.totalorder %s176, %s177
      %p186 = scmp.eq.s32.totalorder %s35, 0
      %p187 = por %p185, %p186
      %p188 = scmp.ne.s32.totalorder %s176, %s177
      %p189 = scmp.eq.s32.totalorder %s36, 1
      %p190 = por %p188, %p189
      %p192 = scmp.ne.s32.totalorder %s177, %s191
      %p193 = scmp.eq.s32.totalorder %s36, 0
      %p194 = por %p192, %p193
      %s196 = sadd.s32 %s195, 1
      %p199 = scmp.eq.s32.totalorder %s30, 1
      %p200 = scmp.ne.s32.totalorder %s195, %s197
      %p201 = scmp.eq.s32.totalorder %s30, 0
      %p202 = por %p200, %p201
      %p203 = scmp.ne.s32.totalorder %s195, %s197
      %p204 = scmp.eq.s32.totalorder %s35, 1
      %p205 = por %p203, %p204
      %p206 = scmp.ne.s32.totalorder %s197, %s198
      %p207 = scmp.eq.s32.totalorder %s35, 0
      %p208 = por %p206, %p207
      %p209 = scmp.ne.s32.totalorder %s197, %s198
      %p210 = scmp.eq.s32.totalorder %s36, 1
      %p211 = por %p209, %p210
      %p213 = scmp.ne.s32.totalorder %s198, %s212
      %p214 = scmp.eq.s32.totalorder %s36, 0
      %p215 = por %p213, %p214
      %s217 = sadd.s32 %s216, 1
      %p220 = scmp.eq.s32.totalorder %s30, 1
      %p221 = scmp.ne.s32.totalorder %s216, %s218
      %p222 = scmp.eq.s32.totalorder %s30, 0
      %p223 = por %p221, %p222
      %p224 = scmp.ne.s32.totalorder %s216, %s218
      %p225 = scmp.eq.s32.totalorder %s35, 1
      %p226 = por %p224, %p225
      %p227 = scmp.ne.s32.totalorder %s218, %s219
      %p228 = scmp.eq.s32.totalorder %s35, 0
      %p229 = por %p227, %p228
      %p230 = scmp.ne.s32.totalorder %s218, %s219
      %p231 = scmp.eq.s32.totalorder %s36, 1
      %p232 = por %p230, %p231
      %p234 = scmp.ne.s32.totalorder %s219, %s233
      %p235 = scmp.eq.s32.totalorder %s36, 0
      %p236 = por %p234, %p235
      %s238 = sadd.s32 %s237, 1
      %p241 = scmp.eq.s32.totalorder %s30, 1
      %p242 = scmp.ne.s32.totalorder %s237, %s239
      %p243 = scmp.eq.s32.totalorder %s30, 0
      %p244 = por %p242, %p243
      %p245 = scmp.ne.s32.totalorder %s237, %s239
      %p246 = scmp.eq.s32.totalorder %s35, 1
      %p247 = por %p245, %p246
      %p248 = scmp.ne.s32.totalorder %s239, %s240
      %p249 = scmp.eq.s32.totalorder %s35, 0
      %p250 = por %p248, %p249
      %p251 = scmp.ne.s32.totalorder %s239, %s240
      %p252 = scmp.eq.s32.totalorder %s36, 1
      %p253 = por %p251, %p252
      %p255 = scmp.ne.s32.totalorder %s240, %s254
      %p256 = scmp.eq.s32.totalorder %s36, 0
      %p257 = por %p255, %p256
      %s259 = sadd.s32 %s258, 1
      %p262 = scmp.eq.s32.totalorder %s30, 1
      %p263 = scmp.ne.s32.totalorder %s258, %s260
      %p264 = scmp.eq.s32.totalorder %s30, 0
      %p265 = por %p263, %p264
      %p266 = scmp.ne.s32.totalorder %s258, %s260
      %p267 = scmp.eq.s32.totalorder %s35, 1
      %p268 = por %p266, %p267
      %p269 = scmp.ne.s32.totalorder %s260, %s261
      %p270 = scmp.eq.s32.totalorder %s35, 0
      %p271 = por %p269, %p270
      %p272 = scmp.ne.s32.totalorder %s260, %s261
      %p273 = scmp.eq.s32.totalorder %s36, 1
      %p274 = por %p272, %p273
      %p276 = scmp.ne.s32.totalorder %s261, %s275
      %p277 = scmp.eq.s32.totalorder %s36, 0
      %p278 = por %p276, %p277
      %s280 = sadd.s32 %s279, 1
      %p283 = scmp.eq.s32.totalorder %s30, 1
      %p284 = scmp.ne.s32.totalorder %s279, %s281
      %p285 = scmp.eq.s32.totalorder %s30, 0
      %p286 = por %p284, %p285
      %p287 = scmp.ne.s32.totalorder %s279, %s281
      %p288 = scmp.eq.s32.totalorder %s35, 1
      %p289 = por %p287, %p288
      %p290 = scmp.ne.s32.totalorder %s281, %s282
      %p291 = scmp.eq.s32.totalorder %s35, 0
      %p292 = por %p290, %p291
      %p293 = scmp.ne.s32.totalorder %s281, %s282
      %p294 = scmp.eq.s32.totalorder %s36, 1
      %p295 = por %p293, %p294
      %p297 = scmp.ne.s32.totalorder %s282, %s296
      %p298 = scmp.eq.s32.totalorder %s36, 0
      %p299 = por %p297, %p298
      %s301 = sadd.s32 %s300, 1
      %p304 = scmp.eq.s32.totalorder %s30, 1
      %p305 = scmp.ne.s32.totalorder %s300, %s302
      %p306 = scmp.eq.s32.totalorder %s30, 0
      %p307 = por %p305, %p306
      %p308 = scmp.ne.s32.totalorder %s300, %s302
      %p309 = scmp.eq.s32.totalorder %s35, 1
      %p310 = por %p308, %p309
      %p311 = scmp.ne.s32.totalorder %s302, %s303
      %p312 = scmp.eq.s32.totalorder %s35, 0
      %p313 = por %p311, %p312
      %p314 = scmp.ne.s32.totalorder %s302, %s303
      %p315 = scmp.eq.s32.totalorder %s36, 1
      %p316 = por %p314, %p315
      %p318 = scmp.ne.s32.totalorder %s303, %s317
      %p319 = scmp.eq.s32.totalorder %s36, 0
      %p320 = por %p318, %p319
      %s322 = sadd.s32 %s321, 1
      %p325 = scmp.eq.s32.totalorder %s30, 1
      %p326 = scmp.ne.s32.totalorder %s321, %s323
      %p327 = scmp.eq.s32.totalorder %s30, 0
      %p328 = por %p326, %p327
      %p329 = scmp.ne.s32.totalorder %s321, %s323
      %p330 = scmp.eq.s32.totalorder %s35, 1
      %p331 = por %p329, %p330
      %p332 = scmp.ne.s32.totalorder %s323, %s324
      %p333 = scmp.eq.s32.totalorder %s35, 0
      %p334 = por %p332, %p333
      %p335 = scmp.ne.s32.totalorder %s323, %s324
      %p336 = scmp.eq.s32.totalorder %s36, 1
      %p337 = por %p335, %p336
      %p339 = scmp.ne.s32.totalorder %s324, %s338
      %p340 = scmp.eq.s32.totalorder %s36, 0
      %p341 = por %p339, %p340
      %s343 = sadd.s32 %s342, 1
      %p346 = scmp.eq.s32.totalorder %s30, 1
      %p347 = scmp.ne.s32.totalorder %s342, %s344
      %p348 = scmp.eq.s32.totalorder %s30, 0
      %p349 = por %p347, %p348
      %p350 = scmp.ne.s32.totalorder %s342, %s344
      %p351 = scmp.eq.s32.totalorder %s35, 1
      %p352 = por %p350, %p351
      %p353 = scmp.ne.s32.totalorder %s344, %s345
      %p354 = scmp.eq.s32.totalorder %s35, 0
      %p355 = por %p353, %p354
      %p356 = scmp.ne.s32.totalorder %s344, %s345
      %p357 = scmp.eq.s32.totalorder %s36, 1
      %p358 = por %p356, %p357
      %p360 = scmp.ne.s32.totalorder %s345, %s359
      %p361 = scmp.eq.s32.totalorder %s36, 0
      %p362 = por %p360, %p361
      %s364 = sadd.s32 %s363, 1
      %p367 = scmp.eq.s32.totalorder %s30, 1
      %p368 = scmp.ne.s32.totalorder %s363, %s365
      %p369 = scmp.eq.s32.totalorder %s30, 0
      %p370 = por %p368, %p369
      %p371 = scmp.ne.s32.totalorder %s363, %s365
      %p372 = scmp.eq.s32.totalorder %s35, 1
      %p373 = por %p371, %p372
      %p374 = scmp.ne.s32.totalorder %s365, %s366
      %p375 = scmp.eq.s32.totalorder %s35, 0
      %p376 = por %p374, %p375
      %p377 = scmp.ne.s32.totalorder %s365, %s366
      %p378 = scmp.eq.s32.totalorder %s36, 1
      %p379 = por %p377, %p378
      %p381 = scmp.ne.s32.totalorder %s366, %s380
      %p382 = scmp.eq.s32.totalorder %s36, 0
      %p383 = por %p381, %p382
      %s384 = ssub.s32 %s30, %s37
      %p385 = scmp.eq.s32.totalorder %s384, 0
      %s387 = sadd.s32 %s386, 1
      %s388 = scalar_select %p385, %s386, %s387
      %p391 = pneg %p385
      %p392 = scmp.eq.s32.totalorder %s30, 1
      %p393 = por %p391, %p392
      %p394 = scmp.ne.s32.totalorder %s386, %s389
      %p395 = scmp.eq.s32.totalorder %s30, 0
      %p396 = por %p394, %p395
      %p397 = scmp.ne.s32.totalorder %s386, %s389
      %p398 = scmp.eq.s32.totalorder %s35, 1
      %p399 = por %p397, %p398
      %p400 = scmp.ne.s32.totalorder %s389, %s390
      %p401 = scmp.eq.s32.totalorder %s35, 0
      %p402 = por %p400, %p401
      %p403 = scmp.ne.s32.totalorder %s389, %s390
      %p404 = scmp.eq.s32.totalorder %s36, 1
      %p405 = por %p403, %p404
      %p407 = scmp.ne.s32.totalorder %s390, %s406
      %p408 = scmp.eq.s32.totalorder %s36, 0
      %p409 = por %p407, %p408
      %s410 = ssub.s32 %s30, %s37
      %p411 = scmp.eq.s32.totalorder %s410, 0
      %s413 = sadd.s32 %s412, 1
      %s414 = scalar_select %p411, %s412, %s413
      %p417 = pneg %p411
      %p418 = scmp.eq.s32.totalorder %s30, 1
      %p419 = por %p417, %p418
      %p420 = scmp.ne.s32.totalorder %s412, %s415
      %p421 = scmp.eq.s32.totalorder %s30, 0
      %p422 = por %p420, %p421
      %p423 = scmp.ne.s32.totalorder %s412, %s415
      %p424 = scmp.eq.s32.totalorder %s35, 1
      %p425 = por %p423, %p424
      %p426 = scmp.ne.s32.totalorder %s415, %s416
      %p427 = scmp.eq.s32.totalorder %s35, 0
      %p428 = por %p426, %p427
      %p429 = scmp.ne.s32.totalorder %s415, %s416
      %p430 = scmp.eq.s32.totalorder %s36, 1
      %p431 = por %p429, %p430
      %p433 = scmp.ne.s32.totalorder %s416, %s432
      %p434 = scmp.eq.s32.totalorder %s36, 0
      %p435 = por %p433, %p434
      %p436 = scmp.le.s32.totalorder 1, %s30
      %p437 = scmp.lt.s32.totalorder %s30, 3
      %p438 = pnand %p436, %p437
      %p439 = pneg %p438
      // Predicated region
      $region9: #{cross_attention_refinement.1} parent=5 // pred_check
        _
      $region10: #{cross_attention_refinement.1} parent=5 // pred_check_branch
        %441 = sbr.rel (%p438) target = $region12
      $region11: #{cross_attention_refinement.1} parent=5 // pred_region
        %s442 = ssub.s32 %s30, 1
        // Predicated region
        $region13: #{cross_attention_refinement.1} parent=11 // pred_check
          %p443 = pneg %p103
        $region14: #{cross_attention_refinement.1} parent=11 // pred_check_branch
          %445 = sbr.rel (%p443) target = $region16
        $region15: #{cross_attention_refinement.1} parent=11 // pred_region
          _
        $region16: #{cross_attention_refinement.1} parent=11 // pred_fallthru
          _
        // Predicated region
        $region17: #{cross_attention_refinement.1} parent=11 // pred_check
          %p446 = pneg %p124
        $region18: #{cross_attention_refinement.1} parent=11 // pred_check_branch
          %448 = sbr.rel (%p446) target = $region20
        $region19: #{cross_attention_refinement.1} parent=11 // pred_region
          _
        $region20: #{cross_attention_refinement.1} parent=11 // pred_fallthru
          _
        // Predicated region
        $region21: #{cross_attention_refinement.1} parent=11 // pred_check
          %p449 = pneg %p145
        $region22: #{cross_attention_refinement.1} parent=11 // pred_check_branch
          %451 = sbr.rel (%p449) target = $region24
        $region23: #{cross_attention_refinement.1} parent=11 // pred_region
          _
        $region24: #{cross_attention_refinement.1} parent=11 // pred_fallthru
          _
        // Predicated region
        $region25: #{cross_attention_refinement.1} parent=11 // pred_check
          %p452 = pneg %p166
        $region26: #{cross_attention_refinement.1} parent=11 // pred_check_branch
          %454 = sbr.rel (%p452) target = $region28
        $region27: #{cross_attention_refinement.1} parent=11 // pred_region
          _
        $region28: #{cross_attention_refinement.1} parent=11 // pred_fallthru
          _
        // Predicated region
        $region29: #{cross_attention_refinement.1} parent=11 // pred_check
          %p455 = pneg %p187
        $region30: #{cross_attention_refinement.1} parent=11 // pred_check_branch
          %457 = sbr.rel (%p455) target = $region32
        $region31: #{cross_attention_refinement.1} parent=11 // pred_region
          _
        $region32: #{cross_attention_refinement.1} parent=11 // pred_fallthru
          _
        // Predicated region
        $region33: #{cross_attention_refinement.1} parent=11 // pred_check
          %p458 = pneg %p208
        $region34: #{cross_attention_refinement.1} parent=11 // pred_check_branch
          %460 = sbr.rel (%p458) target = $region36
        $region35: #{cross_attention_refinement.1} parent=11 // pred_region
          _
        $region36: #{cross_attention_refinement.1} parent=11 // pred_fallthru
          _
        // Predicated region
        $region37: #{cross_attention_refinement.1} parent=11 // pred_check
          %p461 = pneg %p229
        $region38: #{cross_attention_refinement.1} parent=11 // pred_check_branch
          %463 = sbr.rel (%p461) target = $region40
        $region39: #{cross_attention_refinement.1} parent=11 // pred_region
          _
        $region40: #{cross_attention_refinement.1} parent=11 // pred_fallthru
          _
        // Predicated region
        $region41: #{cross_attention_refinement.1} parent=11 // pred_check
          %p464 = pneg %p250
        $region42: #{cross_attention_refinement.1} parent=11 // pred_check_branch
          %466 = sbr.rel (%p464) target = $region44
        $region43: #{cross_attention_refinement.1} parent=11 // pred_region
          _
        $region44: #{cross_attention_refinement.1} parent=11 // pred_fallthru
          _
        // Predicated region
        $region45: #{cross_attention_refinement.1} parent=11 // pred_check
          %p467 = pneg %p271
        $region46: #{cross_attention_refinement.1} parent=11 // pred_check_branch
          %469 = sbr.rel (%p467) target = $region48
        $region47: #{cross_attention_refinement.1} parent=11 // pred_region
          _
        $region48: #{cross_attention_refinement.1} parent=11 // pred_fallthru
          _
        // Predicated region
        $region49: #{cross_attention_refinement.1} parent=11 // pred_check
          %p470 = pneg %p292
        $region50: #{cross_attention_refinement.1} parent=11 // pred_check_branch
          %472 = sbr.rel (%p470) target = $region52
        $region51: #{cross_attention_refinement.1} parent=11 // pred_region
          _
        $region52: #{cross_attention_refinement.1} parent=11 // pred_fallthru
          _
        // Predicated region
        $region53: #{cross_attention_refinement.1} parent=11 // pred_check
          %p473 = pneg %p313
        $region54: #{cross_attention_refinement.1} parent=11 // pred_check_branch
          %475 = sbr.rel (%p473) target = $region56
        $region55: #{cross_attention_refinement.1} parent=11 // pred_region
          _
        $region56: #{cross_attention_refinement.1} parent=11 // pred_fallthru
          _
        // Predicated region
        $region57: #{cross_attention_refinement.1} parent=11 // pred_check
          %p476 = pneg %p334
        $region58: #{cross_attention_refinement.1} parent=11 // pred_check_branch
          %478 = sbr.rel (%p476) target = $region60
        $region59: #{cross_attention_refinement.1} parent=11 // pred_region
          _
        $region60: #{cross_attention_refinement.1} parent=11 // pred_fallthru
          _
        // Predicated region
        $region61: #{cross_attention_refinement.1} parent=11 // pred_check
          %p479 = pneg %p355
        $region62: #{cross_attention_refinement.1} parent=11 // pred_check_branch
          %481 = sbr.rel (%p479) target = $region64
        $region63: #{cross_attention_refinement.1} parent=11 // pred_region
          _
        $region64: #{cross_attention_refinement.1} parent=11 // pred_fallthru
          _
        // Predicated region
        $region65: #{cross_attention_refinement.1} parent=11 // pred_check
          %p482 = pneg %p376
        $region66: #{cross_attention_refinement.1} parent=11 // pred_check_branch
          %484 = sbr.rel (%p482) target = $region68
        $region67: #{cross_attention_refinement.1} parent=11 // pred_region
          _
        $region68: #{cross_attention_refinement.1} parent=11 // pred_fallthru
          _
      $region12: #{cross_attention_refinement.1} parent=5 // pred_fallthru
        _
      %p485 = scmp.lt.s32.totalorder %s30, 2
      // Predicated region
      $region69: #{cross_attention_refinement.1} parent=5 // pred_check
        %p486 = pneg %p485
      $region70: #{cross_attention_refinement.1} parent=5 // pred_check_branch
        %488 = sbr.rel (%p486) target = $region72
      $region71: #{cross_attention_refinement.1} parent=5 // pred_region
        // Predicated region
        $region73: #{cross_attention_refinement.1} parent=71 // pred_check
          %p489 = pneg %p50
        $region74: #{cross_attention_refinement.1} parent=71 // pred_check_branch
          %491 = sbr.rel (%p489) target = $region76
        $region75: #{cross_attention_refinement.1} parent=71 // pred_region
          %p492 = scmp.lt.s32.totalorder %s30, 1
          %s493 = scalar_select %p492, %s30, 1
          %s494 = smul.addr %s493, 2
          %s495 = smul.addr %s494, 8
          %s496 = scalar_lea.vmem %s0, %s495
        $region76: #{cross_attention_refinement.1} parent=71 // pred_fallthru
          _
        // Predicated region
        $region77: #{cross_attention_refinement.1} parent=71 // pred_check
          %p497 = pneg %p76
        $region78: #{cross_attention_refinement.1} parent=71 // pred_check_branch
          %499 = sbr.rel (%p497) target = $region80
        $region79: #{cross_attention_refinement.1} parent=71 // pred_region
          %p500 = scmp.lt.s32.totalorder %s30, 1
          %s501 = scalar_select %p500, %s30, 1
          %s502 = smul.addr %s501, 2
          %s503 = smul.addr %s502, 8
          %s504 = scalar_lea.vmem %s1, %s503
        $region80: #{cross_attention_refinement.1} parent=71 // pred_fallthru
          _
      $region72: #{cross_attention_refinement.1} parent=5 // pred_fallthru
        _
      %p505 = scmp.le.s32.totalorder 1, %s30
      %p506 = scmp.lt.s32.totalorder %s30, 3
      %p507 = pnand %p505, %p506
      %p508 = pneg %p507
      // Predicated region
      $region81: #{cross_attention_refinement.1} parent=5 // pred_check
        _
      $region82: #{cross_attention_refinement.1} parent=5 // pred_check_branch
        %510 = sbr.rel (%p507) target = $region84
      $region83: #{cross_attention_refinement.1} parent=5 // pred_region
        %s511 = ssub.s32 %s30, 1
        %p512 = scmp.lt.s32.totalorder %s35, 1
        %s513 = scalar_select %p512, %s35, 1
        %s514 = smul.addr %s513, 2
        %s515 = smul.addr %s514, 8
        %s516 = scalar_lea.vmem %s0, %s515
        %p517 = pneg %p56
        %p518 = pneg %p53
        %p519 = scmp.lt.s32.totalorder %s35, 1
        %s520 = scalar_select %p519, %s35, 1
        %s521 = smul.addr %s520, 2
        %s522 = smul.addr %s521, 8
        %s523 = scalar_lea.vmem %s1, %s522
        %p524 = pneg %p82
        %p525 = pneg %p79
        %p526 = pneg %p103
        %p527 = pneg %p100
        %p528 = pneg %p124
        %p529 = pneg %p121
        %p530 = pneg %p145
        %p531 = pneg %p142
        %p532 = pneg %p166
        %p533 = pneg %p163
        %p534 = pneg %p187
        %p535 = pneg %p184
        %p536 = pneg %p208
        %p537 = pneg %p205
        %p538 = pneg %p229
        %p539 = pneg %p226
        %p540 = pneg %p250
        %p541 = pneg %p247
        %p542 = pneg %p271
        %p543 = pneg %p268
        %p544 = pneg %p292
        %p545 = pneg %p289
        %p546 = pneg %p313
        %p547 = pneg %p310
        %p548 = pneg %p334
        %p549 = pneg %p331
        %p550 = pneg %p355
        %p551 = pneg %p352
        %p552 = pneg %p376
        %p553 = pneg %p373
        %p554 = pneg %p402
        %p555 = pneg %p399
        %s556 = sand.u32 %s389, 1
        %s557 = scalar_lea.sflag [#allocation3], %s556
        %s558 = sand.u32 %s389, 1
        %s559 = smul.addr %s558, 16
        %s560 = scalar_lea.vmem [#allocation2], %s559
        %p561 = pneg %p428
        %p562 = pneg %p425
        %s563 = sand.u32 %s415, 1
        %s564 = scalar_lea.sflag [#allocation5], %s563
        %s565 = sand.u32 %s415, 1
        %s566 = smul.addr %s565, 16
        %s567 = scalar_lea.vmem [#allocation4], %s566
        %p568 = scmp.lt.s32.totalorder %s35, 1
        %s569 = scalar_select %p568, %s35, 1
        %s570 = smul.addr %s569, 2
        %s571 = smul.addr %s570, 8
        %s572 = scalar_lea.vmem %s0, %s571
        %p573 = scmp.lt.s32.totalorder %s35, 1
        %s574 = scalar_select %p573, %s35, 1
        %s575 = smul.addr %s574, 2
        %s576 = smul.addr %s575, 8
        %s577 = scalar_lea.vmem %s1, %s576
        %v578 = vld [vmem:[%s572] sm:$0xff]
        %v579 = vld [vmem:[%s572 + $0x8] sm:$0xff]
        %v580 = vld [vmem:[%s2] sm:$0xff]
        %v581 = vld [vmem:[%s2 + $0x8] sm:$0xff]
        %v582 = vld [vmem:[%s2 + $0x10] sm:$0xff]
        %v583 = vld [vmem:[%s2 + $0x18] sm:$0xff]
        %v584 = vld [vmem:[%s2 + $0x20] sm:$0xff]
        %v585 = vld [vmem:[%s2 + $0x28] sm:$0xff]
        %v586 = vld [vmem:[%s2 + $0x30] sm:$0xff]
        %v587 = vld [vmem:[%s2 + $0x38] sm:$0xff]
        %v588 = vld [vmem:[%s2 + $0x40] sm:$0xff]
        %v589 = vld [vmem:[%s2 + $0x48] sm:$0xff]
        %v590 = vld [vmem:[%s2 + $0x50] sm:$0xff]
        %v591 = vld [vmem:[%s2 + $0x58] sm:$0xff]
        %v592 = vld [vmem:[%s2 + $0x60] sm:$0xff]
        %v593 = vld [vmem:[%s2 + $0x68] sm:$0xff]
        %v594 = vld [vmem:[%s2 + $0x70] sm:$0xff]
        %v595 = vld [vmem:[%s2 + $0x78] sm:$0xff]
        %v596 = vld [vmem:[%s3] sm:$0x1]
        %v598 = vperm.slane %v596, 0
        %600 = vmatpush.msra.mxu0 %v595
        %601 = vmatpush.msra.mxu0 %v594
        %602 = vmatpush.msra.mxu0 %v593
        %603 = vmatpush.msra.mxu0 %v592
        %604 = vmatpush.msra.mxu0 %v591
        %605 = vmatpush.msra.mxu0 %v590
        %606 = vmatpush.msra.mxu0 %v589
        %607 = vmatpush.msra.mxu0 %v588
        %608 = vmatpush.msra.mxu0 %v587
        %609 = vmatpush.msra.mxu0 %v586
        %610 = vmatpush.msra.mxu0 %v585
        %611 = vmatpush.msra.mxu0 %v584
        %612 = vmatpush.msra.mxu0 %v583
        %613 = vmatpush.msra.mxu0 %v582
        %614 = vmatpush.msra.mxu0 %v581
        %615 = vmatpush.msra.mxu0 %v580
        %616 = vmatmul.f32.gmra.mxu0 %v578
        %v617 = vpop.f32.mrf.mxu0
        %v618 = vadd.f32 %v598, %v617
        %619 = vmatmul.f32.gmra.mxu0 %v579
        %v620 = vpop.f32.mrf.mxu0
        %v621 = vadd.f32 %v598, %v620
        %622 = vdwg.mxu0
        %v623 = vld [vmem:[%s577] sm:$0xff]
        %v624 = vld [vmem:[%s577 + $0x8] sm:$0xff]
        %625 = vmatpush.msra.mxu0 %v595
        %626 = vmatpush.msra.mxu0 %v594
        %627 = vmatpush.msra.mxu0 %v593
        %628 = vmatpush.msra.mxu0 %v592
        %629 = vmatpush.msra.mxu0 %v591
        %630 = vmatpush.msra.mxu0 %v590
        %631 = vmatpush.msra.mxu0 %v589
        %632 = vmatpush.msra.mxu0 %v588
        %633 = vmatpush.msra.mxu0 %v587
        %634 = vmatpush.msra.mxu0 %v586
        %635 = vmatpush.msra.mxu0 %v585
        %636 = vmatpush.msra.mxu0 %v584
        %637 = vmatpush.msra.mxu0 %v583
        %638 = vmatpush.msra.mxu0 %v582
        %639 = vmatpush.msra.mxu0 %v581
        %640 = vmatpush.msra.mxu0 %v580
        %641 = vmatmul.f32.gmra.mxu0 %v623
        %v642 = vpop.f32.mrf.mxu0
        %v643 = vadd.f32 %v598, %v642
        %644 = vmatmul.f32.gmra.mxu0 %v624
        %v645 = vpop.f32.mrf.mxu0
        %v646 = vadd.f32 %v598, %v645
        %647 = vdwg.mxu0
        %v648 = vld [vmem:[%s4] sm:$0xff]
        %v649 = vld [vmem:[%s4 + $0x8] sm:$0xff]
        %v650 = vld [vmem:[%s4 + $0x10] sm:$0xff]
        %v651 = vld [vmem:[%s4 + $0x18] sm:$0xff]
        %v652 = vld [vmem:[%s4 + $0x20] sm:$0xff]
        %v653 = vld [vmem:[%s4 + $0x28] sm:$0xff]
        %v654 = vld [vmem:[%s4 + $0x30] sm:$0xff]
        %v655 = vld [vmem:[%s4 + $0x38] sm:$0xff]
        %v656 = vld [vmem:[%s4 + $0x40] sm:$0xff]
        %v657 = vld [vmem:[%s4 + $0x48] sm:$0xff]
        %v658 = vld [vmem:[%s4 + $0x50] sm:$0xff]
        %v659 = vld [vmem:[%s4 + $0x58] sm:$0xff]
        %v660 = vld [vmem:[%s4 + $0x60] sm:$0xff]
        %v661 = vld [vmem:[%s4 + $0x68] sm:$0xff]
        %v662 = vld [vmem:[%s4 + $0x70] sm:$0xff]
        %v663 = vld [vmem:[%s4 + $0x78] sm:$0xff]
        %v664 = vld [vmem:[%s5] sm:$0x1]
        %v666 = vperm.slane %v664, 0
        %668 = vmatpush.msra.mxu0 %v663
        %669 = vmatpush.msra.mxu0 %v662
        %670 = vmatpush.msra.mxu0 %v661
        %671 = vmatpush.msra.mxu0 %v660
        %672 = vmatpush.msra.mxu0 %v659
        %673 = vmatpush.msra.mxu0 %v658
        %674 = vmatpush.msra.mxu0 %v657
        %675 = vmatpush.msra.mxu0 %v656
        %676 = vmatpush.msra.mxu0 %v655
        %677 = vmatpush.msra.mxu0 %v654
        %678 = vmatpush.msra.mxu0 %v653
        %679 = vmatpush.msra.mxu0 %v652
        %680 = vmatpush.msra.mxu0 %v651
        %681 = vmatpush.msra.mxu0 %v650
        %682 = vmatpush.msra.mxu0 %v649
        %683 = vmatpush.msra.mxu0 %v648
        %684 = vmatmul.f32.gmra.mxu0 %v618
        %v685 = vpop.f32.mrf.mxu0
        %v686 = vadd.f32 %v666, %v685
        %687 = vmatmul.f32.gmra.mxu0 %v621
        %v688 = vpop.f32.mrf.mxu0
        %v689 = vadd.f32 %v666, %v688
        %690 = vdwg.mxu0
        %v691 = vld [vmem:[%s6] sm:$0xff]
        %v692 = vld [vmem:[%s6 + $0x8] sm:$0xff]
        %v693 = vld [vmem:[%s6 + $0x10] sm:$0xff]
        %v694 = vld [vmem:[%s6 + $0x18] sm:$0xff]
        %v695 = vld [vmem:[%s6 + $0x20] sm:$0xff]
        %v696 = vld [vmem:[%s6 + $0x28] sm:$0xff]
        %v697 = vld [vmem:[%s6 + $0x30] sm:$0xff]
        %v698 = vld [vmem:[%s6 + $0x38] sm:$0xff]
        %v699 = vld [vmem:[%s6 + $0x40] sm:$0xff]
        %v700 = vld [vmem:[%s6 + $0x48] sm:$0xff]
        %v701 = vld [vmem:[%s6 + $0x50] sm:$0xff]
        %v702 = vld [vmem:[%s6 + $0x58] sm:$0xff]
        %v703 = vld [vmem:[%s6 + $0x60] sm:$0xff]
        %v704 = vld [vmem:[%s6 + $0x68] sm:$0xff]
        %v705 = vld [vmem:[%s6 + $0x70] sm:$0xff]
        %v706 = vld [vmem:[%s6 + $0x78] sm:$0xff]
        %v707 = vld [vmem:[%s6 + $0x80] sm:$0xff]
        %v708 = vld [vmem:[%s6 + $0x88] sm:$0xff]
        %v709 = vld [vmem:[%s6 + $0x90] sm:$0xff]
        %v710 = vld [vmem:[%s6 + $0x98] sm:$0xff]
        %v711 = vld [vmem:[%s6 + $0xa0] sm:$0xff]
        %v712 = vld [vmem:[%s6 + $0xa8] sm:$0xff]
        %v713 = vld [vmem:[%s6 + $0xb0] sm:$0xff]
        %v714 = vld [vmem:[%s6 + $0xb8] sm:$0xff]
        %v715 = vld [vmem:[%s6 + $0xc0] sm:$0xff]
        %v716 = vld [vmem:[%s6 + $0xc8] sm:$0xff]
        %v717 = vld [vmem:[%s6 + $0xd0] sm:$0xff]
        %v718 = vld [vmem:[%s6 + $0xd8] sm:$0xff]
        %v719 = vld [vmem:[%s6 + $0xe0] sm:$0xff]
        %v720 = vld [vmem:[%s6 + $0xe8] sm:$0xff]
        %v721 = vld [vmem:[%s6 + $0xf0] sm:$0xff]
        %v722 = vld [vmem:[%s6 + $0xf8] sm:$0xff]
        %v723 = vld [vmem:[%s7] sm:$0x3]
        %v725 = vperm.slane %v723, 0
        %v726 = vperm.slane %v723, 1
        %729 = vmatpush.msra.mxu0 %v721
        %730 = vmatpush.msra.mxu0 %v719
        %731 = vmatpush.msra.mxu0 %v717
        %732 = vmatpush.msra.mxu0 %v715
        %733 = vmatpush.msra.mxu0 %v713
        %734 = vmatpush.msra.mxu0 %v711
        %735 = vmatpush.msra.mxu0 %v709
        %736 = vmatpush.msra.mxu0 %v707
        %737 = vmatpush.msra.mxu0 %v705
        %738 = vmatpush.msra.mxu0 %v703
        %739 = vmatpush.msra.mxu0 %v701
        %740 = vmatpush.msra.mxu0 %v699
        %741 = vmatpush.msra.mxu0 %v697
        %742 = vmatpush.msra.mxu0 %v695
        %743 = vmatpush.msra.mxu0 %v693
        %744 = vmatpush.msra.mxu0 %v691
        %745 = vmatmul.f32.gmra.mxu0 %v643
        %v746 = vpop.f32.mrf.mxu0
        %v747 = vadd.f32 %v725, %v746
        %748 = vmatmul.f32.gmra.mxu0 %v646
        %v749 = vpop.f32.mrf.mxu0
        %v750 = vadd.f32 %v725, %v749
        %751 = vdwg.mxu0
        %752 = vmatpush.msra.mxu0 %v722
        %753 = vmatpush.msra.mxu0 %v720
        %754 = vmatpush.msra.mxu0 %v718
        %755 = vmatpush.msra.mxu0 %v716
        %756 = vmatpush.msra.mxu0 %v714
        %757 = vmatpush.msra.mxu0 %v712
        %758 = vmatpush.msra.mxu0 %v710
        %759 = vmatpush.msra.mxu0 %v708
        %760 = vmatpush.msra.mxu0 %v706
        %761 = vmatpush.msra.mxu0 %v704
        %762 = vmatpush.msra.mxu0 %v702
        %763 = vmatpush.msra.mxu0 %v700
        %764 = vmatpush.msra.mxu0 %v698
        %765 = vmatpush.msra.mxu0 %v696
        %766 = vmatpush.msra.mxu0 %v694
        %767 = vmatpush.msra.mxu0 %v692
        %768 = vmatmul.f32.gmra.mxu0 %v643
        %v769 = vpop.f32.mrf.mxu0
        %v770 = vadd.f32 %v726, %v769
        %771 = vmatmul.f32.gmra.mxu0 %v646
        %v772 = vpop.f32.mrf.mxu0
        %v773 = vadd.f32 %v726, %v772
        %774 = vdwg.mxu0
        %vm775 = vcmask 261120
        %v777 = vsel %vm775, %v686, 0
        %v780 = vsel %vm775, %v689, 0
        %v783 = vsel %vm775, %v747, 0
        %v786 = vsel %vm775, %v750, 0
        %788 = vmatpush.xpose.msra.mxu0 0.0
        %789 = vmatpush.xpose.msra.mxu0 0.0
        %790 = vmatpush.xpose.msra.mxu0 0.0
        %791 = vmatpush.xpose.msra.mxu0 0.0
        %792 = vmatpush.xpose.msra.mxu0 0.0
        %793 = vmatpush.xpose.msra.mxu0 0.0
        %794 = vmatpush.xpose.msra.mxu0 0.0
        %795 = vmatpush.xpose.msra.mxu0 0.0
        %796 = vmatpush.xpose.msra.mxu0 0.0
        %797 = vmatpush.xpose.msra.mxu0 0.0
        %798 = vmatpush.xpose.msra.mxu0 0.0
        %799 = vmatpush.xpose.msra.mxu0 0.0
        %800 = vmatpush.xpose.msra.mxu0 0.0
        %801 = vmatpush.xpose.msra.mxu0 0.0
        %802 = vmatpush.xpose.msra.mxu0 %v786
        %803 = vmatpush.xpose.msra.mxu0 %v783
        %804 = vmatmul.f32.gmra.mxu0 %v777
        %v805 = vpop.f32.mrf.mxu0
        %v806 = vadd.f32 0.0, %v805
        %807 = vmatmul.f32.gmra.mxu0 %v780
        %v808 = vpop.f32.mrf.mxu0
        %v809 = vadd.f32 0.0, %v808
        %810 = vdwg.mxu0
        %vm811 = vcmask 130048
        %v812 = vsel %vm811, %v806, -inf
        %813 = vmax.xlane.f32.xlu0 %v812
        %v814 = vpop.xlane.xlu0 %813
        %v815 = vsel %vm811, %v809, -inf
        %816 = vmax.xlane.f32.xlu0 %v815
        %v817 = vpop.xlane.xlu0 %816
        %v818 = vsub.f32 %v806, %v814
        %v819 = vsub.f32 %v809, %v817
        %v820 = vmul.f32 %v818, 1.442695
        %v821 = vpow.pop %v820
        %v822 = vmul.f32 %v819, 1.442695
        %v823 = vpow.pop %v822
        %v824 = vsel %vm811, %v821, 0.0
        %825 = vadd.xlane.f32.xlu0 %v824
        %v826 = vpop.xlane.xlu0 %825
        %v827 = vsel %vm811, %v823, 0.0
        %828 = vadd.xlane.f32.xlu0 %v827
        %v829 = vpop.xlane.xlu0 %828
        %v830 = vrcp.pop %v826
        %v831 = vrcp.pop %v829
        %v832 = vmul.f32 %v821, %v830
        %v833 = vmul.f32 %v823, %v831
        %v835 = vsel %vm811, %v832, 0
        %v838 = vsel %vm811, %v833, 0
        %840 = vmatpush.msra.mxu0 0.0
        %841 = vmatpush.msra.mxu0 0.0
        %842 = vmatpush.msra.mxu0 0.0
        %843 = vmatpush.msra.mxu0 0.0
        %844 = vmatpush.msra.mxu0 0.0
        %845 = vmatpush.msra.mxu0 0.0
        %846 = vmatpush.msra.mxu0 0.0
        %847 = vmatpush.msra.mxu0 0.0
        %848 = vmatpush.msra.mxu0 0.0
        %849 = vmatpush.msra.mxu0 0.0
        %850 = vmatpush.msra.mxu0 0.0
        %851 = vmatpush.msra.mxu0 0.0
        %852 = vmatpush.msra.mxu0 0.0
        %853 = vmatpush.msra.mxu0 0.0
        %854 = vmatpush.msra.mxu0 %v773
        %855 = vmatpush.msra.mxu0 %v770
        %856 = vmatmul.f32.gmra.mxu0 %v835
        %v857 = vpop.f32.mrf.mxu0
        %v858 = vadd.f32 0.0, %v857
        %859 = vmatmul.f32.gmra.mxu0 %v838
        %v860 = vpop.f32.mrf.mxu0
        %v861 = vadd.f32 0.0, %v860
        %862 = vdwg.mxu0
        %863 = vrot.lane.b32.xlu0 %v686, 96
        %v864 = vpop.permute.xlu0 %863
        %865 = vrot.lane.b32.xlu0 %v689, 96
        %v866 = vpop.permute.xlu0 %865
        %867 = vrot.lane.b32.xlu0 %v747, 96
        %v868 = vpop.permute.xlu0 %867
        %869 = vrot.lane.b32.xlu0 %v750, 96
        %v870 = vpop.permute.xlu0 %869
        %v871 = vsel %vm775, %v864, 0
        %v873 = vsel %vm775, %v866, 0
        %v875 = vsel %vm775, %v868, 0
        %v877 = vsel %vm775, %v870, 0
        %879 = vmatpush.xpose.msra.mxu0 0.0
        %880 = vmatpush.xpose.msra.mxu0 0.0
        %881 = vmatpush.xpose.msra.mxu0 0.0
        %882 = vmatpush.xpose.msra.mxu0 0.0
        %883 = vmatpush.xpose.msra.mxu0 0.0
        %884 = vmatpush.xpose.msra.mxu0 0.0
        %885 = vmatpush.xpose.msra.mxu0 0.0
        %886 = vmatpush.xpose.msra.mxu0 0.0
        %887 = vmatpush.xpose.msra.mxu0 0.0
        %888 = vmatpush.xpose.msra.mxu0 0.0
        %889 = vmatpush.xpose.msra.mxu0 0.0
        %890 = vmatpush.xpose.msra.mxu0 0.0
        %891 = vmatpush.xpose.msra.mxu0 0.0
        %892 = vmatpush.xpose.msra.mxu0 0.0
        %893 = vmatpush.xpose.msra.mxu0 %v877
        %894 = vmatpush.xpose.msra.mxu0 %v875
        %895 = vmatmul.f32.gmra.mxu0 %v871
        %v896 = vpop.f32.mrf.mxu0
        %v897 = vadd.f32 0.0, %v896
        %898 = vmatmul.f32.gmra.mxu0 %v873
        %v899 = vpop.f32.mrf.mxu0
        %v900 = vadd.f32 0.0, %v899
        %901 = vdwg.mxu0
        %v902 = vsel %vm811, %v897, -inf
        %903 = vmax.xlane.f32.xlu0 %v902
        %v904 = vpop.xlane.xlu0 %903
        %v905 = vsel %vm811, %v900, -inf
        %906 = vmax.xlane.f32.xlu0 %v905
        %v907 = vpop.xlane.xlu0 %906
        %v908 = vsub.f32 %v897, %v904
        %v909 = vsub.f32 %v900, %v907
        %v910 = vmul.f32 %v908, 1.442695
        %v911 = vpow.pop %v910
        %v912 = vmul.f32 %v909, 1.442695
        %v913 = vpow.pop %v912
        %v914 = vsel %vm811, %v911, 0.0
        %915 = vadd.xlane.f32.xlu0 %v914
        %v916 = vpop.xlane.xlu0 %915
        %v917 = vsel %vm811, %v913, 0.0
        %918 = vadd.xlane.f32.xlu0 %v917
        %v919 = vpop.xlane.xlu0 %918
        %v920 = vrcp.pop %v916
        %v921 = vrcp.pop %v919
        %v922 = vmul.f32 %v911, %v920
        %v923 = vmul.f32 %v913, %v921
        %926 = vrot.lane.b32.xlu0 %v770, 96
        %v927 = vpop.permute.xlu0 %926
        %928 = vrot.lane.b32.xlu0 %v773, 96
        %v929 = vpop.permute.xlu0 %928
        %v933 = vsel %vm811, %v922, 0
        %v936 = vsel %vm811, %v923, 0
        %938 = vmatpush.msra.mxu0 0.0
        %939 = vmatpush.msra.mxu0 0.0
        %940 = vmatpush.msra.mxu0 0.0
        %941 = vmatpush.msra.mxu0 0.0
        %942 = vmatpush.msra.mxu0 0.0
        %943 = vmatpush.msra.mxu0 0.0
        %944 = vmatpush.msra.mxu0 0.0
        %945 = vmatpush.msra.mxu0 0.0
        %946 = vmatpush.msra.mxu0 0.0
        %947 = vmatpush.msra.mxu0 0.0
        %948 = vmatpush.msra.mxu0 0.0
        %949 = vmatpush.msra.mxu0 0.0
        %950 = vmatpush.msra.mxu0 0.0
        %951 = vmatpush.msra.mxu0 0.0
        %952 = vmatpush.msra.mxu0 %v929
        %953 = vmatpush.msra.mxu0 %v927
        %954 = vmatmul.f32.gmra.mxu0 %v933
        %v955 = vpop.f32.mrf.mxu0
        %v956 = vadd.f32 0.0, %v955
        %957 = vmatmul.f32.gmra.mxu0 %v936
        %v958 = vpop.f32.mrf.mxu0
        %v959 = vadd.f32 0.0, %v958
        %960 = vdwg.mxu0
        %961 = vrot.lane.b32.xlu0 %v686, 64
        %v962 = vpop.permute.xlu0 %961
        %963 = vrot.lane.b32.xlu0 %v689, 64
        %v964 = vpop.permute.xlu0 %963
        %965 = vrot.lane.b32.xlu0 %v747, 64
        %v966 = vpop.permute.xlu0 %965
        %967 = vrot.lane.b32.xlu0 %v750, 64
        %v968 = vpop.permute.xlu0 %967
        %v969 = vsel %vm775, %v962, 0
        %v971 = vsel %vm775, %v964, 0
        %v973 = vsel %vm775, %v966, 0
        %v975 = vsel %vm775, %v968, 0
        %977 = vmatpush.xpose.msra.mxu0 0.0
        %978 = vmatpush.xpose.msra.mxu0 0.0
        %979 = vmatpush.xpose.msra.mxu0 0.0
        %980 = vmatpush.xpose.msra.mxu0 0.0
        %981 = vmatpush.xpose.msra.mxu0 0.0
        %982 = vmatpush.xpose.msra.mxu0 0.0
        %983 = vmatpush.xpose.msra.mxu0 0.0
        %984 = vmatpush.xpose.msra.mxu0 0.0
        %985 = vmatpush.xpose.msra.mxu0 0.0
        %986 = vmatpush.xpose.msra.mxu0 0.0
        %987 = vmatpush.xpose.msra.mxu0 0.0
        %988 = vmatpush.xpose.msra.mxu0 0.0
        %989 = vmatpush.xpose.msra.mxu0 0.0
        %990 = vmatpush.xpose.msra.mxu0 0.0
        %991 = vmatpush.xpose.msra.mxu0 %v975
        %992 = vmatpush.xpose.msra.mxu0 %v973
        %993 = vmatmul.f32.gmra.mxu0 %v969
        %v994 = vpop.f32.mrf.mxu0
        %v995 = vadd.f32 0.0, %v994
        %996 = vmatmul.f32.gmra.mxu0 %v971
        %v997 = vpop.f32.mrf.mxu0
        %v998 = vadd.f32 0.0, %v997
        %999 = vdwg.mxu0
        %v1000 = vsel %vm811, %v995, -inf
        %1001 = vmax.xlane.f32.xlu0 %v1000
        %v1002 = vpop.xlane.xlu0 %1001
        %v1003 = vsel %vm811, %v998, -inf
        %1004 = vmax.xlane.f32.xlu0 %v1003
        %v1005 = vpop.xlane.xlu0 %1004
        %v1006 = vsub.f32 %v995, %v1002
        %v1007 = vsub.f32 %v998, %v1005
        %v1008 = vmul.f32 %v1006, 1.442695
        %v1009 = vpow.pop %v1008
        %v1010 = vmul.f32 %v1007, 1.442695
        %v1011 = vpow.pop %v1010
        %v1012 = vsel %vm811, %v1009, 0.0
        %1013 = vadd.xlane.f32.xlu0 %v1012
        %v1014 = vpop.xlane.xlu0 %1013
        %v1015 = vsel %vm811, %v1011, 0.0
        %1016 = vadd.xlane.f32.xlu0 %v1015
        %v1017 = vpop.xlane.xlu0 %1016
        %v1018 = vrcp.pop %v1014
        %v1019 = vrcp.pop %v1017
        %v1020 = vmul.f32 %v1009, %v1018
        %v1021 = vmul.f32 %v1011, %v1019
        %1022 = vrot.lane.b32.xlu0 %v770, 64
        %v1023 = vpop.permute.xlu0 %1022
        %1024 = vrot.lane.b32.xlu0 %v773, 64
        %v1025 = vpop.permute.xlu0 %1024
        %v1029 = vsel %vm811, %v1020, 0
        %v1032 = vsel %vm811, %v1021, 0
        %1034 = vmatpush.msra.mxu0 0.0
        %1035 = vmatpush.msra.mxu0 0.0
        %1036 = vmatpush.msra.mxu0 0.0
        %1037 = vmatpush.msra.mxu0 0.0
        %1038 = vmatpush.msra.mxu0 0.0
        %1039 = vmatpush.msra.mxu0 0.0
        %1040 = vmatpush.msra.mxu0 0.0
        %1041 = vmatpush.msra.mxu0 0.0
        %1042 = vmatpush.msra.mxu0 0.0
        %1043 = vmatpush.msra.mxu0 0.0
        %1044 = vmatpush.msra.mxu0 0.0
        %1045 = vmatpush.msra.mxu0 0.0
        %1046 = vmatpush.msra.mxu0 0.0
        %1047 = vmatpush.msra.mxu0 0.0
        %1048 = vmatpush.msra.mxu0 %v1025
        %1049 = vmatpush.msra.mxu0 %v1023
        %1050 = vmatmul.f32.gmra.mxu0 %v1029
        %v1051 = vpop.f32.mrf.mxu0
        %v1052 = vadd.f32 0.0, %v1051
        %1053 = vmatmul.f32.gmra.mxu0 %v1032
        %v1054 = vpop.f32.mrf.mxu0
        %v1055 = vadd.f32 0.0, %v1054
        %1056 = vdwg.mxu0
        %1057 = vrot.lane.b32.xlu0 %v686, 32
        %v1058 = vpop.permute.xlu0 %1057
        %1059 = vrot.lane.b32.xlu0 %v689, 32
        %v1060 = vpop.permute.xlu0 %1059
        %1061 = vrot.lane.b32.xlu0 %v747, 32
        %v1062 = vpop.permute.xlu0 %1061
        %1063 = vrot.lane.b32.xlu0 %v750, 32
        %v1064 = vpop.permute.xlu0 %1063
        %v1065 = vsel %vm775, %v1058, 0
        %v1067 = vsel %vm775, %v1060, 0
        %v1069 = vsel %vm775, %v1062, 0
        %v1071 = vsel %vm775, %v1064, 0
        %1073 = vmatpush.xpose.msra.mxu0 0.0
        %1074 = vmatpush.xpose.msra.mxu0 0.0
        %1075 = vmatpush.xpose.msra.mxu0 0.0
        %1076 = vmatpush.xpose.msra.mxu0 0.0
        %1077 = vmatpush.xpose.msra.mxu0 0.0
        %1078 = vmatpush.xpose.msra.mxu0 0.0
        %1079 = vmatpush.xpose.msra.mxu0 0.0
        %1080 = vmatpush.xpose.msra.mxu0 0.0
        %1081 = vmatpush.xpose.msra.mxu0 0.0
        %1082 = vmatpush.xpose.msra.mxu0 0.0
        %1083 = vmatpush.xpose.msra.mxu0 0.0
        %1084 = vmatpush.xpose.msra.mxu0 0.0
        %1085 = vmatpush.xpose.msra.mxu0 0.0
        %1086 = vmatpush.xpose.msra.mxu0 0.0
        %1087 = vmatpush.xpose.msra.mxu0 %v1071
        %1088 = vmatpush.xpose.msra.mxu0 %v1069
        %1089 = vmatmul.f32.gmra.mxu0 %v1065
        %v1090 = vpop.f32.mrf.mxu0
        %v1091 = vadd.f32 0.0, %v1090
        %1092 = vmatmul.f32.gmra.mxu0 %v1067
        %v1093 = vpop.f32.mrf.mxu0
        %v1094 = vadd.f32 0.0, %v1093
        %1095 = vdwg.mxu0
        %v1096 = vsel %vm811, %v1091, -inf
        %1097 = vmax.xlane.f32.xlu0 %v1096
        %v1098 = vpop.xlane.xlu0 %1097
        %v1099 = vsel %vm811, %v1094, -inf
        %1100 = vmax.xlane.f32.xlu0 %v1099
        %v1101 = vpop.xlane.xlu0 %1100
        %v1102 = vsub.f32 %v1091, %v1098
        %v1103 = vsub.f32 %v1094, %v1101
        %v1104 = vmul.f32 %v1102, 1.442695
        %v1105 = vpow.pop %v1104
        %v1106 = vmul.f32 %v1103, 1.442695
        %v1107 = vpow.pop %v1106
        %v1108 = vsel %vm811, %v1105, 0.0
        %1109 = vadd.xlane.f32.xlu0 %v1108
        %v1110 = vpop.xlane.xlu0 %1109
        %v1111 = vsel %vm811, %v1107, 0.0
        %1112 = vadd.xlane.f32.xlu0 %v1111
        %v1113 = vpop.xlane.xlu0 %1112
        %v1114 = vrcp.pop %v1110
        %v1115 = vrcp.pop %v1113
        %v1116 = vmul.f32 %v1105, %v1114
        %v1117 = vmul.f32 %v1107, %v1115
        %1118 = vrot.lane.b32.xlu0 %v770, 32
        %v1119 = vpop.permute.xlu0 %1118
        %1120 = vrot.lane.b32.xlu0 %v773, 32
        %v1121 = vpop.permute.xlu0 %1120
        %v1125 = vsel %vm811, %v1116, 0
        %v1128 = vsel %vm811, %v1117, 0
        %1130 = vmatpush.msra.mxu0 0.0
        %1131 = vmatpush.msra.mxu0 0.0
        %1132 = vmatpush.msra.mxu0 0.0
        %1133 = vmatpush.msra.mxu0 0.0
        %1134 = vmatpush.msra.mxu0 0.0
        %1135 = vmatpush.msra.mxu0 0.0
        %1136 = vmatpush.msra.mxu0 0.0
        %1137 = vmatpush.msra.mxu0 0.0
        %1138 = vmatpush.msra.mxu0 0.0
        %1139 = vmatpush.msra.mxu0 0.0
        %1140 = vmatpush.msra.mxu0 0.0
        %1141 = vmatpush.msra.mxu0 0.0
        %1142 = vmatpush.msra.mxu0 0.0
        %1143 = vmatpush.msra.mxu0 0.0
        %1144 = vmatpush.msra.mxu0 %v1121
        %1145 = vmatpush.msra.mxu0 %v1119
        %1146 = vmatmul.f32.gmra.mxu0 %v1125
        %v1147 = vpop.f32.mrf.mxu0
        %v1148 = vadd.f32 0.0, %v1147
        %1149 = vmatmul.f32.gmra.mxu0 %v1128
        %v1150 = vpop.f32.mrf.mxu0
        %v1151 = vadd.f32 0.0, %v1150
        %1152 = vdwg.mxu0
        %1155 = vrot.lane.b32.xlu0 %v956, 32
        %v1156 = vpop.permute.xlu0 %1155
        %1157 = vrot.lane.b32.xlu0 %v959, 32
        %v1158 = vpop.permute.xlu0 %1157
        %1163 = vrot.lane.b32.xlu0 %v1052, 64
        %v1164 = vpop.permute.xlu0 %1163
        %1165 = vrot.lane.b32.xlu0 %v1055, 64
        %v1166 = vpop.permute.xlu0 %1165
        %1171 = vrot.lane.b32.xlu0 %v1148, 96
        %v1172 = vpop.permute.xlu0 %1171
        %1173 = vrot.lane.b32.xlu0 %v1151, 96
        %v1174 = vpop.permute.xlu0 %1173
        %v1177 = vsel %vm775, %v858, %v1156
        %v1178 = vsel %vm775, %v861, %v1158
        %vm1179 = vcmask 523264
        %v1180 = vsel %vm1179, %v1177, %v1164
        %v1181 = vsel %vm1179, %v1178, %v1166
        %vm1182 = vcmask 785408
        %v1183 = vsel %vm1182, %v1180, %v1172
        %v1184 = vsel %vm1182, %v1181, %v1174
        %v1185 = vld [vmem:[%s8] sm:$0xff]
        %v1186 = vld [vmem:[%s8 + $0x8] sm:$0xff]
        %v1187 = vld [vmem:[%s8 + $0x10] sm:$0xff]
        %v1188 = vld [vmem:[%s8 + $0x18] sm:$0xff]
        %v1189 = vld [vmem:[%s8 + $0x20] sm:$0xff]
        %v1190 = vld [vmem:[%s8 + $0x28] sm:$0xff]
        %v1191 = vld [vmem:[%s8 + $0x30] sm:$0xff]
        %v1192 = vld [vmem:[%s8 + $0x38] sm:$0xff]
        %v1193 = vld [vmem:[%s8 + $0x40] sm:$0xff]
        %v1194 = vld [vmem:[%s8 + $0x48] sm:$0xff]
        %v1195 = vld [vmem:[%s8 + $0x50] sm:$0xff]
        %v1196 = vld [vmem:[%s8 + $0x58] sm:$0xff]
        %v1197 = vld [vmem:[%s8 + $0x60] sm:$0xff]
        %v1198 = vld [vmem:[%s8 + $0x68] sm:$0xff]
        %v1199 = vld [vmem:[%s8 + $0x70] sm:$0xff]
        %v1200 = vld [vmem:[%s8 + $0x78] sm:$0xff]
        %v1201 = vld [vmem:[%s9] sm:$0x1]
        %v1203 = vperm.slane %v1201, 0
        %1205 = vmatpush.msra.mxu0 %v1200
        %1206 = vmatpush.msra.mxu0 %v1199
        %1207 = vmatpush.msra.mxu0 %v1198
        %1208 = vmatpush.msra.mxu0 %v1197
        %1209 = vmatpush.msra.mxu0 %v1196
        %1210 = vmatpush.msra.mxu0 %v1195
        %1211 = vmatpush.msra.mxu0 %v1194
        %1212 = vmatpush.msra.mxu0 %v1193
        %1213 = vmatpush.msra.mxu0 %v1192
        %1214 = vmatpush.msra.mxu0 %v1191
        %1215 = vmatpush.msra.mxu0 %v1190
        %1216 = vmatpush.msra.mxu0 %v1189
        %1217 = vmatpush.msra.mxu0 %v1188
        %1218 = vmatpush.msra.mxu0 %v1187
        %1219 = vmatpush.msra.mxu0 %v1186
        %1220 = vmatpush.msra.mxu0 %v1185
        %1221 = vmatmul.f32.gmra.mxu0 %v1183
        %v1222 = vpop.f32.mrf.mxu0
        %v1223 = vadd.f32 %v1203, %v1222
        %1224 = vmatmul.f32.gmra.mxu0 %v1184
        %v1225 = vpop.f32.mrf.mxu0
        %v1226 = vadd.f32 %v1203, %v1225
        %1227 = vdwg.mxu0
        %v1228 = vld [vmem:[%s10] sm:$0xff]
        %v1229 = vld [vmem:[%s10 + $0x8] sm:$0xff]
        %v1230 = vld [vmem:[%s10 + $0x10] sm:$0xff]
        %v1231 = vld [vmem:[%s10 + $0x18] sm:$0xff]
        %v1232 = vld [vmem:[%s10 + $0x20] sm:$0xff]
        %v1233 = vld [vmem:[%s10 + $0x28] sm:$0xff]
        %v1234 = vld [vmem:[%s10 + $0x30] sm:$0xff]
        %v1235 = vld [vmem:[%s10 + $0x38] sm:$0xff]
        %v1236 = vld [vmem:[%s10 + $0x40] sm:$0xff]
        %v1237 = vld [vmem:[%s10 + $0x48] sm:$0xff]
        %v1238 = vld [vmem:[%s10 + $0x50] sm:$0xff]
        %v1239 = vld [vmem:[%s10 + $0x58] sm:$0xff]
        %v1240 = vld [vmem:[%s10 + $0x60] sm:$0xff]
        %v1241 = vld [vmem:[%s10 + $0x68] sm:$0xff]
        %v1242 = vld [vmem:[%s10 + $0x70] sm:$0xff]
        %v1243 = vld [vmem:[%s10 + $0x78] sm:$0xff]
        %v1244 = vld [vmem:[%s10 + $0x80] sm:$0xff]
        %v1245 = vld [vmem:[%s10 + $0x88] sm:$0xff]
        %v1246 = vld [vmem:[%s10 + $0x90] sm:$0xff]
        %v1247 = vld [vmem:[%s10 + $0x98] sm:$0xff]
        %v1248 = vld [vmem:[%s10 + $0xa0] sm:$0xff]
        %v1249 = vld [vmem:[%s10 + $0xa8] sm:$0xff]
        %v1250 = vld [vmem:[%s10 + $0xb0] sm:$0xff]
        %v1251 = vld [vmem:[%s10 + $0xb8] sm:$0xff]
        %v1252 = vld [vmem:[%s10 + $0xc0] sm:$0xff]
        %v1253 = vld [vmem:[%s10 + $0xc8] sm:$0xff]
        %v1254 = vld [vmem:[%s10 + $0xd0] sm:$0xff]
        %v1255 = vld [vmem:[%s10 + $0xd8] sm:$0xff]
        %v1256 = vld [vmem:[%s10 + $0xe0] sm:$0xff]
        %v1257 = vld [vmem:[%s10 + $0xe8] sm:$0xff]
        %v1258 = vld [vmem:[%s10 + $0xf0] sm:$0xff]
        %v1259 = vld [vmem:[%s10 + $0xf8] sm:$0xff]
        %v1260 = vld [vmem:[%s10 + $0x100] sm:$0xff]
        %v1261 = vld [vmem:[%s10 + $0x108] sm:$0xff]
        %v1262 = vld [vmem:[%s10 + $0x110] sm:$0xff]
        %v1263 = vld [vmem:[%s10 + $0x118] sm:$0xff]
        %v1264 = vld [vmem:[%s10 + $0x120] sm:$0xff]
        %v1265 = vld [vmem:[%s10 + $0x128] sm:$0xff]
        %v1266 = vld [vmem:[%s10 + $0x130] sm:$0xff]
        %v1267 = vld [vmem:[%s10 + $0x138] sm:$0xff]
        %v1268 = vld [vmem:[%s10 + $0x140] sm:$0xff]
        %v1269 = vld [vmem:[%s10 + $0x148] sm:$0xff]
        %v1270 = vld [vmem:[%s10 + $0x150] sm:$0xff]
        %v1271 = vld [vmem:[%s10 + $0x158] sm:$0xff]
        %v1272 = vld [vmem:[%s10 + $0x160] sm:$0xff]
        %v1273 = vld [vmem:[%s10 + $0x168] sm:$0xff]
        %v1274 = vld [vmem:[%s10 + $0x170] sm:$0xff]
        %v1275 = vld [vmem:[%s10 + $0x178] sm:$0xff]
        %v1276 = vld [vmem:[%s10 + $0x180] sm:$0xff]
        %v1277 = vld [vmem:[%s10 + $0x188] sm:$0xff]
        %v1278 = vld [vmem:[%s10 + $0x190] sm:$0xff]
        %v1279 = vld [vmem:[%s10 + $0x198] sm:$0xff]
        %v1280 = vld [vmem:[%s10 + $0x1a0] sm:$0xff]
        %v1281 = vld [vmem:[%s10 + $0x1a8] sm:$0xff]
        %v1282 = vld [vmem:[%s10 + $0x1b0] sm:$0xff]
        %v1283 = vld [vmem:[%s10 + $0x1b8] sm:$0xff]
        %v1284 = vld [vmem:[%s10 + $0x1c0] sm:$0xff]
        %v1285 = vld [vmem:[%s10 + $0x1c8] sm:$0xff]
        %v1286 = vld [vmem:[%s10 + $0x1d0] sm:$0xff]
        %v1287 = vld [vmem:[%s10 + $0x1d8] sm:$0xff]
        %v1288 = vld [vmem:[%s10 + $0x1e0] sm:$0xff]
        %v1289 = vld [vmem:[%s10 + $0x1e8] sm:$0xff]
        %v1290 = vld [vmem:[%s10 + $0x1f0] sm:$0xff]
        %v1291 = vld [vmem:[%s10 + $0x1f8] sm:$0xff]
        %v1292 = vld [vmem:[%s11] sm:$0x3]
        %v1294 = vperm.slane %v1292, 0
        %v1295 = vperm.slane %v1292, 1
        %1298 = vmatpush.msra.mxu0 %v1258
        %1299 = vmatpush.msra.mxu0 %v1256
        %1300 = vmatpush.msra.mxu0 %v1254
        %1301 = vmatpush.msra.mxu0 %v1252
        %1302 = vmatpush.msra.mxu0 %v1250
        %1303 = vmatpush.msra.mxu0 %v1248
        %1304 = vmatpush.msra.mxu0 %v1246
        %1305 = vmatpush.msra.mxu0 %v1244
        %1306 = vmatpush.msra.mxu0 %v1242
        %1307 = vmatpush.msra.mxu0 %v1240
        %1308 = vmatpush.msra.mxu0 %v1238
        %1309 = vmatpush.msra.mxu0 %v1236
        %1310 = vmatpush.msra.mxu0 %v1234
        %1311 = vmatpush.msra.mxu0 %v1232
        %1312 = vmatpush.msra.mxu0 %v1230
        %1313 = vmatpush.msra.mxu0 %v1228
        %1314 = vmatmul.f32.gmra.mxu0 %v618
        %v1315 = vpop.f32.mrf.mxu0
        %v1316 = vadd.f32 %v1294, %v1315
        %1317 = vmatmul.f32.gmra.mxu0 %v621
        %v1318 = vpop.f32.mrf.mxu0
        %v1319 = vadd.f32 %v1294, %v1318
        %1320 = vdwg.mxu0
        %1321 = vmatpush.msra.mxu0 %v1290
        %1322 = vmatpush.msra.mxu0 %v1288
        %1323 = vmatpush.msra.mxu0 %v1286
        %1324 = vmatpush.msra.mxu0 %v1284
        %1325 = vmatpush.msra.mxu0 %v1282
        %1326 = vmatpush.msra.mxu0 %v1280
        %1327 = vmatpush.msra.mxu0 %v1278
        %1328 = vmatpush.msra.mxu0 %v1276
        %1329 = vmatpush.msra.mxu0 %v1274
        %1330 = vmatpush.msra.mxu0 %v1272
        %1331 = vmatpush.msra.mxu0 %v1270
        %1332 = vmatpush.msra.mxu0 %v1268
        %1333 = vmatpush.msra.mxu0 %v1266
        %1334 = vmatpush.msra.mxu0 %v1264
        %1335 = vmatpush.msra.mxu0 %v1262
        %1336 = vmatpush.msra.mxu0 %v1260
        %1337 = vmatmul.f32.gmra.mxu0 %v1223
        %v1338 = vpop.f32.mrf.mxu0
        %v1339 = vadd.f32 %v1316, %v1338
        %1340 = vmatmul.f32.gmra.mxu0 %v1226
        %v1341 = vpop.f32.mrf.mxu0
        %v1342 = vadd.f32 %v1319, %v1341
        %1343 = vdwg.mxu0
        %1344 = vmatpush.msra.mxu0 %v1259
        %1345 = vmatpush.msra.mxu0 %v1257
        %1346 = vmatpush.msra.mxu0 %v1255
        %1347 = vmatpush.msra.mxu0 %v1253
        %1348 = vmatpush.msra.mxu0 %v1251
        %1349 = vmatpush.msra.mxu0 %v1249
        %1350 = vmatpush.msra.mxu0 %v1247
        %1351 = vmatpush.msra.mxu0 %v1245
        %1352 = vmatpush.msra.mxu0 %v1243
        %1353 = vmatpush.msra.mxu0 %v1241
        %1354 = vmatpush.msra.mxu0 %v1239
        %1355 = vmatpush.msra.mxu0 %v1237
        %1356 = vmatpush.msra.mxu0 %v1235
        %1357 = vmatpush.msra.mxu0 %v1233
        %1358 = vmatpush.msra.mxu0 %v1231
        %1359 = vmatpush.msra.mxu0 %v1229
        %1360 = vmatmul.f32.gmra.mxu0 %v618
        %v1361 = vpop.f32.mrf.mxu0
        %v1362 = vadd.f32 %v1295, %v1361
        %1363 = vmatmul.f32.gmra.mxu0 %v621
        %v1364 = vpop.f32.mrf.mxu0
        %v1365 = vadd.f32 %v1295, %v1364
        %1366 = vdwg.mxu0
        %1367 = vmatpush.msra.mxu0 %v1291
        %1368 = vmatpush.msra.mxu0 %v1289
        %1369 = vmatpush.msra.mxu0 %v1287
        %1370 = vmatpush.msra.mxu0 %v1285
        %1371 = vmatpush.msra.mxu0 %v1283
        %1372 = vmatpush.msra.mxu0 %v1281
        %1373 = vmatpush.msra.mxu0 %v1279
        %1374 = vmatpush.msra.mxu0 %v1277
        %1375 = vmatpush.msra.mxu0 %v1275
        %1376 = vmatpush.msra.mxu0 %v1273
        %1377 = vmatpush.msra.mxu0 %v1271
        %1378 = vmatpush.msra.mxu0 %v1269
        %1379 = vmatpush.msra.mxu0 %v1267
        %1380 = vmatpush.msra.mxu0 %v1265
        %1381 = vmatpush.msra.mxu0 %v1263
        %1382 = vmatpush.msra.mxu0 %v1261
        %1383 = vmatmul.f32.gmra.mxu0 %v1223
        %v1384 = vpop.f32.mrf.mxu0
        %v1385 = vadd.f32 %v1362, %v1384
        %1386 = vmatmul.f32.gmra.mxu0 %v1226
        %v1387 = vpop.f32.mrf.mxu0
        %v1388 = vadd.f32 %v1365, %v1387
        %1389 = vdwg.mxu0
        %v1390 = vadd.f32 %v1339, %v1342
        %v1391 = vrot.slane %v1390, 4
        %v1392 = vadd.f32 %v1390, %v1391
        %v1393 = vrot.slane %v1392, 2
        %v1394 = vadd.f32 %v1392, %v1393
        %v1395 = vrot.slane %v1394, 1
        %v1396 = vadd.f32 %v1394, %v1395
        %v1397 = vadd.f32 %v1385, %v1388
        %v1398 = vrot.slane %v1397, 4
        %v1399 = vadd.f32 %v1397, %v1398
        %v1400 = vrot.slane %v1399, 2
        %v1401 = vadd.f32 %v1399, %v1400
        %v1402 = vrot.slane %v1401, 1
        %v1403 = vadd.f32 %v1401, %v1402
        %v1404 = vrcp.pop 16.0
        %v1405 = vmul.f32 16.0, %v1404
        %v1406 = vsub.f32 1.0, %v1405
        %v1407 = vmul.f32 %v1404, %v1406
        %v1408 = vadd.f32 %v1404, %v1407
        %vm1409 = vweird.f32 %v1404
        %v1410 = vsel %vm1409, %v1404, %v1408
        %v1411 = vmul.f32 %v1396, %v1410
        %v1412 = vmul.f32 %v1403, %v1410
        %v1413 = vsub.f32 %v1339, %v1411
        %v1414 = vsub.f32 %v1385, %v1412
        %v1415 = vsub.f32 %v1342, %v1411
        %v1416 = vsub.f32 %v1388, %v1412
        %v1417 = vmul.f32 %v1413, %v1413
        %v1418 = vmul.f32 %v1414, %v1414
        %v1419 = vmul.f32 %v1415, %v1415
        %v1420 = vmul.f32 %v1416, %v1416
        %v1421 = vadd.f32 %v1417, %v1419
        %v1422 = vrot.slane %v1421, 4
        %v1423 = vadd.f32 %v1421, %v1422
        %v1424 = vrot.slane %v1423, 2
        %v1425 = vadd.f32 %v1423, %v1424
        %v1426 = vrot.slane %v1425, 1
        %v1427 = vadd.f32 %v1425, %v1426
        %v1428 = vadd.f32 %v1418, %v1420
        %v1429 = vrot.slane %v1428, 4
        %v1430 = vadd.f32 %v1428, %v1429
        %v1431 = vrot.slane %v1430, 2
        %v1432 = vadd.f32 %v1430, %v1431
        %v1433 = vrot.slane %v1432, 1
        %v1434 = vadd.f32 %v1432, %v1433
        %v1435 = vmul.f32 %v1427, %v1410
        %v1436 = vmul.f32 %v1434, %v1410
        %v1437 = vadd.f32 %v1435, 1e-05
        %v1438 = vadd.f32 %v1436, 1e-05
        %v1439 = vrsqrt.pop %v1437
        %v1440 = vmul.f32 %v1439, %v1437
        %v1441 = vmul.f32 %v1440, %v1439
        %v1442 = vmul.f32 0.5, %v1441
        %v1443 = vsub.f32 1.5, %v1442
        %v1444 = vmul.f32 %v1439, %v1443
        %vm1445 = vweird.f32 %v1437
        %vm1446 = vweird.f32 %v1439
        %vm1447 = vmor %vm1445, %vm1446
        %v1448 = vsel %vm1447, %v1439, %v1444
        %v1449 = vrsqrt.pop %v1438
        %v1450 = vmul.f32 %v1449, %v1438
        %v1451 = vmul.f32 %v1450, %v1449
        %v1452 = vmul.f32 0.5, %v1451
        %v1453 = vsub.f32 1.5, %v1452
        %v1454 = vmul.f32 %v1449, %v1453
        %vm1455 = vweird.f32 %v1438
        %vm1456 = vweird.f32 %v1449
        %vm1457 = vmor %vm1455, %vm1456
        %v1458 = vsel %vm1457, %v1449, %v1454
        %v1459 = vmul.f32 %v1413, %v1448
        %v1460 = vmul.f32 %v1414, %v1458
        %v1461 = vmul.f32 %v1415, %v1448
        %v1462 = vmul.f32 %v1416, %v1458
        %v1463 = vmax.f32 %v1459, 0.0
        %v1464 = vmax.f32 %v1460, 0.0
        %v1465 = vmax.f32 %v1461, 0.0
        %v1466 = vmax.f32 %v1462, 0.0
        %v1467 = vld [vmem:[%s12] sm:$0xff]
        %v1468 = vld [vmem:[%s12 + $0x8] sm:$0xff]
        %v1469 = vld [vmem:[%s12 + $0x10] sm:$0xff]
        %v1470 = vld [vmem:[%s12 + $0x18] sm:$0xff]
        %v1471 = vld [vmem:[%s12 + $0x20] sm:$0xff]
        %v1472 = vld [vmem:[%s12 + $0x28] sm:$0xff]
        %v1473 = vld [vmem:[%s12 + $0x30] sm:$0xff]
        %v1474 = vld [vmem:[%s12 + $0x38] sm:$0xff]
        %v1475 = vld [vmem:[%s12 + $0x40] sm:$0xff]
        %v1476 = vld [vmem:[%s12 + $0x48] sm:$0xff]
        %v1477 = vld [vmem:[%s12 + $0x50] sm:$0xff]
        %v1478 = vld [vmem:[%s12 + $0x58] sm:$0xff]
        %v1479 = vld [vmem:[%s12 + $0x60] sm:$0xff]
        %v1480 = vld [vmem:[%s12 + $0x68] sm:$0xff]
        %v1481 = vld [vmem:[%s12 + $0x70] sm:$0xff]
        %v1482 = vld [vmem:[%s12 + $0x78] sm:$0xff]
        %v1483 = vld [vmem:[%s12 + $0x80] sm:$0xff]
        %v1484 = vld [vmem:[%s12 + $0x88] sm:$0xff]
        %v1485 = vld [vmem:[%s12 + $0x90] sm:$0xff]
        %v1486 = vld [vmem:[%s12 + $0x98] sm:$0xff]
        %v1487 = vld [vmem:[%s12 + $0xa0] sm:$0xff]
        %v1488 = vld [vmem:[%s12 + $0xa8] sm:$0xff]
        %v1489 = vld [vmem:[%s12 + $0xb0] sm:$0xff]
        %v1490 = vld [vmem:[%s12 + $0xb8] sm:$0xff]
        %v1491 = vld [vmem:[%s12 + $0xc0] sm:$0xff]
        %v1492 = vld [vmem:[%s12 + $0xc8] sm:$0xff]
        %v1493 = vld [vmem:[%s12 + $0xd0] sm:$0xff]
        %v1494 = vld [vmem:[%s12 + $0xd8] sm:$0xff]
        %v1495 = vld [vmem:[%s12 + $0xe0] sm:$0xff]
        %v1496 = vld [vmem:[%s12 + $0xe8] sm:$0xff]
        %v1497 = vld [vmem:[%s12 + $0xf0] sm:$0xff]
        %v1498 = vld [vmem:[%s12 + $0xf8] sm:$0xff]
        %v1499 = vld [vmem:[%s13] sm:$0x1]
        %v1501 = vperm.slane %v1499, 0
        %1503 = vmatpush.msra.mxu0 %v1482
        %1504 = vmatpush.msra.mxu0 %v1481
        %1505 = vmatpush.msra.mxu0 %v1480
        %1506 = vmatpush.msra.mxu0 %v1479
        %1507 = vmatpush.msra.mxu0 %v1478
        %1508 = vmatpush.msra.mxu0 %v1477
        %1509 = vmatpush.msra.mxu0 %v1476
        %1510 = vmatpush.msra.mxu0 %v1475
        %1511 = vmatpush.msra.mxu0 %v1474
        %1512 = vmatpush.msra.mxu0 %v1473
        %1513 = vmatpush.msra.mxu0 %v1472
        %1514 = vmatpush.msra.mxu0 %v1471
        %1515 = vmatpush.msra.mxu0 %v1470
        %1516 = vmatpush.msra.mxu0 %v1469
        %1517 = vmatpush.msra.mxu0 %v1468
        %1518 = vmatpush.msra.mxu0 %v1467
        %1519 = vmatmul.f32.gmra.mxu0 %v1463
        %v1520 = vpop.f32.mrf.mxu0
        %v1521 = vadd.f32 %v1501, %v1520
        %1522 = vmatmul.f32.gmra.mxu0 %v1465
        %v1523 = vpop.f32.mrf.mxu0
        %v1524 = vadd.f32 %v1501, %v1523
        %1525 = vdwg.mxu0
        %1526 = vmatpush.msra.mxu0 %v1498
        %1527 = vmatpush.msra.mxu0 %v1497
        %1528 = vmatpush.msra.mxu0 %v1496
        %1529 = vmatpush.msra.mxu0 %v1495
        %1530 = vmatpush.msra.mxu0 %v1494
        %1531 = vmatpush.msra.mxu0 %v1493
        %1532 = vmatpush.msra.mxu0 %v1492
        %1533 = vmatpush.msra.mxu0 %v1491
        %1534 = vmatpush.msra.mxu0 %v1490
        %1535 = vmatpush.msra.mxu0 %v1489
        %1536 = vmatpush.msra.mxu0 %v1488
        %1537 = vmatpush.msra.mxu0 %v1487
        %1538 = vmatpush.msra.mxu0 %v1486
        %1539 = vmatpush.msra.mxu0 %v1485
        %1540 = vmatpush.msra.mxu0 %v1484
        %1541 = vmatpush.msra.mxu0 %v1483
        %1542 = vmatmul.f32.gmra.mxu0 %v1464
        %v1543 = vpop.f32.mrf.mxu0
        %v1544 = vadd.f32 %v1521, %v1543
        %1545 = vmatmul.f32.gmra.mxu0 %v1466
        %v1546 = vpop.f32.mrf.mxu0
        %v1547 = vadd.f32 %v1524, %v1546
        %1548 = vdwg.mxu0
        %v1549 = vadd.f32 %v618, %v1544
        %v1550 = vadd.f32 %v621, %v1547
        %1551 = vmatpush.msra.mxu0 %v663
        %1552 = vmatpush.msra.mxu0 %v662
        %1553 = vmatpush.msra.mxu0 %v661
        %1554 = vmatpush.msra.mxu0 %v660
        %1555 = vmatpush.msra.mxu0 %v659
        %1556 = vmatpush.msra.mxu0 %v658
        %1557 = vmatpush.msra.mxu0 %v657
        %1558 = vmatpush.msra.mxu0 %v656
        %1559 = vmatpush.msra.mxu0 %v655
        %1560 = vmatpush.msra.mxu0 %v654
        %1561 = vmatpush.msra.mxu0 %v653
        %1562 = vmatpush.msra.mxu0 %v652
        %1563 = vmatpush.msra.mxu0 %v651
        %1564 = vmatpush.msra.mxu0 %v650
        %1565 = vmatpush.msra.mxu0 %v649
        %1566 = vmatpush.msra.mxu0 %v648
        %1567 = vmatmul.f32.gmra.mxu0 %v643
        %v1568 = vpop.f32.mrf.mxu0
        %v1569 = vadd.f32 %v666, %v1568
        %1570 = vmatmul.f32.gmra.mxu0 %v646
        %v1571 = vpop.f32.mrf.mxu0
        %v1572 = vadd.f32 %v666, %v1571
        %1573 = vdwg.mxu0
        %1574 = vmatpush.msra.mxu0 %v721
        %1575 = vmatpush.msra.mxu0 %v719
        %1576 = vmatpush.msra.mxu0 %v717
        %1577 = vmatpush.msra.mxu0 %v715
        %1578 = vmatpush.msra.mxu0 %v713
        %1579 = vmatpush.msra.mxu0 %v711
        %1580 = vmatpush.msra.mxu0 %v709
        %1581 = vmatpush.msra.mxu0 %v707
        %1582 = vmatpush.msra.mxu0 %v705
        %1583 = vmatpush.msra.mxu0 %v703
        %1584 = vmatpush.msra.mxu0 %v701
        %1585 = vmatpush.msra.mxu0 %v699
        %1586 = vmatpush.msra.mxu0 %v697
        %1587 = vmatpush.msra.mxu0 %v695
        %1588 = vmatpush.msra.mxu0 %v693
        %1589 = vmatpush.msra.mxu0 %v691
        %1590 = vmatmul.f32.gmra.mxu0 %v1549
        %v1591 = vpop.f32.mrf.mxu0
        %v1592 = vadd.f32 %v725, %v1591
        %1593 = vmatmul.f32.gmra.mxu0 %v1550
        %v1594 = vpop.f32.mrf.mxu0
        %v1595 = vadd.f32 %v725, %v1594
        %1596 = vdwg.mxu0
        %1597 = vmatpush.msra.mxu0 %v722
        %1598 = vmatpush.msra.mxu0 %v720
        %1599 = vmatpush.msra.mxu0 %v718
        %1600 = vmatpush.msra.mxu0 %v716
        %1601 = vmatpush.msra.mxu0 %v714
        %1602 = vmatpush.msra.mxu0 %v712
        %1603 = vmatpush.msra.mxu0 %v710
        %1604 = vmatpush.msra.mxu0 %v708
        %1605 = vmatpush.msra.mxu0 %v706
        %1606 = vmatpush.msra.mxu0 %v704
        %1607 = vmatpush.msra.mxu0 %v702
        %1608 = vmatpush.msra.mxu0 %v700
        %1609 = vmatpush.msra.mxu0 %v698
        %1610 = vmatpush.msra.mxu0 %v696
        %1611 = vmatpush.msra.mxu0 %v694
        %1612 = vmatpush.msra.mxu0 %v692
        %1613 = vmatmul.f32.gmra.mxu0 %v1549
        %v1614 = vpop.f32.mrf.mxu0
        %v1615 = vadd.f32 %v726, %v1614
        %1616 = vmatmul.f32.gmra.mxu0 %v1550
        %v1617 = vpop.f32.mrf.mxu0
        %v1618 = vadd.f32 %v726, %v1617
        %1619 = vdwg.mxu0
        %v1621 = vsel %vm775, %v1569, 0
        %v1624 = vsel %vm775, %v1572, 0
        %v1627 = vsel %vm775, %v1592, 0
        %v1630 = vsel %vm775, %v1595, 0
        %1632 = vmatpush.xpose.msra.mxu0 0.0
        %1633 = vmatpush.xpose.msra.mxu0 0.0
        %1634 = vmatpush.xpose.msra.mxu0 0.0
        %1635 = vmatpush.xpose.msra.mxu0 0.0
        %1636 = vmatpush.xpose.msra.mxu0 0.0
        %1637 = vmatpush.xpose.msra.mxu0 0.0
        %1638 = vmatpush.xpose.msra.mxu0 0.0
        %1639 = vmatpush.xpose.msra.mxu0 0.0
        %1640 = vmatpush.xpose.msra.mxu0 0.0
        %1641 = vmatpush.xpose.msra.mxu0 0.0
        %1642 = vmatpush.xpose.msra.mxu0 0.0
        %1643 = vmatpush.xpose.msra.mxu0 0.0
        %1644 = vmatpush.xpose.msra.mxu0 0.0
        %1645 = vmatpush.xpose.msra.mxu0 0.0
        %1646 = vmatpush.xpose.msra.mxu0 %v1630
        %1647 = vmatpush.xpose.msra.mxu0 %v1627
        %1648 = vmatmul.f32.gmra.mxu0 %v1621
        %v1649 = vpop.f32.mrf.mxu0
        %v1650 = vadd.f32 0.0, %v1649
        %1651 = vmatmul.f32.gmra.mxu0 %v1624
        %v1652 = vpop.f32.mrf.mxu0
        %v1653 = vadd.f32 0.0, %v1652
        %1654 = vdwg.mxu0
        %v1655 = vsel %vm811, %v1650, -inf
        %1656 = vmax.xlane.f32.xlu0 %v1655
        %v1657 = vpop.xlane.xlu0 %1656
        %v1658 = vsel %vm811, %v1653, -inf
        %1659 = vmax.xlane.f32.xlu0 %v1658
        %v1660 = vpop.xlane.xlu0 %1659
        %v1661 = vsub.f32 %v1650, %v1657
        %v1662 = vsub.f32 %v1653, %v1660
        %v1663 = vmul.f32 %v1661, 1.442695
        %v1664 = vpow.pop %v1663
        %v1665 = vmul.f32 %v1662, 1.442695
        %v1666 = vpow.pop %v1665
        %v1667 = vsel %vm811, %v1664, 0.0
        %1668 = vadd.xlane.f32.xlu0 %v1667
        %v1669 = vpop.xlane.xlu0 %1668
        %v1670 = vsel %vm811, %v1666, 0.0
        %1671 = vadd.xlane.f32.xlu0 %v1670
        %v1672 = vpop.xlane.xlu0 %1671
        %v1673 = vrcp.pop %v1669
        %v1674 = vrcp.pop %v1672
        %v1675 = vmul.f32 %v1664, %v1673
        %v1676 = vmul.f32 %v1666, %v1674
        %v1678 = vsel %vm811, %v1675, 0
        %v1681 = vsel %vm811, %v1676, 0
        %1683 = vmatpush.msra.mxu0 0.0
        %1684 = vmatpush.msra.mxu0 0.0
        %1685 = vmatpush.msra.mxu0 0.0
        %1686 = vmatpush.msra.mxu0 0.0
        %1687 = vmatpush.msra.mxu0 0.0
        %1688 = vmatpush.msra.mxu0 0.0
        %1689 = vmatpush.msra.mxu0 0.0
        %1690 = vmatpush.msra.mxu0 0.0
        %1691 = vmatpush.msra.mxu0 0.0
        %1692 = vmatpush.msra.mxu0 0.0
        %1693 = vmatpush.msra.mxu0 0.0
        %1694 = vmatpush.msra.mxu0 0.0
        %1695 = vmatpush.msra.mxu0 0.0
        %1696 = vmatpush.msra.mxu0 0.0
        %1697 = vmatpush.msra.mxu0 %v1618
        %1698 = vmatpush.msra.mxu0 %v1615
        %1699 = vmatmul.f32.gmra.mxu0 %v1678
        %v1700 = vpop.f32.mrf.mxu0
        %v1701 = vadd.f32 0.0, %v1700
        %1702 = vmatmul.f32.gmra.mxu0 %v1681
        %v1703 = vpop.f32.mrf.mxu0
        %v1704 = vadd.f32 0.0, %v1703
        %1705 = vdwg.mxu0
        %1706 = vrot.lane.b32.xlu0 %v1569, 96
        %v1707 = vpop.permute.xlu0 %1706
        %1708 = vrot.lane.b32.xlu0 %v1572, 96
        %v1709 = vpop.permute.xlu0 %1708
        %1710 = vrot.lane.b32.xlu0 %v1592, 96
        %v1711 = vpop.permute.xlu0 %1710
        %1712 = vrot.lane.b32.xlu0 %v1595, 96
        %v1713 = vpop.permute.xlu0 %1712
        %v1714 = vsel %vm775, %v1707, 0
        %v1716 = vsel %vm775, %v1709, 0
        %v1718 = vsel %vm775, %v1711, 0
        %v1720 = vsel %vm775, %v1713, 0
        %1722 = vmatpush.xpose.msra.mxu0 0.0
        %1723 = vmatpush.xpose.msra.mxu0 0.0
        %1724 = vmatpush.xpose.msra.mxu0 0.0
        %1725 = vmatpush.xpose.msra.mxu0 0.0
        %1726 = vmatpush.xpose.msra.mxu0 0.0
        %1727 = vmatpush.xpose.msra.mxu0 0.0
        %1728 = vmatpush.xpose.msra.mxu0 0.0
        %1729 = vmatpush.xpose.msra.mxu0 0.0
        %1730 = vmatpush.xpose.msra.mxu0 0.0
        %1731 = vmatpush.xpose.msra.mxu0 0.0
        %1732 = vmatpush.xpose.msra.mxu0 0.0
        %1733 = vmatpush.xpose.msra.mxu0 0.0
        %1734 = vmatpush.xpose.msra.mxu0 0.0
        %1735 = vmatpush.xpose.msra.mxu0 0.0
        %1736 = vmatpush.xpose.msra.mxu0 %v1720
        %1737 = vmatpush.xpose.msra.mxu0 %v1718
        %1738 = vmatmul.f32.gmra.mxu0 %v1714
        %v1739 = vpop.f32.mrf.mxu0
        %v1740 = vadd.f32 0.0, %v1739
        %1741 = vmatmul.f32.gmra.mxu0 %v1716
        %v1742 = vpop.f32.mrf.mxu0
        %v1743 = vadd.f32 0.0, %v1742
        %1744 = vdwg.mxu0
        %v1745 = vsel %vm811, %v1740, -inf
        %1746 = vmax.xlane.f32.xlu0 %v1745
        %v1747 = vpop.xlane.xlu0 %1746
        %v1748 = vsel %vm811, %v1743, -inf
        %1749 = vmax.xlane.f32.xlu0 %v1748
        %v1750 = vpop.xlane.xlu0 %1749
        %v1751 = vsub.f32 %v1740, %v1747
        %v1752 = vsub.f32 %v1743, %v1750
        %v1753 = vmul.f32 %v1751, 1.442695
        %v1754 = vpow.pop %v1753
        %v1755 = vmul.f32 %v1752, 1.442695
        %v1756 = vpow.pop %v1755
        %v1757 = vsel %vm811, %v1754, 0.0
        %1758 = vadd.xlane.f32.xlu0 %v1757
        %v1759 = vpop.xlane.xlu0 %1758
        %v1760 = vsel %vm811, %v1756, 0.0
        %1761 = vadd.xlane.f32.xlu0 %v1760
        %v1762 = vpop.xlane.xlu0 %1761
        %v1763 = vrcp.pop %v1759
        %v1764 = vrcp.pop %v1762
        %v1765 = vmul.f32 %v1754, %v1763
        %v1766 = vmul.f32 %v1756, %v1764
        %1769 = vrot.lane.b32.xlu0 %v1615, 96
        %v1770 = vpop.permute.xlu0 %1769
        %1771 = vrot.lane.b32.xlu0 %v1618, 96
        %v1772 = vpop.permute.xlu0 %1771
        %v1776 = vsel %vm811, %v1765, 0
        %v1779 = vsel %vm811, %v1766, 0
        %1781 = vmatpush.msra.mxu0 0.0
        %1782 = vmatpush.msra.mxu0 0.0
        %1783 = vmatpush.msra.mxu0 0.0
        %1784 = vmatpush.msra.mxu0 0.0
        %1785 = vmatpush.msra.mxu0 0.0
        %1786 = vmatpush.msra.mxu0 0.0
        %1787 = vmatpush.msra.mxu0 0.0
        %1788 = vmatpush.msra.mxu0 0.0
        %1789 = vmatpush.msra.mxu0 0.0
        %1790 = vmatpush.msra.mxu0 0.0
        %1791 = vmatpush.msra.mxu0 0.0
        %1792 = vmatpush.msra.mxu0 0.0
        %1793 = vmatpush.msra.mxu0 0.0
        %1794 = vmatpush.msra.mxu0 0.0
        %1795 = vmatpush.msra.mxu0 %v1772
        %1796 = vmatpush.msra.mxu0 %v1770
        %1797 = vmatmul.f32.gmra.mxu0 %v1776
        %v1798 = vpop.f32.mrf.mxu0
        %v1799 = vadd.f32 0.0, %v1798
        %1800 = vmatmul.f32.gmra.mxu0 %v1779
        %v1801 = vpop.f32.mrf.mxu0
        %v1802 = vadd.f32 0.0, %v1801
        %1803 = vdwg.mxu0
        %1804 = vrot.lane.b32.xlu0 %v1569, 64
        %v1805 = vpop.permute.xlu0 %1804
        %1806 = vrot.lane.b32.xlu0 %v1572, 64
        %v1807 = vpop.permute.xlu0 %1806
        %1808 = vrot.lane.b32.xlu0 %v1592, 64
        %v1809 = vpop.permute.xlu0 %1808
        %1810 = vrot.lane.b32.xlu0 %v1595, 64
        %v1811 = vpop.permute.xlu0 %1810
        %v1812 = vsel %vm775, %v1805, 0
        %v1814 = vsel %vm775, %v1807, 0
        %v1816 = vsel %vm775, %v1809, 0
        %v1818 = vsel %vm775, %v1811, 0
        %1820 = vmatpush.xpose.msra.mxu0 0.0
        %1821 = vmatpush.xpose.msra.mxu0 0.0
        %1822 = vmatpush.xpose.msra.mxu0 0.0
        %1823 = vmatpush.xpose.msra.mxu0 0.0
        %1824 = vmatpush.xpose.msra.mxu0 0.0
        %1825 = vmatpush.xpose.msra.mxu0 0.0
        %1826 = vmatpush.xpose.msra.mxu0 0.0
        %1827 = vmatpush.xpose.msra.mxu0 0.0
        %1828 = vmatpush.xpose.msra.mxu0 0.0
        %1829 = vmatpush.xpose.msra.mxu0 0.0
        %1830 = vmatpush.xpose.msra.mxu0 0.0
        %1831 = vmatpush.xpose.msra.mxu0 0.0
        %1832 = vmatpush.xpose.msra.mxu0 0.0
        %1833 = vmatpush.xpose.msra.mxu0 0.0
        %1834 = vmatpush.xpose.msra.mxu0 %v1818
        %1835 = vmatpush.xpose.msra.mxu0 %v1816
        %1836 = vmatmul.f32.gmra.mxu0 %v1812
        %v1837 = vpop.f32.mrf.mxu0
        %v1838 = vadd.f32 0.0, %v1837
        %1839 = vmatmul.f32.gmra.mxu0 %v1814
        %v1840 = vpop.f32.mrf.mxu0
        %v1841 = vadd.f32 0.0, %v1840
        %1842 = vdwg.mxu0
        %v1843 = vsel %vm811, %v1838, -inf
        %1844 = vmax.xlane.f32.xlu0 %v1843
        %v1845 = vpop.xlane.xlu0 %1844
        %v1846 = vsel %vm811, %v1841, -inf
        %1847 = vmax.xlane.f32.xlu0 %v1846
        %v1848 = vpop.xlane.xlu0 %1847
        %v1849 = vsub.f32 %v1838, %v1845
        %v1850 = vsub.f32 %v1841, %v1848
        %v1851 = vmul.f32 %v1849, 1.442695
        %v1852 = vpow.pop %v1851
        %v1853 = vmul.f32 %v1850, 1.442695
        %v1854 = vpow.pop %v1853
        %v1855 = vsel %vm811, %v1852, 0.0
        %1856 = vadd.xlane.f32.xlu0 %v1855
        %v1857 = vpop.xlane.xlu0 %1856
        %v1858 = vsel %vm811, %v1854, 0.0
        %1859 = vadd.xlane.f32.xlu0 %v1858
        %v1860 = vpop.xlane.xlu0 %1859
        %v1861 = vrcp.pop %v1857
        %v1862 = vrcp.pop %v1860
        %v1863 = vmul.f32 %v1852, %v1861
        %v1864 = vmul.f32 %v1854, %v1862
        %1865 = vrot.lane.b32.xlu0 %v1615, 64
        %v1866 = vpop.permute.xlu0 %1865
        %1867 = vrot.lane.b32.xlu0 %v1618, 64
        %v1868 = vpop.permute.xlu0 %1867
        %v1872 = vsel %vm811, %v1863, 0
        %v1875 = vsel %vm811, %v1864, 0
        %1877 = vmatpush.msra.mxu0 0.0
        %1878 = vmatpush.msra.mxu0 0.0
        %1879 = vmatpush.msra.mxu0 0.0
        %1880 = vmatpush.msra.mxu0 0.0
        %1881 = vmatpush.msra.mxu0 0.0
        %1882 = vmatpush.msra.mxu0 0.0
        %1883 = vmatpush.msra.mxu0 0.0
        %1884 = vmatpush.msra.mxu0 0.0
        %1885 = vmatpush.msra.mxu0 0.0
        %1886 = vmatpush.msra.mxu0 0.0
        %1887 = vmatpush.msra.mxu0 0.0
        %1888 = vmatpush.msra.mxu0 0.0
        %1889 = vmatpush.msra.mxu0 0.0
        %1890 = vmatpush.msra.mxu0 0.0
        %1891 = vmatpush.msra.mxu0 %v1868
        %1892 = vmatpush.msra.mxu0 %v1866
        %1893 = vmatmul.f32.gmra.mxu0 %v1872
        %v1894 = vpop.f32.mrf.mxu0
        %v1895 = vadd.f32 0.0, %v1894
        %1896 = vmatmul.f32.gmra.mxu0 %v1875
        %v1897 = vpop.f32.mrf.mxu0
        %v1898 = vadd.f32 0.0, %v1897
        %1899 = vdwg.mxu0
        %1900 = vrot.lane.b32.xlu0 %v1569, 32
        %v1901 = vpop.permute.xlu0 %1900
        %1902 = vrot.lane.b32.xlu0 %v1572, 32
        %v1903 = vpop.permute.xlu0 %1902
        %1904 = vrot.lane.b32.xlu0 %v1592, 32
        %v1905 = vpop.permute.xlu0 %1904
        %1906 = vrot.lane.b32.xlu0 %v1595, 32
        %v1907 = vpop.permute.xlu0 %1906
        %v1908 = vsel %vm775, %v1901, 0
        %v1910 = vsel %vm775, %v1903, 0
        %v1912 = vsel %vm775, %v1905, 0
        %v1914 = vsel %vm775, %v1907, 0
        %1916 = vmatpush.xpose.msra.mxu0 0.0
        %1917 = vmatpush.xpose.msra.mxu0 0.0
        %1918 = vmatpush.xpose.msra.mxu0 0.0
        %1919 = vmatpush.xpose.msra.mxu0 0.0
        %1920 = vmatpush.xpose.msra.mxu0 0.0
        %1921 = vmatpush.xpose.msra.mxu0 0.0
        %1922 = vmatpush.xpose.msra.mxu0 0.0
        %1923 = vmatpush.xpose.msra.mxu0 0.0
        %1924 = vmatpush.xpose.msra.mxu0 0.0
        %1925 = vmatpush.xpose.msra.mxu0 0.0
        %1926 = vmatpush.xpose.msra.mxu0 0.0
        %1927 = vmatpush.xpose.msra.mxu0 0.0
        %1928 = vmatpush.xpose.msra.mxu0 0.0
        %1929 = vmatpush.xpose.msra.mxu0 0.0
        %1930 = vmatpush.xpose.msra.mxu0 %v1914
        %1931 = vmatpush.xpose.msra.mxu0 %v1912
        %1932 = vmatmul.f32.gmra.mxu0 %v1908
        %v1933 = vpop.f32.mrf.mxu0
        %v1934 = vadd.f32 0.0, %v1933
        %1935 = vmatmul.f32.gmra.mxu0 %v1910
        %v1936 = vpop.f32.mrf.mxu0
        %v1937 = vadd.f32 0.0, %v1936
        %1938 = vdwg.mxu0
        %v1939 = vsel %vm811, %v1934, -inf
        %1940 = vmax.xlane.f32.xlu0 %v1939
        %v1941 = vpop.xlane.xlu0 %1940
        %v1942 = vsel %vm811, %v1937, -inf
        %1943 = vmax.xlane.f32.xlu0 %v1942
        %v1944 = vpop.xlane.xlu0 %1943
        %v1945 = vsub.f32 %v1934, %v1941
        %v1946 = vsub.f32 %v1937, %v1944
        %v1947 = vmul.f32 %v1945, 1.442695
        %v1948 = vpow.pop %v1947
        %v1949 = vmul.f32 %v1946, 1.442695
        %v1950 = vpow.pop %v1949
        %v1951 = vsel %vm811, %v1948, 0.0
        %1952 = vadd.xlane.f32.xlu0 %v1951
        %v1953 = vpop.xlane.xlu0 %1952
        %v1954 = vsel %vm811, %v1950, 0.0
        %1955 = vadd.xlane.f32.xlu0 %v1954
        %v1956 = vpop.xlane.xlu0 %1955
        %v1957 = vrcp.pop %v1953
        %v1958 = vrcp.pop %v1956
        %v1959 = vmul.f32 %v1948, %v1957
        %v1960 = vmul.f32 %v1950, %v1958
        %1961 = vrot.lane.b32.xlu0 %v1615, 32
        %v1962 = vpop.permute.xlu0 %1961
        %1963 = vrot.lane.b32.xlu0 %v1618, 32
        %v1964 = vpop.permute.xlu0 %1963
        %v1968 = vsel %vm811, %v1959, 0
        %v1971 = vsel %vm811, %v1960, 0
        %1973 = vmatpush.msra.mxu0 0.0
        %1974 = vmatpush.msra.mxu0 0.0
        %1975 = vmatpush.msra.mxu0 0.0
        %1976 = vmatpush.msra.mxu0 0.0
        %1977 = vmatpush.msra.mxu0 0.0
        %1978 = vmatpush.msra.mxu0 0.0
        %1979 = vmatpush.msra.mxu0 0.0
        %1980 = vmatpush.msra.mxu0 0.0
        %1981 = vmatpush.msra.mxu0 0.0
        %1982 = vmatpush.msra.mxu0 0.0
        %1983 = vmatpush.msra.mxu0 0.0
        %1984 = vmatpush.msra.mxu0 0.0
        %1985 = vmatpush.msra.mxu0 0.0
        %1986 = vmatpush.msra.mxu0 0.0
        %1987 = vmatpush.msra.mxu0 %v1964
        %1988 = vmatpush.msra.mxu0 %v1962
        %1989 = vmatmul.f32.gmra.mxu0 %v1968
        %v1990 = vpop.f32.mrf.mxu0
        %v1991 = vadd.f32 0.0, %v1990
        %1992 = vmatmul.f32.gmra.mxu0 %v1971
        %v1993 = vpop.f32.mrf.mxu0
        %v1994 = vadd.f32 0.0, %v1993
        %1995 = vdwg.mxu0
        %1998 = vrot.lane.b32.xlu0 %v1799, 32
        %v1999 = vpop.permute.xlu0 %1998
        %2000 = vrot.lane.b32.xlu0 %v1802, 32
        %v2001 = vpop.permute.xlu0 %2000
        %2006 = vrot.lane.b32.xlu0 %v1895, 64
        %v2007 = vpop.permute.xlu0 %2006
        %2008 = vrot.lane.b32.xlu0 %v1898, 64
        %v2009 = vpop.permute.xlu0 %2008
        %2014 = vrot.lane.b32.xlu0 %v1991, 96
        %v2015 = vpop.permute.xlu0 %2014
        %2016 = vrot.lane.b32.xlu0 %v1994, 96
        %v2017 = vpop.permute.xlu0 %2016
        %v2020 = vsel %vm775, %v1701, %v1999
        %v2021 = vsel %vm775, %v1704, %v2001
        %v2022 = vsel %vm1179, %v2020, %v2007
        %v2023 = vsel %vm1179, %v2021, %v2009
        %v2024 = vsel %vm1182, %v2022, %v2015
        %v2025 = vsel %vm1182, %v2023, %v2017
        %2026 = vmatpush.msra.mxu0 %v1200
        %2027 = vmatpush.msra.mxu0 %v1199
        %2028 = vmatpush.msra.mxu0 %v1198
        %2029 = vmatpush.msra.mxu0 %v1197
        %2030 = vmatpush.msra.mxu0 %v1196
        %2031 = vmatpush.msra.mxu0 %v1195
        %2032 = vmatpush.msra.mxu0 %v1194
        %2033 = vmatpush.msra.mxu0 %v1193
        %2034 = vmatpush.msra.mxu0 %v1192
        %2035 = vmatpush.msra.mxu0 %v1191
        %2036 = vmatpush.msra.mxu0 %v1190
        %2037 = vmatpush.msra.mxu0 %v1189
        %2038 = vmatpush.msra.mxu0 %v1188
        %2039 = vmatpush.msra.mxu0 %v1187
        %2040 = vmatpush.msra.mxu0 %v1186
        %2041 = vmatpush.msra.mxu0 %v1185
        %2042 = vmatmul.f32.gmra.mxu0 %v2024
        %v2043 = vpop.f32.mrf.mxu0
        %v2044 = vadd.f32 %v1203, %v2043
        %2045 = vmatmul.f32.gmra.mxu0 %v2025
        %v2046 = vpop.f32.mrf.mxu0
        %v2047 = vadd.f32 %v1203, %v2046
        %2048 = vdwg.mxu0
        %2049 = vmatpush.msra.mxu0 %v1258
        %2050 = vmatpush.msra.mxu0 %v1256
        %2051 = vmatpush.msra.mxu0 %v1254
        %2052 = vmatpush.msra.mxu0 %v1252
        %2053 = vmatpush.msra.mxu0 %v1250
        %2054 = vmatpush.msra.mxu0 %v1248
        %2055 = vmatpush.msra.mxu0 %v1246
        %2056 = vmatpush.msra.mxu0 %v1244
        %2057 = vmatpush.msra.mxu0 %v1242
        %2058 = vmatpush.msra.mxu0 %v1240
        %2059 = vmatpush.msra.mxu0 %v1238
        %2060 = vmatpush.msra.mxu0 %v1236
        %2061 = vmatpush.msra.mxu0 %v1234
        %2062 = vmatpush.msra.mxu0 %v1232
        %2063 = vmatpush.msra.mxu0 %v1230
        %2064 = vmatpush.msra.mxu0 %v1228
        %2065 = vmatmul.f32.gmra.mxu0 %v643
        %v2066 = vpop.f32.mrf.mxu0
        %v2067 = vadd.f32 %v1294, %v2066
        %2068 = vmatmul.f32.gmra.mxu0 %v646
        %v2069 = vpop.f32.mrf.mxu0
        %v2070 = vadd.f32 %v1294, %v2069
        %2071 = vdwg.mxu0
        %2072 = vmatpush.msra.mxu0 %v1290
        %2073 = vmatpush.msra.mxu0 %v1288
        %2074 = vmatpush.msra.mxu0 %v1286
        %2075 = vmatpush.msra.mxu0 %v1284
        %2076 = vmatpush.msra.mxu0 %v1282
        %2077 = vmatpush.msra.mxu0 %v1280
        %2078 = vmatpush.msra.mxu0 %v1278
        %2079 = vmatpush.msra.mxu0 %v1276
        %2080 = vmatpush.msra.mxu0 %v1274
        %2081 = vmatpush.msra.mxu0 %v1272
        %2082 = vmatpush.msra.mxu0 %v1270
        %2083 = vmatpush.msra.mxu0 %v1268
        %2084 = vmatpush.msra.mxu0 %v1266
        %2085 = vmatpush.msra.mxu0 %v1264
        %2086 = vmatpush.msra.mxu0 %v1262
        %2087 = vmatpush.msra.mxu0 %v1260
        %2088 = vmatmul.f32.gmra.mxu0 %v2044
        %v2089 = vpop.f32.mrf.mxu0
        %v2090 = vadd.f32 %v2067, %v2089
        %2091 = vmatmul.f32.gmra.mxu0 %v2047
        %v2092 = vpop.f32.mrf.mxu0
        %v2093 = vadd.f32 %v2070, %v2092
        %2094 = vdwg.mxu0
        %2095 = vmatpush.msra.mxu0 %v1259
        %2096 = vmatpush.msra.mxu0 %v1257
        %2097 = vmatpush.msra.mxu0 %v1255
        %2098 = vmatpush.msra.mxu0 %v1253
        %2099 = vmatpush.msra.mxu0 %v1251
        %2100 = vmatpush.msra.mxu0 %v1249
        %2101 = vmatpush.msra.mxu0 %v1247
        %2102 = vmatpush.msra.mxu0 %v1245
        %2103 = vmatpush.msra.mxu0 %v1243
        %2104 = vmatpush.msra.mxu0 %v1241
        %2105 = vmatpush.msra.mxu0 %v1239
        %2106 = vmatpush.msra.mxu0 %v1237
        %2107 = vmatpush.msra.mxu0 %v1235
        %2108 = vmatpush.msra.mxu0 %v1233
        %2109 = vmatpush.msra.mxu0 %v1231
        %2110 = vmatpush.msra.mxu0 %v1229
        %2111 = vmatmul.f32.gmra.mxu0 %v643
        %v2112 = vpop.f32.mrf.mxu0
        %v2113 = vadd.f32 %v1295, %v2112
        %2114 = vmatmul.f32.gmra.mxu0 %v646
        %v2115 = vpop.f32.mrf.mxu0
        %v2116 = vadd.f32 %v1295, %v2115
        %2117 = vdwg.mxu0
        %2118 = vmatpush.msra.mxu0 %v1291
        %2119 = vmatpush.msra.mxu0 %v1289
        %2120 = vmatpush.msra.mxu0 %v1287
        %2121 = vmatpush.msra.mxu0 %v1285
        %2122 = vmatpush.msra.mxu0 %v1283
        %2123 = vmatpush.msra.mxu0 %v1281
        %2124 = vmatpush.msra.mxu0 %v1279
        %2125 = vmatpush.msra.mxu0 %v1277
        %2126 = vmatpush.msra.mxu0 %v1275
        %2127 = vmatpush.msra.mxu0 %v1273
        %2128 = vmatpush.msra.mxu0 %v1271
        %2129 = vmatpush.msra.mxu0 %v1269
        %2130 = vmatpush.msra.mxu0 %v1267
        %2131 = vmatpush.msra.mxu0 %v1265
        %2132 = vmatpush.msra.mxu0 %v1263
        %2133 = vmatpush.msra.mxu0 %v1261
        %2134 = vmatmul.f32.gmra.mxu0 %v2044
        %v2135 = vpop.f32.mrf.mxu0
        %v2136 = vadd.f32 %v2113, %v2135
        %2137 = vmatmul.f32.gmra.mxu0 %v2047
        %v2138 = vpop.f32.mrf.mxu0
        %v2139 = vadd.f32 %v2116, %v2138
        %2140 = vdwg.mxu0
        %v2141 = vadd.f32 %v2090, %v2093
        %v2142 = vrot.slane %v2141, 4
        %v2143 = vadd.f32 %v2141, %v2142
        %v2144 = vrot.slane %v2143, 2
        %v2145 = vadd.f32 %v2143, %v2144
        %v2146 = vrot.slane %v2145, 1
        %v2147 = vadd.f32 %v2145, %v2146
        %v2148 = vadd.f32 %v2136, %v2139
        %v2149 = vrot.slane %v2148, 4
        %v2150 = vadd.f32 %v2148, %v2149
        %v2151 = vrot.slane %v2150, 2
        %v2152 = vadd.f32 %v2150, %v2151
        %v2153 = vrot.slane %v2152, 1
        %v2154 = vadd.f32 %v2152, %v2153
        %v2155 = vmul.f32 %v2147, %v1410
        %v2156 = vmul.f32 %v2154, %v1410
        %v2157 = vsub.f32 %v2090, %v2155
        %v2158 = vsub.f32 %v2136, %v2156
        %v2159 = vsub.f32 %v2093, %v2155
        %v2160 = vsub.f32 %v2139, %v2156
        %v2161 = vmul.f32 %v2157, %v2157
        %v2162 = vmul.f32 %v2158, %v2158
        %v2163 = vmul.f32 %v2159, %v2159
        %v2164 = vmul.f32 %v2160, %v2160
        %v2165 = vadd.f32 %v2161, %v2163
        %v2166 = vrot.slane %v2165, 4
        %v2167 = vadd.f32 %v2165, %v2166
        %v2168 = vrot.slane %v2167, 2
        %v2169 = vadd.f32 %v2167, %v2168
        %v2170 = vrot.slane %v2169, 1
        %v2171 = vadd.f32 %v2169, %v2170
        %v2172 = vadd.f32 %v2162, %v2164
        %v2173 = vrot.slane %v2172, 4
        %v2174 = vadd.f32 %v2172, %v2173
        %v2175 = vrot.slane %v2174, 2
        %v2176 = vadd.f32 %v2174, %v2175
        %v2177 = vrot.slane %v2176, 1
        %v2178 = vadd.f32 %v2176, %v2177
        %v2179 = vmul.f32 %v2171, %v1410
        %v2180 = vmul.f32 %v2178, %v1410
        %v2181 = vadd.f32 %v2179, 1e-05
        %v2182 = vadd.f32 %v2180, 1e-05
        %v2183 = vrsqrt.pop %v2181
        %v2184 = vmul.f32 %v2183, %v2181
        %v2185 = vmul.f32 %v2184, %v2183
        %v2186 = vmul.f32 0.5, %v2185
        %v2187 = vsub.f32 1.5, %v2186
        %v2188 = vmul.f32 %v2183, %v2187
        %vm2189 = vweird.f32 %v2181
        %vm2190 = vweird.f32 %v2183
        %vm2191 = vmor %vm2189, %vm2190
        %v2192 = vsel %vm2191, %v2183, %v2188
        %v2193 = vrsqrt.pop %v2182
        %v2194 = vmul.f32 %v2193, %v2182
        %v2195 = vmul.f32 %v2194, %v2193
        %v2196 = vmul.f32 0.5, %v2195
        %v2197 = vsub.f32 1.5, %v2196
        %v2198 = vmul.f32 %v2193, %v2197
        %vm2199 = vweird.f32 %v2182
        %vm2200 = vweird.f32 %v2193
        %vm2201 = vmor %vm2199, %vm2200
        %v2202 = vsel %vm2201, %v2193, %v2198
        %v2203 = vmul.f32 %v2157, %v2192
        %v2204 = vmul.f32 %v2158, %v2202
        %v2205 = vmul.f32 %v2159, %v2192
        %v2206 = vmul.f32 %v2160, %v2202
        %v2207 = vmax.f32 %v2203, 0.0
        %v2208 = vmax.f32 %v2204, 0.0
        %v2209 = vmax.f32 %v2205, 0.0
        %v2210 = vmax.f32 %v2206, 0.0
        %2211 = vmatpush.msra.mxu0 %v1482
        %2212 = vmatpush.msra.mxu0 %v1481
        %2213 = vmatpush.msra.mxu0 %v1480
        %2214 = vmatpush.msra.mxu0 %v1479
        %2215 = vmatpush.msra.mxu0 %v1478
        %2216 = vmatpush.msra.mxu0 %v1477
        %2217 = vmatpush.msra.mxu0 %v1476
        %2218 = vmatpush.msra.mxu0 %v1475
        %2219 = vmatpush.msra.mxu0 %v1474
        %2220 = vmatpush.msra.mxu0 %v1473
        %2221 = vmatpush.msra.mxu0 %v1472
        %2222 = vmatpush.msra.mxu0 %v1471
        %2223 = vmatpush.msra.mxu0 %v1470
        %2224 = vmatpush.msra.mxu0 %v1469
        %2225 = vmatpush.msra.mxu0 %v1468
        %2226 = vmatpush.msra.mxu0 %v1467
        %2227 = vmatmul.f32.gmra.mxu0 %v2207
        %v2228 = vpop.f32.mrf.mxu0
        %v2229 = vadd.f32 %v1501, %v2228
        %2230 = vmatmul.f32.gmra.mxu0 %v2209
        %v2231 = vpop.f32.mrf.mxu0
        %v2232 = vadd.f32 %v1501, %v2231
        %2233 = vdwg.mxu0
        %2234 = vmatpush.msra.mxu0 %v1498
        %2235 = vmatpush.msra.mxu0 %v1497
        %2236 = vmatpush.msra.mxu0 %v1496
        %2237 = vmatpush.msra.mxu0 %v1495
        %2238 = vmatpush.msra.mxu0 %v1494
        %2239 = vmatpush.msra.mxu0 %v1493
        %2240 = vmatpush.msra.mxu0 %v1492
        %2241 = vmatpush.msra.mxu0 %v1491
        %2242 = vmatpush.msra.mxu0 %v1490
        %2243 = vmatpush.msra.mxu0 %v1489
        %2244 = vmatpush.msra.mxu0 %v1488
        %2245 = vmatpush.msra.mxu0 %v1487
        %2246 = vmatpush.msra.mxu0 %v1486
        %2247 = vmatpush.msra.mxu0 %v1485
        %2248 = vmatpush.msra.mxu0 %v1484
        %2249 = vmatpush.msra.mxu0 %v1483
        %2250 = vmatmul.f32.gmra.mxu0 %v2208
        %v2251 = vpop.f32.mrf.mxu0
        %v2252 = vadd.f32 %v2229, %v2251
        %2253 = vmatmul.f32.gmra.mxu0 %v2210
        %v2254 = vpop.f32.mrf.mxu0
        %v2255 = vadd.f32 %v2232, %v2254
        %2256 = vdwg.mxu0
        %v2257 = vadd.f32 %v643, %v2252
        %v2258 = vadd.f32 %v646, %v2255
        %v2259 = vld [vmem:[%s14] sm:$0xff]
        %v2260 = vld [vmem:[%s14 + $0x8] sm:$0xff]
        %v2261 = vld [vmem:[%s14 + $0x10] sm:$0xff]
        %v2262 = vld [vmem:[%s14 + $0x18] sm:$0xff]
        %v2263 = vld [vmem:[%s14 + $0x20] sm:$0xff]
        %v2264 = vld [vmem:[%s14 + $0x28] sm:$0xff]
        %v2265 = vld [vmem:[%s14 + $0x30] sm:$0xff]
        %v2266 = vld [vmem:[%s14 + $0x38] sm:$0xff]
        %v2267 = vld [vmem:[%s14 + $0x40] sm:$0xff]
        %v2268 = vld [vmem:[%s14 + $0x48] sm:$0xff]
        %v2269 = vld [vmem:[%s14 + $0x50] sm:$0xff]
        %v2270 = vld [vmem:[%s14 + $0x58] sm:$0xff]
        %v2271 = vld [vmem:[%s14 + $0x60] sm:$0xff]
        %v2272 = vld [vmem:[%s14 + $0x68] sm:$0xff]
        %v2273 = vld [vmem:[%s14 + $0x70] sm:$0xff]
        %v2274 = vld [vmem:[%s14 + $0x78] sm:$0xff]
        %v2275 = vld [vmem:[%s15] sm:$0x1]
        %v2277 = vperm.slane %v2275, 0
        %2279 = vmatpush.msra.mxu0 %v2274
        %2280 = vmatpush.msra.mxu0 %v2273
        %2281 = vmatpush.msra.mxu0 %v2272
        %2282 = vmatpush.msra.mxu0 %v2271
        %2283 = vmatpush.msra.mxu0 %v2270
        %2284 = vmatpush.msra.mxu0 %v2269
        %2285 = vmatpush.msra.mxu0 %v2268
        %2286 = vmatpush.msra.mxu0 %v2267
        %2287 = vmatpush.msra.mxu0 %v2266
        %2288 = vmatpush.msra.mxu0 %v2265
        %2289 = vmatpush.msra.mxu0 %v2264
        %2290 = vmatpush.msra.mxu0 %v2263
        %2291 = vmatpush.msra.mxu0 %v2262
        %2292 = vmatpush.msra.mxu0 %v2261
        %2293 = vmatpush.msra.mxu0 %v2260
        %2294 = vmatpush.msra.mxu0 %v2259
        %2295 = vmatmul.f32.gmra.mxu0 %v1549
        %v2296 = vpop.f32.mrf.mxu0
        %v2297 = vadd.f32 %v2277, %v2296
        %2298 = vmatmul.f32.gmra.mxu0 %v1550
        %v2299 = vpop.f32.mrf.mxu0
        %v2300 = vadd.f32 %v2277, %v2299
        %2301 = vdwg.mxu0
        %2302 = vst [vmem:[%s560] sm:$0xff] %v2297
        %2303 = vst [vmem:[%s560 + $0x8] sm:$0xff] %v2300
        %v2304 = vld [vmem:[%s14] sm:$0xff]
        %v2305 = vld [vmem:[%s14 + $0x8] sm:$0xff]
        %v2306 = vld [vmem:[%s14 + $0x10] sm:$0xff]
        %v2307 = vld [vmem:[%s14 + $0x18] sm:$0xff]
        %v2308 = vld [vmem:[%s14 + $0x20] sm:$0xff]
        %v2309 = vld [vmem:[%s14 + $0x28] sm:$0xff]
        %v2310 = vld [vmem:[%s14 + $0x30] sm:$0xff]
        %v2311 = vld [vmem:[%s14 + $0x38] sm:$0xff]
        %v2312 = vld [vmem:[%s14 + $0x40] sm:$0xff]
        %v2313 = vld [vmem:[%s14 + $0x48] sm:$0xff]
        %v2314 = vld [vmem:[%s14 + $0x50] sm:$0xff]
        %v2315 = vld [vmem:[%s14 + $0x58] sm:$0xff]
        %v2316 = vld [vmem:[%s14 + $0x60] sm:$0xff]
        %v2317 = vld [vmem:[%s14 + $0x68] sm:$0xff]
        %v2318 = vld [vmem:[%s14 + $0x70] sm:$0xff]
        %v2319 = vld [vmem:[%s14 + $0x78] sm:$0xff]
        %v2320 = vld [vmem:[%s15] sm:$0x1]
        %v2322 = vperm.slane %v2320, 0
        %2324 = vmatpush.msra.mxu0 %v2319
        %2325 = vmatpush.msra.mxu0 %v2318
        %2326 = vmatpush.msra.mxu0 %v2317
        %2327 = vmatpush.msra.mxu0 %v2316
        %2328 = vmatpush.msra.mxu0 %v2315
        %2329 = vmatpush.msra.mxu0 %v2314
        %2330 = vmatpush.msra.mxu0 %v2313
        %2331 = vmatpush.msra.mxu0 %v2312
        %2332 = vmatpush.msra.mxu0 %v2311
        %2333 = vmatpush.msra.mxu0 %v2310
        %2334 = vmatpush.msra.mxu0 %v2309
        %2335 = vmatpush.msra.mxu0 %v2308
        %2336 = vmatpush.msra.mxu0 %v2307
        %2337 = vmatpush.msra.mxu0 %v2306
        %2338 = vmatpush.msra.mxu0 %v2305
        %2339 = vmatpush.msra.mxu0 %v2304
        %2340 = vmatmul.f32.gmra.mxu0 %v2257
        %v2341 = vpop.f32.mrf.mxu0
        %v2342 = vadd.f32 %v2322, %v2341
        %2343 = vmatmul.f32.gmra.mxu0 %v2258
        %v2344 = vpop.f32.mrf.mxu0
        %v2345 = vadd.f32 %v2322, %v2344
        %2346 = vdwg.mxu0
        %2347 = vst [vmem:[%s567] sm:$0xff] %v2342
        %2348 = vst [vmem:[%s567 + $0x8] sm:$0xff] %v2345
        %s2349 = sand.u32 %s389, 1
        %s2350 = scalar_lea.sflag [#allocation3], %s2349
        %s2351 = sand.u32 %s389, 1
        %s2352 = smul.addr %s2351, 16
        %s2353 = scalar_lea.vmem [#allocation2], %s2352
        %s2354 = sand.u32 %s415, 1
        %s2355 = scalar_lea.sflag [#allocation5], %s2354
        %s2356 = sand.u32 %s415, 1
        %s2357 = smul.addr %s2356, 16
        %s2358 = scalar_lea.vmem [#allocation4], %s2357
        // Predicated region
        $region85: #{cross_attention_refinement.1} parent=83 // pred_check
          %p2359 = pneg %p399
        $region86: #{cross_attention_refinement.1} parent=83 // pred_check_branch
          %2361 = sbr.rel (%p2359) target = $region88
        $region87: #{cross_attention_refinement.1} parent=83 // pred_region
          %2363 = vsyncadd %s2350, 0
          %s2364 = smul.addr %s35, 2
          %s2365 = smul.addr %s2364, 8
          %s2366 = scalar_lea.hbm %s16, %s2365
          %s2367 = sshll.u32 %s2353, 4
          %s2368 = int_to_ptr.vmem [resolvable:$true] %s2367
          %s2369 = sshll.u32 %s2366, 4
          %s2370 = int_to_ptr.hbm [resolvable:$true] %s2369
          %2375 = dma.vmem_to_hbm [thread:$0]  %s2368, 256, %s2370, %s2350, 128, 128, 8
        $region88: #{cross_attention_refinement.1} parent=83 // pred_fallthru
          _
        // Predicated region
        $region89: #{cross_attention_refinement.1} parent=83 // pred_check
          %p2376 = pneg %p425
        $region90: #{cross_attention_refinement.1} parent=83 // pred_check_branch
          %2378 = sbr.rel (%p2376) target = $region92
        $region91: #{cross_attention_refinement.1} parent=83 // pred_region
          %2380 = vsyncadd %s2355, 0
          %s2381 = smul.addr %s35, 2
          %s2382 = smul.addr %s2381, 8
          %s2383 = scalar_lea.hbm %s17, %s2382
          %s2384 = sshll.u32 %s2358, 4
          %s2385 = int_to_ptr.vmem [resolvable:$true] %s2384
          %s2386 = sshll.u32 %s2383, 4
          %s2387 = int_to_ptr.hbm [resolvable:$true] %s2386
          %2392 = dma.vmem_to_hbm [thread:$0]  %s2385, 256, %s2387, %s2355, 128, 128, 8
        $region92: #{cross_attention_refinement.1} parent=83 // pred_fallthru
          _
      $region84: #{cross_attention_refinement.1} parent=5 // pred_fallthru
        _
      %p2393 = scmp.le.s32.totalorder 2, %s30
      // Predicated region
      $region93: #{cross_attention_refinement.1} parent=5 // pred_check
        %p2394 = pneg %p2393
      $region94: #{cross_attention_refinement.1} parent=5 // pred_check_branch
        %2396 = sbr.rel (%p2394) target = $region96
      $region95: #{cross_attention_refinement.1} parent=5 // pred_region
        %s2397 = ssub.s32 %s30, 2
        // Predicated region
        $region97: #{cross_attention_refinement.1} parent=95 // pred_check
          %p2398 = pneg %p405
        $region98: #{cross_attention_refinement.1} parent=95 // pred_check_branch
          %2400 = sbr.rel (%p2398) target = $region100
        $region99: #{cross_attention_refinement.1} parent=95 // pred_region
          %s2401 = sand.u32 %s390, 1
          %s2402 = scalar_lea.sflag [#allocation3], %s2401
          %s2403 = sand.u32 %s390, 1
          %s2404 = smul.addr %s2403, 16
          %s2405 = scalar_lea.vmem [#allocation2], %s2404
          %2407 = dma.done %s2402, 256
        $region100: #{cross_attention_refinement.1} parent=95 // pred_fallthru
          _
        // Predicated region
        $region101: #{cross_attention_refinement.1} parent=95 // pred_check
          %p2408 = pneg %p431
        $region102: #{cross_attention_refinement.1} parent=95 // pred_check_branch
          %2410 = sbr.rel (%p2408) target = $region104
        $region103: #{cross_attention_refinement.1} parent=95 // pred_region
          %s2411 = sand.u32 %s416, 1
          %s2412 = scalar_lea.sflag [#allocation5], %s2411
          %s2413 = sand.u32 %s416, 1
          %s2414 = smul.addr %s2413, 16
          %s2415 = scalar_lea.vmem [#allocation4], %s2414
          %2417 = dma.done %s2412, 256
        $region104: #{cross_attention_refinement.1} parent=95 // pred_fallthru
          _
      $region96: #{cross_attention_refinement.1} parent=5 // pred_fallthru
        _
    $region6: #{cross_attention_refinement.1} parent=1 // loop_footer
      %s34 = sadd.s32 1, %s30
    $region7: #{cross_attention_refinement.1} parent=1 // loop_footer_branch
      %29 = sbr.rel target = $region3
    $region8: #{cross_attention_refinement.1} parent=1 // loop_exit
      _
    %2418 = vsyncpa [#allocation3], 1
    %s2419 = scalar_lea.sflag [#allocation3], 1
    %2420 = vsyncpa %s2419, 1
    %2421 = vsyncpa [#allocation5], 1
    %s2422 = scalar_lea.sflag [#allocation5], 1
    %2423 = vsyncpa %s2422, 1

</llo_original>
